<compile_context>
chip_gen: v7x
topology: tpu7x:2x2x1
jax: 0.10.0
libtpu: 0.0.40
codegen_flags: <defaults>
</compile_context>

<pallas_src>
import functools

import jax
import jax.numpy as jnp
from jax.experimental import pallas as pl
from jax.experimental.pallas import tpu as pltpu


# ------------------------------- helpers ----------------------------------- #

def _round_up(n, m):
    return (n + m - 1) // m * m


def _pick_tile(n, cap):
    """Largest tile <= cap (>=128) that divides n (n is a multiple of 128)."""
    t = min(cap, n)
    while t > 128 and n % t != 0:
        t //= 2
    return t


def _vmem_capacity_bytes():
    try:
        info = pltpu.get_tpu_info()
        return int(getattr(info, "vmem_capacity_bytes", 64 * 1024 * 1024))
    except Exception:
        return 64 * 1024 * 1024  # conservative fallback = v7x per-TC VMEM


def _fused_vmem_need(n_pad, c_in, h):
    """Rough VMEM bytes for the fused path (x2 for BlockSpec double-buffering)."""
    io_bytes = 2 * n_pad * n_pad                               # A_plus bf16
    io_bytes += 4 * (n_pad * c_in + c_in * h + h + 2 * n_pad)  # x, W, b, norms
    io_bytes += 4 * n_pad * h                                  # output f32
    return 2 * io_bytes + 4 * n_pad * h                        # + g scratch


# ----------------------------- Pallas kernels ------------------------------ #

def _prep_kernel(adj_ref, aplus_ref, norm_ref, norm2_ref, acc_ref,
                 *, n_valid, tile, ragged):
    """One-time prep over (row tiles 'parallel', col tiles 'arbitrary').

    Emits A_plus = adj + I as bf16 (0/1/2 exact) and accumulates row sums so
    that at the last column tile norm = rsqrt(1 + deg) and norm2 = norm*norm.
    Ragged edges (N not a multiple of the tile) are masked in-kernel so adj
    never needs host-side padding.
    """
    i = pl.program_id(0)
    j = pl.program_id(1)

    a = adj_ref[...].astype(jnp.float32)
    if ragged:  # static branch: only pay iota/compare cost when edges exist
        row = i * tile + jax.lax.broadcasted_iota(jnp.int32, (tile, tile), 0)
        col = j * tile + jax.lax.broadcasted_iota(jnp.int32, (tile, tile), 1)
        a = jnp.where((row < n_valid) & (col < n_valid), a, 0.0)

    # Identity only on diagonal tiles (square tiles -> diag lives at i == j).
    @pl.when(i == j)
    def _():
        r = jax.lax.broadcasted_iota(jnp.int32, (tile, tile), 0)
        c = jax.lax.broadcasted_iota(jnp.int32, (tile, tile), 1)
        aplus_ref[...] = (a + (r == c).astype(jnp.float32)).astype(aplus_ref.dtype)

    @pl.when(i != j)
    def _():
        aplus_ref[...] = a.astype(aplus_ref.dtype)

    @pl.when(j == 0)
    def _():
        acc_ref[...] = jnp.zeros_like(acc_ref)

    acc_ref[...] += jnp.sum(a, axis=-1, keepdims=True)  # XLU row-reduce

    @pl.when(j == pl.num_programs(1) - 1)
    def _():
        nrm = jax.lax.rsqrt(1.0 + acc_ref[...])          # rsqrt(1 + deg)
        norm_ref[...] = nrm
        norm2_ref[...] = nrm * nrm


def _linear_prescale_kernel(x_ref, w_ref, b_ref, norm_ref, o_ref):
    """xemb + first-layer pre-scale:  g0 = norm * (x @ W + b)."""
    h = jnp.dot(x_ref[...], w_ref[...], preferred_element_type=jnp.float32)
    o_ref[...] = (norm_ref[...] * (h + b_ref[...])).astype(o_ref.dtype)


def _gcn_layer_kernel(aplus_ref, g_ref, scale_ref, o_ref, acc_ref):
    """One conv layer (tiled path):  out = scale_i * (A_plus @ g).

    grid = (row tiles 'parallel', contraction tiles 'arbitrary'); bf16 MXU
    matmul, f32 VMEM accumulator, norm scaling only in the epilogue (once per
    output row tile instead of once per k-step).
    """
    k = pl.program_id(1)

    @pl.when(k == 0)
    def _():
        acc_ref[...] = jnp.zeros_like(acc_ref)

    acc_ref[...] += jnp.dot(aplus_ref[...], g_ref[...],       # bf16 x bf16 MXU
                            preferred_element_type=jnp.float32)

    @pl.when(k == pl.num_programs(1) - 1)
    def _():
        o_ref[...] = (scale_ref[...] * acc_ref[...]).astype(o_ref.dtype)


def _fused_gcn_kernel(a_ref, x_ref, w_ref, b_ref, norm_ref, norm2_ref,
                      o_ref, g_ref, *, num_layers):
    """Fully fused GCN: xemb + all conv layers, everything resident in VMEM."""
    # g0 = norm * (x @ W + b)   (small K=32 matmul, kept f32 for precision)
    g_ref[...] = norm_ref[...] * (
        jnp.dot(x_ref[...], w_ref[...], preferred_element_type=jnp.float32)
        + b_ref[...])
    # g <- scale * (A_plus @ g) ;  scale = norm^2, except norm on the last layer
    for l in range(num_layers):
        scale = norm_ref[...] if l == num_layers - 1 else norm2_ref[...]
        g_ref[...] = scale * jnp.dot(a_ref[...],
                                     g_ref[...].astype(jnp.bfloat16),
                                     preferred_element_type=jnp.float32)
    o_ref[...] = g_ref[...].astype(o_ref.dtype)


# ------------------------------ JAX wrappers -------------------------------- #

def gcn_prep_pallas(adj, n_pad, *, tile=512, vmem_limit=48 * 1024 * 1024):
    n = adj.shape[0]
    tp = _pick_tile(n_pad, tile)
    nt = n_pad // tp
    kernel = functools.partial(_prep_kernel, n_valid=n, tile=tp,
                               ragged=(n % tp != 0))
    return pl.pallas_call(
        kernel,
        out_shape=(
            jax.ShapeDtypeStruct((n_pad, n_pad), jnp.bfloat16),  # A_plus
            jax.ShapeDtypeStruct((n_pad, 1), jnp.float32),       # norm
            jax.ShapeDtypeStruct((n_pad, 1), jnp.float32),       # norm^2
        ),
        grid=(nt, nt),
        in_specs=[pl.BlockSpec((tp, tp), lambda i, j: (i, j))],
        out_specs=(
            pl.BlockSpec((tp, tp), lambda i, j: (i, j)),
            pl.BlockSpec((tp, 1), lambda i, j: (i, 0)),
            pl.BlockSpec((tp, 1), lambda i, j: (i, 0)),
        ),
        scratch_shapes=[pltpu.VMEM((tp, 1), jnp.float32)],
        compiler_params=pltpu.CompilerParams(
            dimension_semantics=("parallel", "arbitrary"),
            vmem_limit_bytes=vmem_limit),
    )(adj)


def linear_prescale_pallas(x, w, b, norm, *, block_m=512, out_dtype=jnp.bfloat16,
                           vmem_limit=48 * 1024 * 1024):
    n_pad, c_in = x.shape
    h = w.shape[1]
    bm = _pick_tile(n_pad, block_m)
    return pl.pallas_call(
        _linear_prescale_kernel,
        out_shape=jax.ShapeDtypeStruct((n_pad, h), out_dtype),
        grid=(n_pad // bm,),
        in_specs=[
            pl.BlockSpec((bm, c_in), lambda i: (i, 0)),
            pl.BlockSpec((c_in, h), lambda i: (0, 0)),
            pl.BlockSpec((1, h), lambda i: (0, 0)),
            pl.BlockSpec((bm, 1), lambda i: (i, 0)),
        ],
        out_specs=pl.BlockSpec((bm, h), lambda i: (i, 0)),
        compiler_params=pltpu.CompilerParams(
            dimension_semantics=("parallel",), vmem_limit_bytes=vmem_limit),
    )(x, w, b, norm)


def gcn_layer_pallas(aplus, g, scale, *, tm=512, tk=1024,
                     out_dtype=jnp.bfloat16, vmem_limit=48 * 1024 * 1024):
    n_pad = aplus.shape[0]
    h = g.shape[1]
    # NOTE(perf): if an xprof trace shows exposed DMA on the A_plus stream,
    # add pipeline_mode=pl.Buffered(3) to its BlockSpec (check v7x VMEM fit).
    return pl.pallas_call(
        _gcn_layer_kernel,
        out_shape=jax.ShapeDtypeStruct((n_pad, h), out_dtype),
        grid=(n_pad // tm, n_pad // tk),
        in_specs=[
            pl.BlockSpec((tm, tk), lambda i, k: (i, k)),   # A_plus tile (bf16)
            pl.BlockSpec((tk, h), lambda i, k: (k, 0)),    # g rows (bf16)
            pl.BlockSpec((tm, 1), lambda i, k: (i, 0)),    # epilogue scale
        ],
        out_specs=pl.BlockSpec((tm, h), lambda i, k: (i, 0)),
        scratch_shapes=[pltpu.VMEM((tm, h), jnp.float32)],
        compiler_params=pltpu.CompilerParams(
            dimension_semantics=("parallel", "arbitrary"),
            vmem_limit_bytes=vmem_limit),
    )(aplus, g, scale)


def gcn_fused_pallas(aplus, x, w, b, norm, norm2, num_layers, *,
                     vmem_limit=48 * 1024 * 1024):
    n_pad = aplus.shape[0]
    c_in = x.shape[1]
    h = w.shape[1]
    kernel = functools.partial(_fused_gcn_kernel, num_layers=num_layers)
    return pl.pallas_call(
        kernel,
        out_shape=jax.ShapeDtypeStruct((n_pad, h), jnp.float32),
        grid=(1,),
        in_specs=[
            pl.BlockSpec((n_pad, n_pad), lambda i: (0, 0)),
            pl.BlockSpec((n_pad, c_in), lambda i: (0, 0)),
            pl.BlockSpec((c_in, h), lambda i: (0, 0)),
            pl.BlockSpec((1, h), lambda i: (0, 0)),
            pl.BlockSpec((n_pad, 1), lambda i: (0, 0)),
            pl.BlockSpec((n_pad, 1), lambda i: (0, 0)),
        ],
        out_specs=pl.BlockSpec((n_pad, h), lambda i: (0, 0)),
        scratch_shapes=[pltpu.VMEM((n_pad, h), jnp.float32)],
        compiler_params=pltpu.CompilerParams(
            dimension_semantics=("arbitrary",), vmem_limit_bytes=vmem_limit),
    )(aplus, x, w, b, norm, norm2)


def gcn_forward(x, adj_t, params, *, force_tiled=False, tile_m=512, tile_k=1024,
                prep_tile=512):
    """GCN.forward for gcn_name='puregcn', jk=False, dropouts=0 (eval mode)."""
    n, c_in = x.shape
    h = params["w"].shape[1]
    num_layers = int(params["num_layers"])
    assert num_layers >= 1

    n_pad = max(_round_up(n, 256), 256)
    vmem_cap = _vmem_capacity_bytes()
    vmem_limit = min(int(0.9 * vmem_cap), 128 * 1024 * 1024)

    # One-time prep: A_plus (bf16, exact 0/1/2), norm, norm^2.  adj is NOT
    # host-padded; ragged edges handled in-kernel.
    aplus, norm, norm2 = gcn_prep_pallas(adj_t, n_pad, tile=prep_tile,
                                         vmem_limit=vmem_limit)

    # Only the small feature matrix is zero-padded.
    x_p = x if n_pad == n else jnp.pad(x, ((0, n_pad - n), (0, 0)))

    use_fused = (not force_tiled) and (
        _fused_vmem_need(n_pad, c_in, h) <= int(0.6 * vmem_cap))

    if use_fused:
        out = gcn_fused_pallas(aplus, x_p, params["w"], params["b"], norm,
                               norm2, num_layers, vmem_limit=vmem_limit)
    else:
        tm = _pick_tile(n_pad, tile_m)   # keep >= 2 row tiles for v7x megacore
        tk = _pick_tile(n_pad, tile_k)
        # TODO(synk): for mid-size N, keep g fully VMEM-resident across a layer
        # (constant index map + in-kernel pl.ds) to avoid the per-row-tile
        # re-stream of g; omitted here, the fused path covers small/medium N.
        g = linear_prescale_pallas(x_p, params["w"], params["b"], norm,
                                   block_m=tm, vmem_limit=vmem_limit)
        for l in range(num_layers):
            last = l == num_layers - 1
            g = gcn_layer_pallas(
                aplus, g, norm if last else norm2, tm=tm, tk=tk,
                out_dtype=jnp.float32 if last else jnp.bfloat16,
                vmem_limit=vmem_limit)
        out = g

    return out[:n]


def init_params(key, in_channels, hidden_channels, num_layers):
    kw, kb = jax.random.split(key)
    bound = 1.0 / jnp.sqrt(in_channels)
    w = jax.random.uniform(kw, (in_channels, hidden_channels),
                           jnp.float32, -bound, bound)
    b = jax.random.uniform(kb, (1, hidden_channels),
                           jnp.float32, -bound, bound)
    return {"w": w, "b": b, "num_layers": num_layers}


# -------------------------------- reference --------------------------------- #

def gcn_forward_ref(x, adj_t, params):
    hp = jax.lax.Precision.HIGHEST
    x = jnp.dot(x, params["w"], precision=hp) + params["b"]
    norm = jax.lax.rsqrt(1.0 + jnp.sum(adj_t, axis=-1, keepdims=True))
    for _ in range(params["num_layers"]):
        xn = norm * x
        x = norm * (jnp.dot(adj_t, xn, precision=hp) + xn)
    return x


if __name__ == "__main__":
    # hidden=128 keeps the feature/lane axis dense.
    N, in_channels, hidden_channels = 512, 32, 128
    out_channels = hidden_channels        # PureConv requires indim == outdim
    num_layers = 3

    key = jax.random.PRNGKey(0)
    kx, kadj, kp = jax.random.split(key, 3)

    x = jax.random.normal(kx, (N, in_channels), jnp.float32)
    adj_t = jax.random.bernoulli(kadj, 0.05, (N, N)).astype(jnp.float32)

    params = init_params(kp, in_channels, hidden_channels, num_layers)
    ref = gcn_forward_ref(x, adj_t, params)

    # Fused single-kernel path (auto-selected at this size).
    out_fused = jax.block_until_ready(gcn_forward(x, adj_t, params))
    # Tiled per-layer path (forced, small tiles so the grid is non-trivial).
    out_tiled = jax.block_until_ready(
        gcn_forward(x, adj_t, params, force_tiled=True, tile_m=256, tile_k=256))

    # Tolerance deliberately loosened vs the f32 reference: MXU inputs are bf16
    # (A_plus values 0/1/2 are exact; only the feature stream is rounded),
    # accumulation stays f32.
    for name, out in (("fused", out_fused), ("tiled", out_tiled)):
        assert out.shape == (N, out_channels)
        max_err = float(jnp.max(jnp.abs(out - ref)))
        assert jnp.allclose(out, ref, atol=5e-3, rtol=5e-2), \
            f"{name} path max abs err {max_err}"

    print("KERNEL_OK")
</pallas_src>

<mosaic_0001>
module attributes {stable_mosaic.version = 11 : i64} {
  func.func @_prep_kernel(%arg0: i32, %arg1: i32, %arg2: memref<512x512xf32, #tpu.memory_space<vmem>>, %arg3: memref<512x512xbf16, #tpu.memory_space<vmem>>, %arg4: memref<512x1xf32, #tpu.memory_space<vmem>>, %arg5: memref<512x1xf32, #tpu.memory_space<vmem>>, %arg6: memref<512x1xf32, #tpu.memory_space<vmem>>) attributes {dimension_semantics = [#tpu.dimension_semantics<parallel>, #tpu.dimension_semantics<arbitrary>], iteration_bounds = array<i64: 1, 1>, scalar_prefetch = 0 : i64, scratch_operands = 1 : i64, tpu.core_type = #tpu.core_type<tc>, window_params = [{transform_indices = @transform_0, window_bounds = array<i64: 512, 512>}, {transform_indices = @transform_1, window_bounds = array<i64: 512, 512>}, {transform_indices = @transform_2, window_bounds = array<i64: 512, 1>}, {transform_indices = @transform_3, window_bounds = array<i64: 512, 1>}]} {
    %c0 = arith.constant 0 : index
    %c0_0 = arith.constant 0 : index
    %0 = vector.load %arg2[%c0, %c0_0] : memref<512x512xf32, #tpu.memory_space<vmem>>, vector<512x512xf32>
    %1 = arith.cmpi eq, %arg0, %arg1 : i32
    %2 = arith.extui %1 : i1 to i32
    %c0_i32 = arith.constant 0 : i32
    %3 = arith.cmpi ne, %2, %c0_i32 : i32
    scf.if %3 {
      %18 = tpu.iota {dimensions = array<i32: 0>} : vector<512x512xi32>
      %19 = tpu.iota {dimensions = array<i32: 1>} : vector<512x512xi32>
      %20 = arith.cmpi eq, %18, %19 : vector<512x512xi32>
      %21 = arith.extui %20 : vector<512x512xi1> to vector<512x512xi32>
      %22 = arith.sitofp %21 : vector<512x512xi32> to vector<512x512xf32>
      %23 = arith.addf %0, %22 : vector<512x512xf32>
      %24 = arith.truncf %23 : vector<512x512xf32> to vector<512x512xbf16>
      %c0_10 = arith.constant 0 : index
      %c0_11 = arith.constant 0 : index
      %25 = vector.load %arg3[%c0_10, %c0_11] : memref<512x512xbf16, #tpu.memory_space<vmem>>, vector<512x512xbf16>
      tpu.vector_store %arg3[%c0_10, %c0_11], %24 {strides = array<i32>} : memref<512x512xbf16, #tpu.memory_space<vmem>>, vector<512x512xbf16>,
    } else {
    }
    %4 = arith.cmpi ne, %arg0, %arg1 : i32
    %5 = arith.extui %4 : i1 to i32
    %c0_i32_1 = arith.constant 0 : i32
    %6 = arith.cmpi ne, %5, %c0_i32_1 : i32
    scf.if %6 {
      %18 = arith.truncf %0 : vector<512x512xf32> to vector<512x512xbf16>
      %c0_10 = arith.constant 0 : index
      %c0_11 = arith.constant 0 : index
      %19 = vector.load %arg3[%c0_10, %c0_11] : memref<512x512xbf16, #tpu.memory_space<vmem>>, vector<512x512xbf16>
      tpu.vector_store %arg3[%c0_10, %c0_11], %18 {strides = array<i32>} : memref<512x512xbf16, #tpu.memory_space<vmem>>, vector<512x512xbf16>,
    } else {
    }
    %c0_i32_2 = arith.constant 0 : i32
    %7 = arith.cmpi eq, %arg1, %c0_i32_2 : i32
    %8 = arith.extui %7 : i1 to i32
    %c0_i32_3 = arith.constant 0 : i32
    %9 = arith.cmpi ne, %8, %c0_i32_3 : i32
    scf.if %9 {
      %cst_10 = arith.constant 0.000000e+00 : f32
      %18 = vector.broadcast %cst_10 : f32 to vector<512x1xf32>
      %c0_11 = arith.constant 0 : index
      %c0_12 = arith.constant 0 : index
      %19 = vector.load %arg6[%c0_11, %c0_12] : memref<512x1xf32, #tpu.memory_space<vmem>>, vector<512x1xf32>
      tpu.vector_store %arg6[%c0_11, %c0_12], %18 {strides = array<i32>} : memref<512x1xf32, #tpu.memory_space<vmem>>, vector<512x1xf32>,
    } else {
    }
    %c0_4 = arith.constant 0 : index
    %c0_5 = arith.constant 0 : index
    %10 = vector.load %arg6[%c0_4, %c0_5] : memref<512x1xf32, #tpu.memory_space<vmem>>, vector<512x1xf32>
    %cst = arith.constant dense<0.000000e+00> : vector<512xf32>
    %11 = vector.multi_reduction <add>, %0, %cst [1] : vector<512x512xf32> to vector<512xf32>
    %12 = vector.shape_cast %11 : vector<512xf32> to vector<512x1xf32>
    %13 = arith.addf %10, %12 : vector<512x1xf32>
    %c0_6 = arith.constant 0 : index
    %c0_7 = arith.constant 0 : index
    %14 = vector.load %arg6[%c0_6, %c0_7] : memref<512x1xf32, #tpu.memory_space<vmem>>, vector<512x1xf32>
    tpu.vector_store %arg6[%c0_6, %c0_7], %13 {strides = array<i32>} : memref<512x1xf32, #tpu.memory_space<vmem>>, vector<512x1xf32>,
    %c0_i32_8 = arith.constant 0 : i32
    %15 = arith.cmpi eq, %arg1, %c0_i32_8 : i32
    %16 = arith.extui %15 : i1 to i32
    %c0_i32_9 = arith.constant 0 : i32
    %17 = arith.cmpi ne, %16, %c0_i32_9 : i32
    scf.if %17 {
      %c0_10 = arith.constant 0 : index
      %c0_11 = arith.constant 0 : index
      %18 = vector.load %arg6[%c0_10, %c0_11] : memref<512x1xf32, #tpu.memory_space<vmem>>, vector<512x1xf32>
      %cst_12 = arith.constant 1.000000e+00 : f32
      %19 = vector.broadcast %cst_12 : f32 to vector<512x1xf32>
      %20 = arith.addf %19, %18 : vector<512x1xf32>
      %21 = math.rsqrt %20 : vector<512x1xf32>
      %c0_13 = arith.constant 0 : index
      %c0_14 = arith.constant 0 : index
      %22 = vector.load %arg4[%c0_13, %c0_14] : memref<512x1xf32, #tpu.memory_space<vmem>>, vector<512x1xf32>
      tpu.vector_store %arg4[%c0_13, %c0_14], %21 {strides = array<i32>} : memref<512x1xf32, #tpu.memory_space<vmem>>, vector<512x1xf32>,
      %23 = arith.mulf %21, %21 : vector<512x1xf32>
      %c0_15 = arith.constant 0 : index
      %c0_16 = arith.constant 0 : index
      %24 = vector.load %arg5[%c0_15, %c0_16] : memref<512x1xf32, #tpu.memory_space<vmem>>, vector<512x1xf32>
      tpu.vector_store %arg5[%c0_15, %c0_16], %23 {strides = array<i32>} : memref<512x1xf32, #tpu.memory_space<vmem>>, vector<512x1xf32>,
    } else {
    }
    return
  }
  func.func @transform_0(%arg0: i32, %arg1: i32) -> (i32, i32) {
    %c0_i32 = arith.constant 0 : i32
    return %arg0, %arg1 : i32, i32
  }
  func.func @transform_1(%arg0: i32, %arg1: i32) -> (i32, i32) {
    %c0_i32 = arith.constant 0 : i32
    return %arg0, %arg1 : i32, i32
  }
  func.func @transform_2(%arg0: i32, %arg1: i32) -> (i32, i32) {
    %c0_i32 = arith.constant 0 : i32
    %c0_i32_0 = arith.constant 0 : i32
    return %arg0, %c0_i32 : i32, i32
  }
  func.func @transform_3(%arg0: i32, %arg1: i32) -> (i32, i32) {
    %c0_i32 = arith.constant 0 : i32
    %c0_i32_0 = arith.constant 0 : i32
    return %arg0, %c0_i32 : i32, i32
  }
}

</mosaic_0001>

<llo_original>
// kernel: tpu_custom_call.1
$region0: #{tpu_custom_call.1}
  #allocation0 [shape = 'u32[]', space=smem, size = 0x4, offset = 0x4, fixed_abs, tag = 'smem constant byte address 0x4 - core index']
  #allocation1 [shape = 'u32[144,128]{1,0:T(1,128)}', space=vmem, size = 0x12000, scoped, tag = 'internal scratch']
  #allocation2 [shape = 'f32[512,1]{1,0:T(8,128)}', space=vmem, size = 0x40000, scoped, tag = 'scratch operand']
  %s0 = inlined_call_operand.hbm [shape: f32[512,512], index: 0, kind: input, shape index: {}]
  %s1 = inlined_call_operand.hbm [shape: bf16[512,512], index: 1, kind: output, shape index: {0}]
  %s2 = inlined_call_operand.vmem [shape: f32[512,1], index: 2, kind: output, shape index: {1}]
  %s3 = inlined_call_operand.vmem [shape: f32[512,1], index: 3, kind: output, shape index: {2}]
  %4 = xla_tuple %s1, %s2, %s3
  %s5 = sld [smem:[#allocation0]]
  $region50: #{tpu_custom_call.1} parent=0
    _
  %s7 = ssub.s32 1, %s5
  %s8 = scalar_select 0, %s7, %s5
  $region1: #{tpu_custom_call.1} parent=0
    #allocation3 [shape = 'u8[1048576]{0}', space=vmem, size = 0x100000, scoped, tag = 'input window, operand 0, single buffered']
    #allocation4 [shape = 's32[1]{0}', space=sflag, size = 0x4, scoped, tag = 'scoped memory for tpu_custom_call.1']
    #allocation5 [shape = 's32[1]{0}', space=sflag, size = 0x4, scoped, tag = 'scoped memory for tpu_custom_call.1']
    #allocation6 [shape = 'u8[524288]{0}', space=vmem, size = 0x80000, scoped, tag = 'output window, operand 0, single buffered']
    %9 = vsyncpa [#allocation4], 0
    %10 = vsyncpa [#allocation5], 0
    // Predicated region
    $region2: #{tpu_custom_call.1} parent=1 // pred_check
      _
    $region3: #{tpu_custom_call.1} parent=1 // pred_check_branch
      %12 = sbr.rel (0) target = $region5
    $region4: #{tpu_custom_call.1} parent=1 // pred_region
      %s14 = ssub.s32 32768, 32768
      %15 = vsyncadd [#allocation4], %s14
      %s16 = sshll.u32 [#allocation3], 4
      %s17 = int_to_ptr.vmem [resolvable:$true] %s16
      %22 = dma.hbm_to_vmem [thread:$0]  %s0, 32768, %s17, [#allocation4], 512, 512, 32
    $region5: #{tpu_custom_call.1} parent=1 // pred_fallthru
      _
    // Predicated region
    $region6: #{tpu_custom_call.1} parent=1 // pred_check
      _
    $region7: #{tpu_custom_call.1} parent=1 // pred_check_branch
      %24 = sbr.rel (0) target = $region9
    $region8: #{tpu_custom_call.1} parent=1 // pred_region
      %25 = dma.done [#allocation4], 32768
    $region9: #{tpu_custom_call.1} parent=1 // pred_fallthru
      _
    %v26 = vld [vmem:[#allocation3] sm:$0xff]
    %v27 = vld [vmem:[#allocation3 + $0x8] sm:$0xff]
    %v28 = vld [vmem:[#allocation3 + $0x10] sm:$0xff]
    %v29 = vld [vmem:[#allocation3 + $0x18] sm:$0xff]
    %v30 = vld [vmem:[#allocation3 + $0x20] sm:$0xff]
    %v31 = vld [vmem:[#allocation3 + $0x28] sm:$0xff]
    %v32 = vld [vmem:[#allocation3 + $0x30] sm:$0xff]
    %v33 = vld [vmem:[#allocation3 + $0x38] sm:$0xff]
    %v34 = vld [vmem:[#allocation3 + $0x40] sm:$0xff]
    %v35 = vld [vmem:[#allocation3 + $0x48] sm:$0xff]
    %v36 = vld [vmem:[#allocation3 + $0x50] sm:$0xff]
    %v37 = vld [vmem:[#allocation3 + $0x58] sm:$0xff]
    %v38 = vld [vmem:[#allocation3 + $0x60] sm:$0xff]
    %v39 = vld [vmem:[#allocation3 + $0x68] sm:$0xff]
    %v40 = vld [vmem:[#allocation3 + $0x70] sm:$0xff]
    %v41 = vld [vmem:[#allocation3 + $0x78] sm:$0xff]
    %v42 = vld [vmem:[#allocation3 + $0x80] sm:$0xff]
    %v43 = vld [vmem:[#allocation3 + $0x88] sm:$0xff]
    %v44 = vld [vmem:[#allocation3 + $0x90] sm:$0xff]
    %v45 = vld [vmem:[#allocation3 + $0x98] sm:$0xff]
    %v46 = vld [vmem:[#allocation3 + $0xa0] sm:$0xff]
    %v47 = vld [vmem:[#allocation3 + $0xa8] sm:$0xff]
    %v48 = vld [vmem:[#allocation3 + $0xb0] sm:$0xff]
    %v49 = vld [vmem:[#allocation3 + $0xb8] sm:$0xff]
    %v50 = vld [vmem:[#allocation3 + $0xc0] sm:$0xff]
    %v51 = vld [vmem:[#allocation3 + $0xc8] sm:$0xff]
    %v52 = vld [vmem:[#allocation3 + $0xd0] sm:$0xff]
    %v53 = vld [vmem:[#allocation3 + $0xd8] sm:$0xff]
    %v54 = vld [vmem:[#allocation3 + $0xe0] sm:$0xff]
    %v55 = vld [vmem:[#allocation3 + $0xe8] sm:$0xff]
    %v56 = vld [vmem:[#allocation3 + $0xf0] sm:$0xff]
    %v57 = vld [vmem:[#allocation3 + $0xf8] sm:$0xff]
    %v58 = vld [vmem:[#allocation3 + $0x100] sm:$0xff]
    %v59 = vld [vmem:[#allocation3 + $0x108] sm:$0xff]
    %v60 = vld [vmem:[#allocation3 + $0x110] sm:$0xff]
    %v61 = vld [vmem:[#allocation3 + $0x118] sm:$0xff]
    %v62 = vld [vmem:[#allocation3 + $0x120] sm:$0xff]
    %v63 = vld [vmem:[#allocation3 + $0x128] sm:$0xff]
    %v64 = vld [vmem:[#allocation3 + $0x130] sm:$0xff]
    %v65 = vld [vmem:[#allocation3 + $0x138] sm:$0xff]
    %v66 = vld [vmem:[#allocation3 + $0x140] sm:$0xff]
    %v67 = vld [vmem:[#allocation3 + $0x148] sm:$0xff]
    %v68 = vld [vmem:[#allocation3 + $0x150] sm:$0xff]
    %v69 = vld [vmem:[#allocation3 + $0x158] sm:$0xff]
    %v70 = vld [vmem:[#allocation3 + $0x160] sm:$0xff]
    %v71 = vld [vmem:[#allocation3 + $0x168] sm:$0xff]
    %v72 = vld [vmem:[#allocation3 + $0x170] sm:$0xff]
    %v73 = vld [vmem:[#allocation3 + $0x178] sm:$0xff]
    %v74 = vld [vmem:[#allocation3 + $0x180] sm:$0xff]
    %v75 = vld [vmem:[#allocation3 + $0x188] sm:$0xff]
    %v76 = vld [vmem:[#allocation3 + $0x190] sm:$0xff]
    %v77 = vld [vmem:[#allocation3 + $0x198] sm:$0xff]
    %v78 = vld [vmem:[#allocation3 + $0x1a0] sm:$0xff]
    %v79 = vld [vmem:[#allocation3 + $0x1a8] sm:$0xff]
    %v80 = vld [vmem:[#allocation3 + $0x1b0] sm:$0xff]
    %v81 = vld [vmem:[#allocation3 + $0x1b8] sm:$0xff]
    %v82 = vld [vmem:[#allocation3 + $0x1c0] sm:$0xff]
    %v83 = vld [vmem:[#allocation3 + $0x1c8] sm:$0xff]
    %v84 = vld [vmem:[#allocation3 + $0x1d0] sm:$0xff]
    %v85 = vld [vmem:[#allocation3 + $0x1d8] sm:$0xff]
    %v86 = vld [vmem:[#allocation3 + $0x1e0] sm:$0xff]
    %v87 = vld [vmem:[#allocation3 + $0x1e8] sm:$0xff]
    %v88 = vld [vmem:[#allocation3 + $0x1f0] sm:$0xff]
    %v89 = vld [vmem:[#allocation3 + $0x1f8] sm:$0xff]
    %v90 = vld [vmem:[#allocation3 + $0x200] sm:$0xff]
    %v91 = vld [vmem:[#allocation3 + $0x208] sm:$0xff]
    %v92 = vld [vmem:[#allocation3 + $0x210] sm:$0xff]
    %v93 = vld [vmem:[#allocation3 + $0x218] sm:$0xff]
    %v94 = vld [vmem:[#allocation3 + $0x220] sm:$0xff]
    %v95 = vld [vmem:[#allocation3 + $0x228] sm:$0xff]
    %v96 = vld [vmem:[#allocation3 + $0x230] sm:$0xff]
    %v97 = vld [vmem:[#allocation3 + $0x238] sm:$0xff]
    %v98 = vld [vmem:[#allocation3 + $0x240] sm:$0xff]
    %v99 = vld [vmem:[#allocation3 + $0x248] sm:$0xff]
    %v100 = vld [vmem:[#allocation3 + $0x250] sm:$0xff]
    %v101 = vld [vmem:[#allocation3 + $0x258] sm:$0xff]
    %v102 = vld [vmem:[#allocation3 + $0x260] sm:$0xff]
    %v103 = vld [vmem:[#allocation3 + $0x268] sm:$0xff]
    %v104 = vld [vmem:[#allocation3 + $0x270] sm:$0xff]
    %v105 = vld [vmem:[#allocation3 + $0x278] sm:$0xff]
    %v106 = vld [vmem:[#allocation3 + $0x280] sm:$0xff]
    %v107 = vld [vmem:[#allocation3 + $0x288] sm:$0xff]
    %v108 = vld [vmem:[#allocation3 + $0x290] sm:$0xff]
    %v109 = vld [vmem:[#allocation3 + $0x298] sm:$0xff]
    %v110 = vld [vmem:[#allocation3 + $0x2a0] sm:$0xff]
    %v111 = vld [vmem:[#allocation3 + $0x2a8] sm:$0xff]
    %v112 = vld [vmem:[#allocation3 + $0x2b0] sm:$0xff]
    %v113 = vld [vmem:[#allocation3 + $0x2b8] sm:$0xff]
    %v114 = vld [vmem:[#allocation3 + $0x2c0] sm:$0xff]
    %v115 = vld [vmem:[#allocation3 + $0x2c8] sm:$0xff]
    %v116 = vld [vmem:[#allocation3 + $0x2d0] sm:$0xff]
    %v117 = vld [vmem:[#allocation3 + $0x2d8] sm:$0xff]
    %v118 = vld [vmem:[#allocation3 + $0x2e0] sm:$0xff]
    %v119 = vld [vmem:[#allocation3 + $0x2e8] sm:$0xff]
    %v120 = vld [vmem:[#allocation3 + $0x2f0] sm:$0xff]
    %v121 = vld [vmem:[#allocation3 + $0x2f8] sm:$0xff]
    %v122 = vld [vmem:[#allocation3 + $0x300] sm:$0xff]
    %v123 = vld [vmem:[#allocation3 + $0x308] sm:$0xff]
    %v124 = vld [vmem:[#allocation3 + $0x310] sm:$0xff]
    %v125 = vld [vmem:[#allocation3 + $0x318] sm:$0xff]
    %v126 = vld [vmem:[#allocation3 + $0x320] sm:$0xff]
    %v127 = vld [vmem:[#allocation3 + $0x328] sm:$0xff]
    %v128 = vld [vmem:[#allocation3 + $0x330] sm:$0xff]
    %v129 = vld [vmem:[#allocation3 + $0x338] sm:$0xff]
    %v130 = vld [vmem:[#allocation3 + $0x340] sm:$0xff]
    %v131 = vld [vmem:[#allocation3 + $0x348] sm:$0xff]
    %v132 = vld [vmem:[#allocation3 + $0x350] sm:$0xff]
    %v133 = vld [vmem:[#allocation3 + $0x358] sm:$0xff]
    %v134 = vld [vmem:[#allocation3 + $0x360] sm:$0xff]
    %v135 = vld [vmem:[#allocation3 + $0x368] sm:$0xff]
    %v136 = vld [vmem:[#allocation3 + $0x370] sm:$0xff]
    %v137 = vld [vmem:[#allocation3 + $0x378] sm:$0xff]
    %v138 = vld [vmem:[#allocation3 + $0x380] sm:$0xff]
    %v139 = vld [vmem:[#allocation3 + $0x388] sm:$0xff]
    %v140 = vld [vmem:[#allocation3 + $0x390] sm:$0xff]
    %v141 = vld [vmem:[#allocation3 + $0x398] sm:$0xff]
    %v142 = vld [vmem:[#allocation3 + $0x3a0] sm:$0xff]
    %v143 = vld [vmem:[#allocation3 + $0x3a8] sm:$0xff]
    %v144 = vld [vmem:[#allocation3 + $0x3b0] sm:$0xff]
    %v145 = vld [vmem:[#allocation3 + $0x3b8] sm:$0xff]
    %v146 = vld [vmem:[#allocation3 + $0x3c0] sm:$0xff]
    %v147 = vld [vmem:[#allocation3 + $0x3c8] sm:$0xff]
    %v148 = vld [vmem:[#allocation3 + $0x3d0] sm:$0xff]
    %v149 = vld [vmem:[#allocation3 + $0x3d8] sm:$0xff]
    %v150 = vld [vmem:[#allocation3 + $0x3e0] sm:$0xff]
    %v151 = vld [vmem:[#allocation3 + $0x3e8] sm:$0xff]
    %v152 = vld [vmem:[#allocation3 + $0x3f0] sm:$0xff]
    %v153 = vld [vmem:[#allocation3 + $0x3f8] sm:$0xff]
    %v154 = vld [vmem:[#allocation3 + $0x400] sm:$0xff]
    %v155 = vld [vmem:[#allocation3 + $0x408] sm:$0xff]
    %v156 = vld [vmem:[#allocation3 + $0x410] sm:$0xff]
    %v157 = vld [vmem:[#allocation3 + $0x418] sm:$0xff]
    %v158 = vld [vmem:[#allocation3 + $0x420] sm:$0xff]
    %v159 = vld [vmem:[#allocation3 + $0x428] sm:$0xff]
    %v160 = vld [vmem:[#allocation3 + $0x430] sm:$0xff]
    %v161 = vld [vmem:[#allocation3 + $0x438] sm:$0xff]
    %v162 = vld [vmem:[#allocation3 + $0x440] sm:$0xff]
    %v163 = vld [vmem:[#allocation3 + $0x448] sm:$0xff]
    %v164 = vld [vmem:[#allocation3 + $0x450] sm:$0xff]
    %v165 = vld [vmem:[#allocation3 + $0x458] sm:$0xff]
    %v166 = vld [vmem:[#allocation3 + $0x460] sm:$0xff]
    %v167 = vld [vmem:[#allocation3 + $0x468] sm:$0xff]
    %v168 = vld [vmem:[#allocation3 + $0x470] sm:$0xff]
    %v169 = vld [vmem:[#allocation3 + $0x478] sm:$0xff]
    %v170 = vld [vmem:[#allocation3 + $0x480] sm:$0xff]
    %v171 = vld [vmem:[#allocation3 + $0x488] sm:$0xff]
    %v172 = vld [vmem:[#allocation3 + $0x490] sm:$0xff]
    %v173 = vld [vmem:[#allocation3 + $0x498] sm:$0xff]
    %v174 = vld [vmem:[#allocation3 + $0x4a0] sm:$0xff]
    %v175 = vld [vmem:[#allocation3 + $0x4a8] sm:$0xff]
    %v176 = vld [vmem:[#allocation3 + $0x4b0] sm:$0xff]
    %v177 = vld [vmem:[#allocation3 + $0x4b8] sm:$0xff]
    %v178 = vld [vmem:[#allocation3 + $0x4c0] sm:$0xff]
    %v179 = vld [vmem:[#allocation3 + $0x4c8] sm:$0xff]
    %v180 = vld [vmem:[#allocation3 + $0x4d0] sm:$0xff]
    %v181 = vld [vmem:[#allocation3 + $0x4d8] sm:$0xff]
    %v182 = vld [vmem:[#allocation3 + $0x4e0] sm:$0xff]
    %v183 = vld [vmem:[#allocation3 + $0x4e8] sm:$0xff]
    %v184 = vld [vmem:[#allocation3 + $0x4f0] sm:$0xff]
    %v185 = vld [vmem:[#allocation3 + $0x4f8] sm:$0xff]
    %v186 = vld [vmem:[#allocation3 + $0x500] sm:$0xff]
    %v187 = vld [vmem:[#allocation3 + $0x508] sm:$0xff]
    %v188 = vld [vmem:[#allocation3 + $0x510] sm:$0xff]
    %v189 = vld [vmem:[#allocation3 + $0x518] sm:$0xff]
    %v190 = vld [vmem:[#allocation3 + $0x520] sm:$0xff]
    %v191 = vld [vmem:[#allocation3 + $0x528] sm:$0xff]
    %v192 = vld [vmem:[#allocation3 + $0x530] sm:$0xff]
    %v193 = vld [vmem:[#allocation3 + $0x538] sm:$0xff]
    %v194 = vld [vmem:[#allocation3 + $0x540] sm:$0xff]
    %v195 = vld [vmem:[#allocation3 + $0x548] sm:$0xff]
    %v196 = vld [vmem:[#allocation3 + $0x550] sm:$0xff]
    %v197 = vld [vmem:[#allocation3 + $0x558] sm:$0xff]
    %v198 = vld [vmem:[#allocation3 + $0x560] sm:$0xff]
    %v199 = vld [vmem:[#allocation3 + $0x568] sm:$0xff]
    %v200 = vld [vmem:[#allocation3 + $0x570] sm:$0xff]
    %v201 = vld [vmem:[#allocation3 + $0x578] sm:$0xff]
    %v202 = vld [vmem:[#allocation3 + $0x580] sm:$0xff]
    %v203 = vld [vmem:[#allocation3 + $0x588] sm:$0xff]
    %v204 = vld [vmem:[#allocation3 + $0x590] sm:$0xff]
    %v205 = vld [vmem:[#allocation3 + $0x598] sm:$0xff]
    %v206 = vld [vmem:[#allocation3 + $0x5a0] sm:$0xff]
    %v207 = vld [vmem:[#allocation3 + $0x5a8] sm:$0xff]
    %v208 = vld [vmem:[#allocation3 + $0x5b0] sm:$0xff]
    %v209 = vld [vmem:[#allocation3 + $0x5b8] sm:$0xff]
    %v210 = vld [vmem:[#allocation3 + $0x5c0] sm:$0xff]
    %v211 = vld [vmem:[#allocation3 + $0x5c8] sm:$0xff]
    %v212 = vld [vmem:[#allocation3 + $0x5d0] sm:$0xff]
    %v213 = vld [vmem:[#allocation3 + $0x5d8] sm:$0xff]
    %v214 = vld [vmem:[#allocation3 + $0x5e0] sm:$0xff]
    %v215 = vld [vmem:[#allocation3 + $0x5e8] sm:$0xff]
    %v216 = vld [vmem:[#allocation3 + $0x5f0] sm:$0xff]
    %v217 = vld [vmem:[#allocation3 + $0x5f8] sm:$0xff]
    %v218 = vld [vmem:[#allocation3 + $0x600] sm:$0xff]
    %v219 = vld [vmem:[#allocation3 + $0x608] sm:$0xff]
    %v220 = vld [vmem:[#allocation3 + $0x610] sm:$0xff]
    %v221 = vld [vmem:[#allocation3 + $0x618] sm:$0xff]
    %v222 = vld [vmem:[#allocation3 + $0x620] sm:$0xff]
    %v223 = vld [vmem:[#allocation3 + $0x628] sm:$0xff]
    %v224 = vld [vmem:[#allocation3 + $0x630] sm:$0xff]
    %v225 = vld [vmem:[#allocation3 + $0x638] sm:$0xff]
    %v226 = vld [vmem:[#allocation3 + $0x640] sm:$0xff]
    %v227 = vld [vmem:[#allocation3 + $0x648] sm:$0xff]
    %v228 = vld [vmem:[#allocation3 + $0x650] sm:$0xff]
    %v229 = vld [vmem:[#allocation3 + $0x658] sm:$0xff]
    %v230 = vld [vmem:[#allocation3 + $0x660] sm:$0xff]
    %v231 = vld [vmem:[#allocation3 + $0x668] sm:$0xff]
    %v232 = vld [vmem:[#allocation3 + $0x670] sm:$0xff]
    %v233 = vld [vmem:[#allocation3 + $0x678] sm:$0xff]
    %v234 = vld [vmem:[#allocation3 + $0x680] sm:$0xff]
    %v235 = vld [vmem:[#allocation3 + $0x688] sm:$0xff]
    %v236 = vld [vmem:[#allocation3 + $0x690] sm:$0xff]
    %v237 = vld [vmem:[#allocation3 + $0x698] sm:$0xff]
    %v238 = vld [vmem:[#allocation3 + $0x6a0] sm:$0xff]
    %v239 = vld [vmem:[#allocation3 + $0x6a8] sm:$0xff]
    %v240 = vld [vmem:[#allocation3 + $0x6b0] sm:$0xff]
    %v241 = vld [vmem:[#allocation3 + $0x6b8] sm:$0xff]
    %v242 = vld [vmem:[#allocation3 + $0x6c0] sm:$0xff]
    %v243 = vld [vmem:[#allocation3 + $0x6c8] sm:$0xff]
    %v244 = vld [vmem:[#allocation3 + $0x6d0] sm:$0xff]
    %v245 = vld [vmem:[#allocation3 + $0x6d8] sm:$0xff]
    %v246 = vld [vmem:[#allocation3 + $0x6e0] sm:$0xff]
    %v247 = vld [vmem:[#allocation3 + $0x6e8] sm:$0xff]
    %v248 = vld [vmem:[#allocation3 + $0x6f0] sm:$0xff]
    %v249 = vld [vmem:[#allocation3 + $0x6f8] sm:$0xff]
    %v250 = vld [vmem:[#allocation3 + $0x700] sm:$0xff]
    %v251 = vld [vmem:[#allocation3 + $0x708] sm:$0xff]
    %v252 = vld [vmem:[#allocation3 + $0x710] sm:$0xff]
    %v253 = vld [vmem:[#allocation3 + $0x718] sm:$0xff]
    %v254 = vld [vmem:[#allocation3 + $0x720] sm:$0xff]
    %v255 = vld [vmem:[#allocation3 + $0x728] sm:$0xff]
    %v256 = vld [vmem:[#allocation3 + $0x730] sm:$0xff]
    %v257 = vld [vmem:[#allocation3 + $0x738] sm:$0xff]
    %v258 = vld [vmem:[#allocation3 + $0x740] sm:$0xff]
    %v259 = vld [vmem:[#allocation3 + $0x748] sm:$0xff]
    %v260 = vld [vmem:[#allocation3 + $0x750] sm:$0xff]
    %v261 = vld [vmem:[#allocation3 + $0x758] sm:$0xff]
    %v262 = vld [vmem:[#allocation3 + $0x760] sm:$0xff]
    %v263 = vld [vmem:[#allocation3 + $0x768] sm:$0xff]
    %v264 = vld [vmem:[#allocation3 + $0x770] sm:$0xff]
    %v265 = vld [vmem:[#allocation3 + $0x778] sm:$0xff]
    %v266 = vld [vmem:[#allocation3 + $0x780] sm:$0xff]
    %v267 = vld [vmem:[#allocation3 + $0x788] sm:$0xff]
    %v268 = vld [vmem:[#allocation3 + $0x790] sm:$0xff]
    %v269 = vld [vmem:[#allocation3 + $0x798] sm:$0xff]
    %v270 = vld [vmem:[#allocation3 + $0x7a0] sm:$0xff]
    %v271 = vld [vmem:[#allocation3 + $0x7a8] sm:$0xff]
    %v272 = vld [vmem:[#allocation3 + $0x7b0] sm:$0xff]
    %v273 = vld [vmem:[#allocation3 + $0x7b8] sm:$0xff]
    %v274 = vld [vmem:[#allocation3 + $0x7c0] sm:$0xff]
    %v275 = vld [vmem:[#allocation3 + $0x7c8] sm:$0xff]
    %v276 = vld [vmem:[#allocation3 + $0x7d0] sm:$0xff]
    %v277 = vld [vmem:[#allocation3 + $0x7d8] sm:$0xff]
    %v278 = vld [vmem:[#allocation3 + $0x7e0] sm:$0xff]
    %v279 = vld [vmem:[#allocation3 + $0x7e8] sm:$0xff]
    %v280 = vld [vmem:[#allocation3 + $0x7f0] sm:$0xff]
    %v281 = vld [vmem:[#allocation3 + $0x7f8] sm:$0xff]
    %p282 = scmp.eq.s32.totalorder 0, 0
    // Predicated region
    $region10: #{tpu_custom_call.1} parent=1 // pred_check
      %p283 = pneg %p282
    $region11: #{tpu_custom_call.1} parent=1 // pred_check_branch
      %285 = sbr.rel (%p283) target = $region13
    $region12: #{tpu_custom_call.1} parent=1 // pred_region
      %v286 = vlaneseq
      %v287 = vshrl.u32 %v286, 7
      %v288 = vadd.s32 %v287, 8
      %v289 = vadd.s32 %v287, 16
      %v290 = vadd.s32 %v287, 24
      %v291 = vadd.s32 %v287, 32
      %v292 = vadd.s32 %v287, 40
      %v293 = vadd.s32 %v287, 48
      %v294 = vadd.s32 %v287, 56
      %v295 = vadd.s32 %v287, 64
      %v296 = vadd.s32 %v287, 72
      %v297 = vadd.s32 %v287, 80
      %v298 = vadd.s32 %v287, 88
      %v299 = vadd.s32 %v287, 96
      %v300 = vadd.s32 %v287, 104
      %v301 = vadd.s32 %v287, 112
      %v302 = vadd.s32 %v287, 120
      %v303 = vadd.s32 %v287, 128
      %v304 = vadd.s32 %v287, 136
      %v305 = vadd.s32 %v287, 144
      %v306 = vadd.s32 %v287, 152
      %v307 = vadd.s32 %v287, 160
      %v308 = vadd.s32 %v287, 168
      %v309 = vadd.s32 %v287, 176
      %v310 = vadd.s32 %v287, 184
      %v311 = vadd.s32 %v287, 192
      %v312 = vadd.s32 %v287, 200
      %v313 = vadd.s32 %v287, 208
      %v314 = vadd.s32 %v287, 216
      %v315 = vadd.s32 %v287, 224
      %v316 = vadd.s32 %v287, 232
      %v317 = vadd.s32 %v287, 240
      %v318 = vadd.s32 %v287, 248
      %v319 = vadd.s32 %v287, 256
      %v320 = vadd.s32 %v287, 264
      %v321 = vadd.s32 %v287, 272
      %v322 = vadd.s32 %v287, 280
      %v323 = vadd.s32 %v287, 288
      %v324 = vadd.s32 %v287, 296
      %v325 = vadd.s32 %v287, 304
      %v326 = vadd.s32 %v287, 312
      %v327 = vadd.s32 %v287, 320
      %v328 = vadd.s32 %v287, 328
      %v329 = vadd.s32 %v287, 336
      %v330 = vadd.s32 %v287, 344
      %v331 = vadd.s32 %v287, 352
      %v332 = vadd.s32 %v287, 360
      %v333 = vadd.s32 %v287, 368
      %v334 = vadd.s32 %v287, 376
      %v335 = vadd.s32 %v287, 384
      %v336 = vadd.s32 %v287, 392
      %v337 = vadd.s32 %v287, 400
      %v338 = vadd.s32 %v287, 408
      %v339 = vadd.s32 %v287, 416
      %v340 = vadd.s32 %v287, 424
      %v341 = vadd.s32 %v287, 432
      %v342 = vadd.s32 %v287, 440
      %v343 = vadd.s32 %v287, 448
      %v344 = vadd.s32 %v287, 456
      %v345 = vadd.s32 %v287, 464
      %v346 = vadd.s32 %v287, 472
      %v347 = vadd.s32 %v287, 480
      %v348 = vadd.s32 %v287, 488
      %v349 = vadd.s32 %v287, 496
      %v350 = vadd.s32 %v287, 504
      %v351 = vlaneseq
      %v352 = vand.u32 %v351, 127
      %v353 = vadd.s32 %v352, 128
      %v354 = vadd.s32 %v352, 256
      %v355 = vadd.s32 %v352, 384
      %vm356 = vcmp.eq.s32.totalorder %v287, %v352
      %vm357 = vcmp.eq.s32.totalorder %v287, %v353
      %vm358 = vcmp.eq.s32.totalorder %v287, %v354
      %vm359 = vcmp.eq.s32.totalorder %v287, %v355
      %vm360 = vcmp.eq.s32.totalorder %v288, %v352
      %vm361 = vcmp.eq.s32.totalorder %v288, %v353
      %vm362 = vcmp.eq.s32.totalorder %v288, %v354
      %vm363 = vcmp.eq.s32.totalorder %v288, %v355
      %vm364 = vcmp.eq.s32.totalorder %v289, %v352
      %vm365 = vcmp.eq.s32.totalorder %v289, %v353
      %vm366 = vcmp.eq.s32.totalorder %v289, %v354
      %vm367 = vcmp.eq.s32.totalorder %v289, %v355
      %vm368 = vcmp.eq.s32.totalorder %v290, %v352
      %vm369 = vcmp.eq.s32.totalorder %v290, %v353
      %vm370 = vcmp.eq.s32.totalorder %v290, %v354
      %vm371 = vcmp.eq.s32.totalorder %v290, %v355
      %vm372 = vcmp.eq.s32.totalorder %v291, %v352
      %vm373 = vcmp.eq.s32.totalorder %v291, %v353
      %vm374 = vcmp.eq.s32.totalorder %v291, %v354
      %vm375 = vcmp.eq.s32.totalorder %v291, %v355
      %vm376 = vcmp.eq.s32.totalorder %v292, %v352
      %vm377 = vcmp.eq.s32.totalorder %v292, %v353
      %vm378 = vcmp.eq.s32.totalorder %v292, %v354
      %vm379 = vcmp.eq.s32.totalorder %v292, %v355
      %vm380 = vcmp.eq.s32.totalorder %v293, %v352
      %vm381 = vcmp.eq.s32.totalorder %v293, %v353
      %vm382 = vcmp.eq.s32.totalorder %v293, %v354
      %vm383 = vcmp.eq.s32.totalorder %v293, %v355
      %vm384 = vcmp.eq.s32.totalorder %v294, %v352
      %vm385 = vcmp.eq.s32.totalorder %v294, %v353
      %vm386 = vcmp.eq.s32.totalorder %v294, %v354
      %vm387 = vcmp.eq.s32.totalorder %v294, %v355
      %vm388 = vcmp.eq.s32.totalorder %v295, %v352
      %vm389 = vcmp.eq.s32.totalorder %v295, %v353
      %vm390 = vcmp.eq.s32.totalorder %v295, %v354
      %vm391 = vcmp.eq.s32.totalorder %v295, %v355
      %vm392 = vcmp.eq.s32.totalorder %v296, %v352
      %vm393 = vcmp.eq.s32.totalorder %v296, %v353
      %vm394 = vcmp.eq.s32.totalorder %v296, %v354
      %vm395 = vcmp.eq.s32.totalorder %v296, %v355
      %vm396 = vcmp.eq.s32.totalorder %v297, %v352
      %vm397 = vcmp.eq.s32.totalorder %v297, %v353
      %vm398 = vcmp.eq.s32.totalorder %v297, %v354
      %vm399 = vcmp.eq.s32.totalorder %v297, %v355
      %vm400 = vcmp.eq.s32.totalorder %v298, %v352
      %vm401 = vcmp.eq.s32.totalorder %v298, %v353
      %vm402 = vcmp.eq.s32.totalorder %v298, %v354
      %vm403 = vcmp.eq.s32.totalorder %v298, %v355
      %vm404 = vcmp.eq.s32.totalorder %v299, %v352
      %vm405 = vcmp.eq.s32.totalorder %v299, %v353
      %vm406 = vcmp.eq.s32.totalorder %v299, %v354
      %vm407 = vcmp.eq.s32.totalorder %v299, %v355
      %vm408 = vcmp.eq.s32.totalorder %v300, %v352
      %vm409 = vcmp.eq.s32.totalorder %v300, %v353
      %vm410 = vcmp.eq.s32.totalorder %v300, %v354
      %vm411 = vcmp.eq.s32.totalorder %v300, %v355
      %vm412 = vcmp.eq.s32.totalorder %v301, %v352
      %vm413 = vcmp.eq.s32.totalorder %v301, %v353
      %vm414 = vcmp.eq.s32.totalorder %v301, %v354
      %vm415 = vcmp.eq.s32.totalorder %v301, %v355
      %vm416 = vcmp.eq.s32.totalorder %v302, %v352
      %vm417 = vcmp.eq.s32.totalorder %v302, %v353
      %vm418 = vcmp.eq.s32.totalorder %v302, %v354
      %vm419 = vcmp.eq.s32.totalorder %v302, %v355
      %vm420 = vcmp.eq.s32.totalorder %v303, %v352
      %vm421 = vcmp.eq.s32.totalorder %v303, %v353
      %vm422 = vcmp.eq.s32.totalorder %v303, %v354
      %vm423 = vcmp.eq.s32.totalorder %v303, %v355
      %vm424 = vcmp.eq.s32.totalorder %v304, %v352
      %vm425 = vcmp.eq.s32.totalorder %v304, %v353
      %vm426 = vcmp.eq.s32.totalorder %v304, %v354
      %vm427 = vcmp.eq.s32.totalorder %v304, %v355
      %vm428 = vcmp.eq.s32.totalorder %v305, %v352
      %vm429 = vcmp.eq.s32.totalorder %v305, %v353
      %vm430 = vcmp.eq.s32.totalorder %v305, %v354
      %vm431 = vcmp.eq.s32.totalorder %v305, %v355
      %vm432 = vcmp.eq.s32.totalorder %v306, %v352
      %vm433 = vcmp.eq.s32.totalorder %v306, %v353
      %vm434 = vcmp.eq.s32.totalorder %v306, %v354
      %vm435 = vcmp.eq.s32.totalorder %v306, %v355
      %vm436 = vcmp.eq.s32.totalorder %v307, %v352
      %vm437 = vcmp.eq.s32.totalorder %v307, %v353
      %vm438 = vcmp.eq.s32.totalorder %v307, %v354
      %vm439 = vcmp.eq.s32.totalorder %v307, %v355
      %vm440 = vcmp.eq.s32.totalorder %v308, %v352
      %vm441 = vcmp.eq.s32.totalorder %v308, %v353
      %vm442 = vcmp.eq.s32.totalorder %v308, %v354
      %vm443 = vcmp.eq.s32.totalorder %v308, %v355
      %vm444 = vcmp.eq.s32.totalorder %v309, %v352
      %vm445 = vcmp.eq.s32.totalorder %v309, %v353
      %vm446 = vcmp.eq.s32.totalorder %v309, %v354
      %vm447 = vcmp.eq.s32.totalorder %v309, %v355
      %vm448 = vcmp.eq.s32.totalorder %v310, %v352
      %vm449 = vcmp.eq.s32.totalorder %v310, %v353
      %vm450 = vcmp.eq.s32.totalorder %v310, %v354
      %vm451 = vcmp.eq.s32.totalorder %v310, %v355
      %vm452 = vcmp.eq.s32.totalorder %v311, %v352
      %vm453 = vcmp.eq.s32.totalorder %v311, %v353
      %vm454 = vcmp.eq.s32.totalorder %v311, %v354
      %vm455 = vcmp.eq.s32.totalorder %v311, %v355
      %vm456 = vcmp.eq.s32.totalorder %v312, %v352
      %vm457 = vcmp.eq.s32.totalorder %v312, %v353
      %vm458 = vcmp.eq.s32.totalorder %v312, %v354
      %vm459 = vcmp.eq.s32.totalorder %v312, %v355
      %vm460 = vcmp.eq.s32.totalorder %v313, %v352
      %vm461 = vcmp.eq.s32.totalorder %v313, %v353
      %vm462 = vcmp.eq.s32.totalorder %v313, %v354
      %vm463 = vcmp.eq.s32.totalorder %v313, %v355
      %vm464 = vcmp.eq.s32.totalorder %v314, %v352
      %vm465 = vcmp.eq.s32.totalorder %v314, %v353
      %vm466 = vcmp.eq.s32.totalorder %v314, %v354
      %vm467 = vcmp.eq.s32.totalorder %v314, %v355
      %vm468 = vcmp.eq.s32.totalorder %v315, %v352
      %vm469 = vcmp.eq.s32.totalorder %v315, %v353
      %vm470 = vcmp.eq.s32.totalorder %v315, %v354
      %vm471 = vcmp.eq.s32.totalorder %v315, %v355
      %vm472 = vcmp.eq.s32.totalorder %v316, %v352
      %vm473 = vcmp.eq.s32.totalorder %v316, %v353
      %vm474 = vcmp.eq.s32.totalorder %v316, %v354
      %vm475 = vcmp.eq.s32.totalorder %v316, %v355
      %vm476 = vcmp.eq.s32.totalorder %v317, %v352
      %vm477 = vcmp.eq.s32.totalorder %v317, %v353
      %vm478 = vcmp.eq.s32.totalorder %v317, %v354
      %vm479 = vcmp.eq.s32.totalorder %v317, %v355
      %vm480 = vcmp.eq.s32.totalorder %v318, %v352
      %vm481 = vcmp.eq.s32.totalorder %v318, %v353
      %vm482 = vcmp.eq.s32.totalorder %v318, %v354
      %vm483 = vcmp.eq.s32.totalorder %v318, %v355
      %vm484 = vcmp.eq.s32.totalorder %v319, %v352
      %vm485 = vcmp.eq.s32.totalorder %v319, %v353
      %vm486 = vcmp.eq.s32.totalorder %v319, %v354
      %vm487 = vcmp.eq.s32.totalorder %v319, %v355
      %vm488 = vcmp.eq.s32.totalorder %v320, %v352
      %vm489 = vcmp.eq.s32.totalorder %v320, %v353
      %vm490 = vcmp.eq.s32.totalorder %v320, %v354
      %vm491 = vcmp.eq.s32.totalorder %v320, %v355
      %vm492 = vcmp.eq.s32.totalorder %v321, %v352
      %vm493 = vcmp.eq.s32.totalorder %v321, %v353
      %vm494 = vcmp.eq.s32.totalorder %v321, %v354
      %vm495 = vcmp.eq.s32.totalorder %v321, %v355
      %vm496 = vcmp.eq.s32.totalorder %v322, %v352
      %vm497 = vcmp.eq.s32.totalorder %v322, %v353
      %vm498 = vcmp.eq.s32.totalorder %v322, %v354
      %vm499 = vcmp.eq.s32.totalorder %v322, %v355
      %vm500 = vcmp.eq.s32.totalorder %v323, %v352
      %vm501 = vcmp.eq.s32.totalorder %v323, %v353
      %vm502 = vcmp.eq.s32.totalorder %v323, %v354
      %vm503 = vcmp.eq.s32.totalorder %v323, %v355
      %vm504 = vcmp.eq.s32.totalorder %v324, %v352
      %vm505 = vcmp.eq.s32.totalorder %v324, %v353
      %vm506 = vcmp.eq.s32.totalorder %v324, %v354
      %vm507 = vcmp.eq.s32.totalorder %v324, %v355
      %vm508 = vcmp.eq.s32.totalorder %v325, %v352
      %vm509 = vcmp.eq.s32.totalorder %v325, %v353
      %vm510 = vcmp.eq.s32.totalorder %v325, %v354
      %vm511 = vcmp.eq.s32.totalorder %v325, %v355
      %vm512 = vcmp.eq.s32.totalorder %v326, %v352
      %vm513 = vcmp.eq.s32.totalorder %v326, %v353
      %vm514 = vcmp.eq.s32.totalorder %v326, %v354
      %vm515 = vcmp.eq.s32.totalorder %v326, %v355
      %vm516 = vcmp.eq.s32.totalorder %v327, %v352
      %vm517 = vcmp.eq.s32.totalorder %v327, %v353
      %vm518 = vcmp.eq.s32.totalorder %v327, %v354
      %vm519 = vcmp.eq.s32.totalorder %v327, %v355
      %vm520 = vcmp.eq.s32.totalorder %v328, %v352
      %vm521 = vcmp.eq.s32.totalorder %v328, %v353
      %vm522 = vcmp.eq.s32.totalorder %v328, %v354
      %vm523 = vcmp.eq.s32.totalorder %v328, %v355
      %vm524 = vcmp.eq.s32.totalorder %v329, %v352
      %vm525 = vcmp.eq.s32.totalorder %v329, %v353
      %vm526 = vcmp.eq.s32.totalorder %v329, %v354
      %vm527 = vcmp.eq.s32.totalorder %v329, %v355
      %vm528 = vcmp.eq.s32.totalorder %v330, %v352
      %vm529 = vcmp.eq.s32.totalorder %v330, %v353
      %vm530 = vcmp.eq.s32.totalorder %v330, %v354
      %vm531 = vcmp.eq.s32.totalorder %v330, %v355
      %vm532 = vcmp.eq.s32.totalorder %v331, %v352
      %vm533 = vcmp.eq.s32.totalorder %v331, %v353
      %vm534 = vcmp.eq.s32.totalorder %v331, %v354
      %vm535 = vcmp.eq.s32.totalorder %v331, %v355
      %vm536 = vcmp.eq.s32.totalorder %v332, %v352
      %vm537 = vcmp.eq.s32.totalorder %v332, %v353
      %vm538 = vcmp.eq.s32.totalorder %v332, %v354
      %vm539 = vcmp.eq.s32.totalorder %v332, %v355
      %vm540 = vcmp.eq.s32.totalorder %v333, %v352
      %vm541 = vcmp.eq.s32.totalorder %v333, %v353
      %vm542 = vcmp.eq.s32.totalorder %v333, %v354
      %vm543 = vcmp.eq.s32.totalorder %v333, %v355
      %vm544 = vcmp.eq.s32.totalorder %v334, %v352
      %vm545 = vcmp.eq.s32.totalorder %v334, %v353
      %vm546 = vcmp.eq.s32.totalorder %v334, %v354
      %vm547 = vcmp.eq.s32.totalorder %v334, %v355
      %vm548 = vcmp.eq.s32.totalorder %v335, %v352
      %vm549 = vcmp.eq.s32.totalorder %v335, %v353
      %vm550 = vcmp.eq.s32.totalorder %v335, %v354
      %vm551 = vcmp.eq.s32.totalorder %v335, %v355
      %vm552 = vcmp.eq.s32.totalorder %v336, %v352
      %vm553 = vcmp.eq.s32.totalorder %v336, %v353
      %vm554 = vcmp.eq.s32.totalorder %v336, %v354
      %vm555 = vcmp.eq.s32.totalorder %v336, %v355
      %vm556 = vcmp.eq.s32.totalorder %v337, %v352
      %vm557 = vcmp.eq.s32.totalorder %v337, %v353
      %vm558 = vcmp.eq.s32.totalorder %v337, %v354
      %vm559 = vcmp.eq.s32.totalorder %v337, %v355
      %vm560 = vcmp.eq.s32.totalorder %v338, %v352
      %vm561 = vcmp.eq.s32.totalorder %v338, %v353
      %vm562 = vcmp.eq.s32.totalorder %v338, %v354
      %vm563 = vcmp.eq.s32.totalorder %v338, %v355
      %vm564 = vcmp.eq.s32.totalorder %v339, %v352
      %vm565 = vcmp.eq.s32.totalorder %v339, %v353
      %vm566 = vcmp.eq.s32.totalorder %v339, %v354
      %vm567 = vcmp.eq.s32.totalorder %v339, %v355
      %vm568 = vcmp.eq.s32.totalorder %v340, %v352
      %vm569 = vcmp.eq.s32.totalorder %v340, %v353
      %vm570 = vcmp.eq.s32.totalorder %v340, %v354
      %vm571 = vcmp.eq.s32.totalorder %v340, %v355
      %vm572 = vcmp.eq.s32.totalorder %v341, %v352
      %vm573 = vcmp.eq.s32.totalorder %v341, %v353
      %vm574 = vcmp.eq.s32.totalorder %v341, %v354
      %vm575 = vcmp.eq.s32.totalorder %v341, %v355
      %vm576 = vcmp.eq.s32.totalorder %v342, %v352
      %vm577 = vcmp.eq.s32.totalorder %v342, %v353
      %vm578 = vcmp.eq.s32.totalorder %v342, %v354
      %vm579 = vcmp.eq.s32.totalorder %v342, %v355
      %vm580 = vcmp.eq.s32.totalorder %v343, %v352
      %vm581 = vcmp.eq.s32.totalorder %v343, %v353
      %vm582 = vcmp.eq.s32.totalorder %v343, %v354
      %vm583 = vcmp.eq.s32.totalorder %v343, %v355
      %vm584 = vcmp.eq.s32.totalorder %v344, %v352
      %vm585 = vcmp.eq.s32.totalorder %v344, %v353
      %vm586 = vcmp.eq.s32.totalorder %v344, %v354
      %vm587 = vcmp.eq.s32.totalorder %v344, %v355
      %vm588 = vcmp.eq.s32.totalorder %v345, %v352
      %vm589 = vcmp.eq.s32.totalorder %v345, %v353
      %vm590 = vcmp.eq.s32.totalorder %v345, %v354
      %vm591 = vcmp.eq.s32.totalorder %v345, %v355
      %vm592 = vcmp.eq.s32.totalorder %v346, %v352
      %vm593 = vcmp.eq.s32.totalorder %v346, %v353
      %vm594 = vcmp.eq.s32.totalorder %v346, %v354
      %vm595 = vcmp.eq.s32.totalorder %v346, %v355
      %vm596 = vcmp.eq.s32.totalorder %v347, %v352
      %vm597 = vcmp.eq.s32.totalorder %v347, %v353
      %vm598 = vcmp.eq.s32.totalorder %v347, %v354
      %vm599 = vcmp.eq.s32.totalorder %v347, %v355
      %vm600 = vcmp.eq.s32.totalorder %v348, %v352
      %vm601 = vcmp.eq.s32.totalorder %v348, %v353
      %vm602 = vcmp.eq.s32.totalorder %v348, %v354
      %vm603 = vcmp.eq.s32.totalorder %v348, %v355
      %vm604 = vcmp.eq.s32.totalorder %v349, %v352
      %vm605 = vcmp.eq.s32.totalorder %v349, %v353
      %vm606 = vcmp.eq.s32.totalorder %v349, %v354
      %vm607 = vcmp.eq.s32.totalorder %v349, %v355
      %vm608 = vcmp.eq.s32.totalorder %v350, %v352
      %vm609 = vcmp.eq.s32.totalorder %v350, %v353
      %vm610 = vcmp.eq.s32.totalorder %v350, %v354
      %vm611 = vcmp.eq.s32.totalorder %v350, %v355
      %v612 = vsel %vm356, 1, 0
      %v613 = vsel %vm357, 1, 0
      %v614 = vsel %vm358, 1, 0
      %v615 = vsel %vm359, 1, 0
      %v616 = vsel %vm360, 1, 0
      %v617 = vsel %vm361, 1, 0
      %v618 = vsel %vm362, 1, 0
      %v619 = vsel %vm363, 1, 0
      %v620 = vsel %vm364, 1, 0
      %v621 = vsel %vm365, 1, 0
      %v622 = vsel %vm366, 1, 0
      %v623 = vsel %vm367, 1, 0
      %v624 = vsel %vm368, 1, 0
      %v625 = vsel %vm369, 1, 0
      %v626 = vsel %vm370, 1, 0
      %v627 = vsel %vm371, 1, 0
      %v628 = vsel %vm372, 1, 0
      %v629 = vsel %vm373, 1, 0
      %v630 = vsel %vm374, 1, 0
      %v631 = vsel %vm375, 1, 0
      %v632 = vsel %vm376, 1, 0
      %v633 = vsel %vm377, 1, 0
      %v634 = vsel %vm378, 1, 0
      %v635 = vsel %vm379, 1, 0
      %v636 = vsel %vm380, 1, 0
      %v637 = vsel %vm381, 1, 0
      %v638 = vsel %vm382, 1, 0
      %v639 = vsel %vm383, 1, 0
      %v640 = vsel %vm384, 1, 0
      %v641 = vsel %vm385, 1, 0
      %v642 = vsel %vm386, 1, 0
      %v643 = vsel %vm387, 1, 0
      %v644 = vsel %vm388, 1, 0
      %v645 = vsel %vm389, 1, 0
      %v646 = vsel %vm390, 1, 0
      %v647 = vsel %vm391, 1, 0
      %v648 = vsel %vm392, 1, 0
      %v649 = vsel %vm393, 1, 0
      %v650 = vsel %vm394, 1, 0
      %v651 = vsel %vm395, 1, 0
      %v652 = vsel %vm396, 1, 0
      %v653 = vsel %vm397, 1, 0
      %v654 = vsel %vm398, 1, 0
      %v655 = vsel %vm399, 1, 0
      %v656 = vsel %vm400, 1, 0
      %v657 = vsel %vm401, 1, 0
      %v658 = vsel %vm402, 1, 0
      %v659 = vsel %vm403, 1, 0
      %v660 = vsel %vm404, 1, 0
      %v661 = vsel %vm405, 1, 0
      %v662 = vsel %vm406, 1, 0
      %v663 = vsel %vm407, 1, 0
      %v664 = vsel %vm408, 1, 0
      %v665 = vsel %vm409, 1, 0
      %v666 = vsel %vm410, 1, 0
      %v667 = vsel %vm411, 1, 0
      %v668 = vsel %vm412, 1, 0
      %v669 = vsel %vm413, 1, 0
      %v670 = vsel %vm414, 1, 0
      %v671 = vsel %vm415, 1, 0
      %v672 = vsel %vm416, 1, 0
      %v673 = vsel %vm417, 1, 0
      %v674 = vsel %vm418, 1, 0
      %v675 = vsel %vm419, 1, 0
      %v676 = vsel %vm420, 1, 0
      %v677 = vsel %vm421, 1, 0
      %v678 = vsel %vm422, 1, 0
      %v679 = vsel %vm423, 1, 0
      %v680 = vsel %vm424, 1, 0
      %v681 = vsel %vm425, 1, 0
      %v682 = vsel %vm426, 1, 0
      %v683 = vsel %vm427, 1, 0
      %v684 = vsel %vm428, 1, 0
      %v685 = vsel %vm429, 1, 0
      %v686 = vsel %vm430, 1, 0
      %v687 = vsel %vm431, 1, 0
      %v688 = vsel %vm432, 1, 0
      %v689 = vsel %vm433, 1, 0
      %v690 = vsel %vm434, 1, 0
      %v691 = vsel %vm435, 1, 0
      %v692 = vsel %vm436, 1, 0
      %v693 = vsel %vm437, 1, 0
      %v694 = vsel %vm438, 1, 0
      %v695 = vsel %vm439, 1, 0
      %v696 = vsel %vm440, 1, 0
      %v697 = vsel %vm441, 1, 0
      %v698 = vsel %vm442, 1, 0
      %v699 = vsel %vm443, 1, 0
      %v700 = vsel %vm444, 1, 0
      %v701 = vsel %vm445, 1, 0
      %v702 = vsel %vm446, 1, 0
      %v703 = vsel %vm447, 1, 0
      %v704 = vsel %vm448, 1, 0
      %v705 = vsel %vm449, 1, 0
      %v706 = vsel %vm450, 1, 0
      %v707 = vsel %vm451, 1, 0
      %v708 = vsel %vm452, 1, 0
      %v709 = vsel %vm453, 1, 0
      %v710 = vsel %vm454, 1, 0
      %v711 = vsel %vm455, 1, 0
      %v712 = vsel %vm456, 1, 0
      %v713 = vsel %vm457, 1, 0
      %v714 = vsel %vm458, 1, 0
      %v715 = vsel %vm459, 1, 0
      %v716 = vsel %vm460, 1, 0
      %v717 = vsel %vm461, 1, 0
      %v718 = vsel %vm462, 1, 0
      %v719 = vsel %vm463, 1, 0
      %v720 = vsel %vm464, 1, 0
      %v721 = vsel %vm465, 1, 0
      %v722 = vsel %vm466, 1, 0
      %v723 = vsel %vm467, 1, 0
      %v724 = vsel %vm468, 1, 0
      %v725 = vsel %vm469, 1, 0
      %v726 = vsel %vm470, 1, 0
      %v727 = vsel %vm471, 1, 0
      %v728 = vsel %vm472, 1, 0
      %v729 = vsel %vm473, 1, 0
      %v730 = vsel %vm474, 1, 0
      %v731 = vsel %vm475, 1, 0
      %v732 = vsel %vm476, 1, 0
      %v733 = vsel %vm477, 1, 0
      %v734 = vsel %vm478, 1, 0
      %v735 = vsel %vm479, 1, 0
      %v736 = vsel %vm480, 1, 0
      %v737 = vsel %vm481, 1, 0
      %v738 = vsel %vm482, 1, 0
      %v739 = vsel %vm483, 1, 0
      %v740 = vsel %vm484, 1, 0
      %v741 = vsel %vm485, 1, 0
      %v742 = vsel %vm486, 1, 0
      %v743 = vsel %vm487, 1, 0
      %v744 = vsel %vm488, 1, 0
      %v745 = vsel %vm489, 1, 0
      %v746 = vsel %vm490, 1, 0
      %v747 = vsel %vm491, 1, 0
      %v748 = vsel %vm492, 1, 0
      %v749 = vsel %vm493, 1, 0
      %v750 = vsel %vm494, 1, 0
      %v751 = vsel %vm495, 1, 0
      %v752 = vsel %vm496, 1, 0
      %v753 = vsel %vm497, 1, 0
      %v754 = vsel %vm498, 1, 0
      %v755 = vsel %vm499, 1, 0
      %v756 = vsel %vm500, 1, 0
      %v757 = vsel %vm501, 1, 0
      %v758 = vsel %vm502, 1, 0
      %v759 = vsel %vm503, 1, 0
      %v760 = vsel %vm504, 1, 0
      %v761 = vsel %vm505, 1, 0
      %v762 = vsel %vm506, 1, 0
      %v763 = vsel %vm507, 1, 0
      %v764 = vsel %vm508, 1, 0
      %v765 = vsel %vm509, 1, 0
      %v766 = vsel %vm510, 1, 0
      %v767 = vsel %vm511, 1, 0
      %v768 = vsel %vm512, 1, 0
      %v769 = vsel %vm513, 1, 0
      %v770 = vsel %vm514, 1, 0
      %v771 = vsel %vm515, 1, 0
      %v772 = vsel %vm516, 1, 0
      %v773 = vsel %vm517, 1, 0
      %v774 = vsel %vm518, 1, 0
      %v775 = vsel %vm519, 1, 0
      %v776 = vsel %vm520, 1, 0
      %v777 = vsel %vm521, 1, 0
      %v778 = vsel %vm522, 1, 0
      %v779 = vsel %vm523, 1, 0
      %v780 = vsel %vm524, 1, 0
      %v781 = vsel %vm525, 1, 0
      %v782 = vsel %vm526, 1, 0
      %v783 = vsel %vm527, 1, 0
      %v784 = vsel %vm528, 1, 0
      %v785 = vsel %vm529, 1, 0
      %v786 = vsel %vm530, 1, 0
      %v787 = vsel %vm531, 1, 0
      %v788 = vsel %vm532, 1, 0
      %v789 = vsel %vm533, 1, 0
      %v790 = vsel %vm534, 1, 0
      %v791 = vsel %vm535, 1, 0
      %v792 = vsel %vm536, 1, 0
      %v793 = vsel %vm537, 1, 0
      %v794 = vsel %vm538, 1, 0
      %v795 = vsel %vm539, 1, 0
      %v796 = vsel %vm540, 1, 0
      %v797 = vsel %vm541, 1, 0
      %v798 = vsel %vm542, 1, 0
      %v799 = vsel %vm543, 1, 0
      %v800 = vsel %vm544, 1, 0
      %v801 = vsel %vm545, 1, 0
      %v802 = vsel %vm546, 1, 0
      %v803 = vsel %vm547, 1, 0
      %v804 = vsel %vm548, 1, 0
      %v805 = vsel %vm549, 1, 0
      %v806 = vsel %vm550, 1, 0
      %v807 = vsel %vm551, 1, 0
      %v808 = vsel %vm552, 1, 0
      %v809 = vsel %vm553, 1, 0
      %v810 = vsel %vm554, 1, 0
      %v811 = vsel %vm555, 1, 0
      %v812 = vsel %vm556, 1, 0
      %v813 = vsel %vm557, 1, 0
      %v814 = vsel %vm558, 1, 0
      %v815 = vsel %vm559, 1, 0
      %v816 = vsel %vm560, 1, 0
      %v817 = vsel %vm561, 1, 0
      %v818 = vsel %vm562, 1, 0
      %v819 = vsel %vm563, 1, 0
      %v820 = vsel %vm564, 1, 0
      %v821 = vsel %vm565, 1, 0
      %v822 = vsel %vm566, 1, 0
      %v823 = vsel %vm567, 1, 0
      %v824 = vsel %vm568, 1, 0
      %v825 = vsel %vm569, 1, 0
      %v826 = vsel %vm570, 1, 0
      %v827 = vsel %vm571, 1, 0
      %v828 = vsel %vm572, 1, 0
      %v829 = vsel %vm573, 1, 0
      %v830 = vsel %vm574, 1, 0
      %v831 = vsel %vm575, 1, 0
      %v832 = vsel %vm576, 1, 0
      %v833 = vsel %vm577, 1, 0
      %v834 = vsel %vm578, 1, 0
      %v835 = vsel %vm579, 1, 0
      %v836 = vsel %vm580, 1, 0
      %v837 = vsel %vm581, 1, 0
      %v838 = vsel %vm582, 1, 0
      %v839 = vsel %vm583, 1, 0
      %v840 = vsel %vm584, 1, 0
      %v841 = vsel %vm585, 1, 0
      %v842 = vsel %vm586, 1, 0
      %v843 = vsel %vm587, 1, 0
      %v844 = vsel %vm588, 1, 0
      %v845 = vsel %vm589, 1, 0
      %v846 = vsel %vm590, 1, 0
      %v847 = vsel %vm591, 1, 0
      %v848 = vsel %vm592, 1, 0
      %v849 = vsel %vm593, 1, 0
      %v850 = vsel %vm594, 1, 0
      %v851 = vsel %vm595, 1, 0
      %v852 = vsel %vm596, 1, 0
      %v853 = vsel %vm597, 1, 0
      %v854 = vsel %vm598, 1, 0
      %v855 = vsel %vm599, 1, 0
      %v856 = vsel %vm600, 1, 0
      %v857 = vsel %vm601, 1, 0
      %v858 = vsel %vm602, 1, 0
      %v859 = vsel %vm603, 1, 0
      %v860 = vsel %vm604, 1, 0
      %v861 = vsel %vm605, 1, 0
      %v862 = vsel %vm606, 1, 0
      %v863 = vsel %vm607, 1, 0
      %v864 = vsel %vm608, 1, 0
      %v865 = vsel %vm609, 1, 0
      %v866 = vsel %vm610, 1, 0
      %v867 = vsel %vm611, 1, 0
      %v868 = vcvt.s32.f32 %v612
      %v869 = vcvt.s32.f32 %v613
      %v870 = vcvt.s32.f32 %v614
      %v871 = vcvt.s32.f32 %v615
      %v872 = vcvt.s32.f32 %v616
      %v873 = vcvt.s32.f32 %v617
      %v874 = vcvt.s32.f32 %v618
      %v875 = vcvt.s32.f32 %v619
      %v876 = vcvt.s32.f32 %v620
      %v877 = vcvt.s32.f32 %v621
      %v878 = vcvt.s32.f32 %v622
      %v879 = vcvt.s32.f32 %v623
      %v880 = vcvt.s32.f32 %v624
      %v881 = vcvt.s32.f32 %v625
      %v882 = vcvt.s32.f32 %v626
      %v883 = vcvt.s32.f32 %v627
      %v884 = vcvt.s32.f32 %v628
      %v885 = vcvt.s32.f32 %v629
      %v886 = vcvt.s32.f32 %v630
      %v887 = vcvt.s32.f32 %v631
      %v888 = vcvt.s32.f32 %v632
      %v889 = vcvt.s32.f32 %v633
      %v890 = vcvt.s32.f32 %v634
      %v891 = vcvt.s32.f32 %v635
      %v892 = vcvt.s32.f32 %v636
      %v893 = vcvt.s32.f32 %v637
      %v894 = vcvt.s32.f32 %v638
      %v895 = vcvt.s32.f32 %v639
      %v896 = vcvt.s32.f32 %v640
      %v897 = vcvt.s32.f32 %v641
      %v898 = vcvt.s32.f32 %v642
      %v899 = vcvt.s32.f32 %v643
      %v900 = vcvt.s32.f32 %v644
      %v901 = vcvt.s32.f32 %v645
      %v902 = vcvt.s32.f32 %v646
      %v903 = vcvt.s32.f32 %v647
      %v904 = vcvt.s32.f32 %v648
      %v905 = vcvt.s32.f32 %v649
      %v906 = vcvt.s32.f32 %v650
      %v907 = vcvt.s32.f32 %v651
      %v908 = vcvt.s32.f32 %v652
      %v909 = vcvt.s32.f32 %v653
      %v910 = vcvt.s32.f32 %v654
      %v911 = vcvt.s32.f32 %v655
      %v912 = vcvt.s32.f32 %v656
      %v913 = vcvt.s32.f32 %v657
      %v914 = vcvt.s32.f32 %v658
      %v915 = vcvt.s32.f32 %v659
      %v916 = vcvt.s32.f32 %v660
      %v917 = vcvt.s32.f32 %v661
      %v918 = vcvt.s32.f32 %v662
      %v919 = vcvt.s32.f32 %v663
      %v920 = vcvt.s32.f32 %v664
      %v921 = vcvt.s32.f32 %v665
      %v922 = vcvt.s32.f32 %v666
      %v923 = vcvt.s32.f32 %v667
      %v924 = vcvt.s32.f32 %v668
      %v925 = vcvt.s32.f32 %v669
      %v926 = vcvt.s32.f32 %v670
      %v927 = vcvt.s32.f32 %v671
      %v928 = vcvt.s32.f32 %v672
      %v929 = vcvt.s32.f32 %v673
      %v930 = vcvt.s32.f32 %v674
      %v931 = vcvt.s32.f32 %v675
      %v932 = vcvt.s32.f32 %v676
      %v933 = vcvt.s32.f32 %v677
      %v934 = vcvt.s32.f32 %v678
      %v935 = vcvt.s32.f32 %v679
      %v936 = vcvt.s32.f32 %v680
      %v937 = vcvt.s32.f32 %v681
      %v938 = vcvt.s32.f32 %v682
      %v939 = vcvt.s32.f32 %v683
      %v940 = vcvt.s32.f32 %v684
      %v941 = vcvt.s32.f32 %v685
      %v942 = vcvt.s32.f32 %v686
      %v943 = vcvt.s32.f32 %v687
      %v944 = vcvt.s32.f32 %v688
      %v945 = vcvt.s32.f32 %v689
      %v946 = vcvt.s32.f32 %v690
      %v947 = vcvt.s32.f32 %v691
      %v948 = vcvt.s32.f32 %v692
      %v949 = vcvt.s32.f32 %v693
      %v950 = vcvt.s32.f32 %v694
      %v951 = vcvt.s32.f32 %v695
      %v952 = vcvt.s32.f32 %v696
      %v953 = vcvt.s32.f32 %v697
      %v954 = vcvt.s32.f32 %v698
      %v955 = vcvt.s32.f32 %v699
      %v956 = vcvt.s32.f32 %v700
      %v957 = vcvt.s32.f32 %v701
      %v958 = vcvt.s32.f32 %v702
      %v959 = vcvt.s32.f32 %v703
      %v960 = vcvt.s32.f32 %v704
      %v961 = vcvt.s32.f32 %v705
      %v962 = vcvt.s32.f32 %v706
      %v963 = vcvt.s32.f32 %v707
      %v964 = vcvt.s32.f32 %v708
      %v965 = vcvt.s32.f32 %v709
      %v966 = vcvt.s32.f32 %v710
      %v967 = vcvt.s32.f32 %v711
      %v968 = vcvt.s32.f32 %v712
      %v969 = vcvt.s32.f32 %v713
      %v970 = vcvt.s32.f32 %v714
      %v971 = vcvt.s32.f32 %v715
      %v972 = vcvt.s32.f32 %v716
      %v973 = vcvt.s32.f32 %v717
      %v974 = vcvt.s32.f32 %v718
      %v975 = vcvt.s32.f32 %v719
      %v976 = vcvt.s32.f32 %v720
      %v977 = vcvt.s32.f32 %v721
      %v978 = vcvt.s32.f32 %v722
      %v979 = vcvt.s32.f32 %v723
      %v980 = vcvt.s32.f32 %v724
      %v981 = vcvt.s32.f32 %v725
      %v982 = vcvt.s32.f32 %v726
      %v983 = vcvt.s32.f32 %v727
      %v984 = vcvt.s32.f32 %v728
      %v985 = vcvt.s32.f32 %v729
      %v986 = vcvt.s32.f32 %v730
      %v987 = vcvt.s32.f32 %v731
      %v988 = vcvt.s32.f32 %v732
      %v989 = vcvt.s32.f32 %v733
      %v990 = vcvt.s32.f32 %v734
      %v991 = vcvt.s32.f32 %v735
      %v992 = vcvt.s32.f32 %v736
      %v993 = vcvt.s32.f32 %v737
      %v994 = vcvt.s32.f32 %v738
      %v995 = vcvt.s32.f32 %v739
      %v996 = vcvt.s32.f32 %v740
      %v997 = vcvt.s32.f32 %v741
      %v998 = vcvt.s32.f32 %v742
      %v999 = vcvt.s32.f32 %v743
      %v1000 = vcvt.s32.f32 %v744
      %v1001 = vcvt.s32.f32 %v745
      %v1002 = vcvt.s32.f32 %v746
      %v1003 = vcvt.s32.f32 %v747
      %v1004 = vcvt.s32.f32 %v748
      %v1005 = vcvt.s32.f32 %v749
      %v1006 = vcvt.s32.f32 %v750
      %v1007 = vcvt.s32.f32 %v751
      %v1008 = vcvt.s32.f32 %v752
      %v1009 = vcvt.s32.f32 %v753
      %v1010 = vcvt.s32.f32 %v754
      %v1011 = vcvt.s32.f32 %v755
      %v1012 = vcvt.s32.f32 %v756
      %v1013 = vcvt.s32.f32 %v757
      %v1014 = vcvt.s32.f32 %v758
      %v1015 = vcvt.s32.f32 %v759
      %v1016 = vcvt.s32.f32 %v760
      %v1017 = vcvt.s32.f32 %v761
      %v1018 = vcvt.s32.f32 %v762
      %v1019 = vcvt.s32.f32 %v763
      %v1020 = vcvt.s32.f32 %v764
      %v1021 = vcvt.s32.f32 %v765
      %v1022 = vcvt.s32.f32 %v766
      %v1023 = vcvt.s32.f32 %v767
      %v1024 = vcvt.s32.f32 %v768
      %v1025 = vcvt.s32.f32 %v769
      %v1026 = vcvt.s32.f32 %v770
      %v1027 = vcvt.s32.f32 %v771
      %v1028 = vcvt.s32.f32 %v772
      %v1029 = vcvt.s32.f32 %v773
      %v1030 = vcvt.s32.f32 %v774
      %v1031 = vcvt.s32.f32 %v775
      %v1032 = vcvt.s32.f32 %v776
      %v1033 = vcvt.s32.f32 %v777
      %v1034 = vcvt.s32.f32 %v778
      %v1035 = vcvt.s32.f32 %v779
      %v1036 = vcvt.s32.f32 %v780
      %v1037 = vcvt.s32.f32 %v781
      %v1038 = vcvt.s32.f32 %v782
      %v1039 = vcvt.s32.f32 %v783
      %v1040 = vcvt.s32.f32 %v784
      %v1041 = vcvt.s32.f32 %v785
      %v1042 = vcvt.s32.f32 %v786
      %v1043 = vcvt.s32.f32 %v787
      %v1044 = vcvt.s32.f32 %v788
      %v1045 = vcvt.s32.f32 %v789
      %v1046 = vcvt.s32.f32 %v790
      %v1047 = vcvt.s32.f32 %v791
      %v1048 = vcvt.s32.f32 %v792
      %v1049 = vcvt.s32.f32 %v793
      %v1050 = vcvt.s32.f32 %v794
      %v1051 = vcvt.s32.f32 %v795
      %v1052 = vcvt.s32.f32 %v796
      %v1053 = vcvt.s32.f32 %v797
      %v1054 = vcvt.s32.f32 %v798
      %v1055 = vcvt.s32.f32 %v799
      %v1056 = vcvt.s32.f32 %v800
      %v1057 = vcvt.s32.f32 %v801
      %v1058 = vcvt.s32.f32 %v802
      %v1059 = vcvt.s32.f32 %v803
      %v1060 = vcvt.s32.f32 %v804
      %v1061 = vcvt.s32.f32 %v805
      %v1062 = vcvt.s32.f32 %v806
      %v1063 = vcvt.s32.f32 %v807
      %v1064 = vcvt.s32.f32 %v808
      %v1065 = vcvt.s32.f32 %v809
      %v1066 = vcvt.s32.f32 %v810
      %v1067 = vcvt.s32.f32 %v811
      %v1068 = vcvt.s32.f32 %v812
      %v1069 = vcvt.s32.f32 %v813
      %v1070 = vcvt.s32.f32 %v814
      %v1071 = vcvt.s32.f32 %v815
      %v1072 = vcvt.s32.f32 %v816
      %v1073 = vcvt.s32.f32 %v817
      %v1074 = vcvt.s32.f32 %v818
      %v1075 = vcvt.s32.f32 %v819
      %v1076 = vcvt.s32.f32 %v820
      %v1077 = vcvt.s32.f32 %v821
      %v1078 = vcvt.s32.f32 %v822
      %v1079 = vcvt.s32.f32 %v823
      %v1080 = vcvt.s32.f32 %v824
      %v1081 = vcvt.s32.f32 %v825
      %v1082 = vcvt.s32.f32 %v826
      %v1083 = vcvt.s32.f32 %v827
      %v1084 = vcvt.s32.f32 %v828
      %v1085 = vcvt.s32.f32 %v829
      %v1086 = vcvt.s32.f32 %v830
      %v1087 = vcvt.s32.f32 %v831
      %v1088 = vcvt.s32.f32 %v832
      %v1089 = vcvt.s32.f32 %v833
      %v1090 = vcvt.s32.f32 %v834
      %v1091 = vcvt.s32.f32 %v835
      %v1092 = vcvt.s32.f32 %v836
      %v1093 = vcvt.s32.f32 %v837
      %v1094 = vcvt.s32.f32 %v838
      %v1095 = vcvt.s32.f32 %v839
      %v1096 = vcvt.s32.f32 %v840
      %v1097 = vcvt.s32.f32 %v841
      %v1098 = vcvt.s32.f32 %v842
      %v1099 = vcvt.s32.f32 %v843
      %v1100 = vcvt.s32.f32 %v844
      %v1101 = vcvt.s32.f32 %v845
      %v1102 = vcvt.s32.f32 %v846
      %v1103 = vcvt.s32.f32 %v847
      %v1104 = vcvt.s32.f32 %v848
      %v1105 = vcvt.s32.f32 %v849
      %v1106 = vcvt.s32.f32 %v850
      %v1107 = vcvt.s32.f32 %v851
      %v1108 = vcvt.s32.f32 %v852
      %v1109 = vcvt.s32.f32 %v853
      %v1110 = vcvt.s32.f32 %v854
      %v1111 = vcvt.s32.f32 %v855
      %v1112 = vcvt.s32.f32 %v856
      %v1113 = vcvt.s32.f32 %v857
      %v1114 = vcvt.s32.f32 %v858
      %v1115 = vcvt.s32.f32 %v859
      %v1116 = vcvt.s32.f32 %v860
      %v1117 = vcvt.s32.f32 %v861
      %v1118 = vcvt.s32.f32 %v862
      %v1119 = vcvt.s32.f32 %v863
      %v1120 = vcvt.s32.f32 %v864
      %v1121 = vcvt.s32.f32 %v865
      %v1122 = vcvt.s32.f32 %v866
      %v1123 = vcvt.s32.f32 %v867
      %v1124 = vadd.f32 %v26, %v868
      %v1125 = vadd.f32 %v27, %v869
      %v1126 = vadd.f32 %v28, %v870
      %v1127 = vadd.f32 %v29, %v871
      %v1128 = vadd.f32 %v30, %v872
      %v1129 = vadd.f32 %v31, %v873
      %v1130 = vadd.f32 %v32, %v874
      %v1131 = vadd.f32 %v33, %v875
      %v1132 = vadd.f32 %v34, %v876
      %v1133 = vadd.f32 %v35, %v877
      %v1134 = vadd.f32 %v36, %v878
      %v1135 = vadd.f32 %v37, %v879
      %v1136 = vadd.f32 %v38, %v880
      %v1137 = vadd.f32 %v39, %v881
      %v1138 = vadd.f32 %v40, %v882
      %v1139 = vadd.f32 %v41, %v883
      %v1140 = vadd.f32 %v42, %v884
      %v1141 = vadd.f32 %v43, %v885
      %v1142 = vadd.f32 %v44, %v886
      %v1143 = vadd.f32 %v45, %v887
      %v1144 = vadd.f32 %v46, %v888
      %v1145 = vadd.f32 %v47, %v889
      %v1146 = vadd.f32 %v48, %v890
      %v1147 = vadd.f32 %v49, %v891
      %v1148 = vadd.f32 %v50, %v892
      %v1149 = vadd.f32 %v51, %v893
      %v1150 = vadd.f32 %v52, %v894
      %v1151 = vadd.f32 %v53, %v895
      %v1152 = vadd.f32 %v54, %v896
      %v1153 = vadd.f32 %v55, %v897
      %v1154 = vadd.f32 %v56, %v898
      %v1155 = vadd.f32 %v57, %v899
      %v1156 = vadd.f32 %v58, %v900
      %v1157 = vadd.f32 %v59, %v901
      %v1158 = vadd.f32 %v60, %v902
      %v1159 = vadd.f32 %v61, %v903
      %v1160 = vadd.f32 %v62, %v904
      %v1161 = vadd.f32 %v63, %v905
      %v1162 = vadd.f32 %v64, %v906
      %v1163 = vadd.f32 %v65, %v907
      %v1164 = vadd.f32 %v66, %v908
      %v1165 = vadd.f32 %v67, %v909
      %v1166 = vadd.f32 %v68, %v910
      %v1167 = vadd.f32 %v69, %v911
      %v1168 = vadd.f32 %v70, %v912
      %v1169 = vadd.f32 %v71, %v913
      %v1170 = vadd.f32 %v72, %v914
      %v1171 = vadd.f32 %v73, %v915
      %v1172 = vadd.f32 %v74, %v916
      %v1173 = vadd.f32 %v75, %v917
      %v1174 = vadd.f32 %v76, %v918
      %v1175 = vadd.f32 %v77, %v919
      %v1176 = vadd.f32 %v78, %v920
      %v1177 = vadd.f32 %v79, %v921
      %v1178 = vadd.f32 %v80, %v922
      %v1179 = vadd.f32 %v81, %v923
      %v1180 = vadd.f32 %v82, %v924
      %v1181 = vadd.f32 %v83, %v925
      %v1182 = vadd.f32 %v84, %v926
      %v1183 = vadd.f32 %v85, %v927
      %v1184 = vadd.f32 %v86, %v928
      %v1185 = vadd.f32 %v87, %v929
      %v1186 = vadd.f32 %v88, %v930
      %v1187 = vadd.f32 %v89, %v931
      %v1188 = vadd.f32 %v90, %v932
      %v1189 = vadd.f32 %v91, %v933
      %v1190 = vadd.f32 %v92, %v934
      %v1191 = vadd.f32 %v93, %v935
      %v1192 = vadd.f32 %v94, %v936
      %v1193 = vadd.f32 %v95, %v937
      %v1194 = vadd.f32 %v96, %v938
      %v1195 = vadd.f32 %v97, %v939
      %v1196 = vadd.f32 %v98, %v940
      %v1197 = vadd.f32 %v99, %v941
      %v1198 = vadd.f32 %v100, %v942
      %v1199 = vadd.f32 %v101, %v943
      %v1200 = vadd.f32 %v102, %v944
      %v1201 = vadd.f32 %v103, %v945
      %v1202 = vadd.f32 %v104, %v946
      %v1203 = vadd.f32 %v105, %v947
      %v1204 = vadd.f32 %v106, %v948
      %v1205 = vadd.f32 %v107, %v949
      %v1206 = vadd.f32 %v108, %v950
      %v1207 = vadd.f32 %v109, %v951
      %v1208 = vadd.f32 %v110, %v952
      %v1209 = vadd.f32 %v111, %v953
      %v1210 = vadd.f32 %v112, %v954
      %v1211 = vadd.f32 %v113, %v955
      %v1212 = vadd.f32 %v114, %v956
      %v1213 = vadd.f32 %v115, %v957
      %v1214 = vadd.f32 %v116, %v958
      %v1215 = vadd.f32 %v117, %v959
      %v1216 = vadd.f32 %v118, %v960
      %v1217 = vadd.f32 %v119, %v961
      %v1218 = vadd.f32 %v120, %v962
      %v1219 = vadd.f32 %v121, %v963
      %v1220 = vadd.f32 %v122, %v964
      %v1221 = vadd.f32 %v123, %v965
      %v1222 = vadd.f32 %v124, %v966
      %v1223 = vadd.f32 %v125, %v967
      %v1224 = vadd.f32 %v126, %v968
      %v1225 = vadd.f32 %v127, %v969
      %v1226 = vadd.f32 %v128, %v970
      %v1227 = vadd.f32 %v129, %v971
      %v1228 = vadd.f32 %v130, %v972
      %v1229 = vadd.f32 %v131, %v973
      %v1230 = vadd.f32 %v132, %v974
      %v1231 = vadd.f32 %v133, %v975
      %v1232 = vadd.f32 %v134, %v976
      %v1233 = vadd.f32 %v135, %v977
      %v1234 = vadd.f32 %v136, %v978
      %v1235 = vadd.f32 %v137, %v979
      %v1236 = vadd.f32 %v138, %v980
      %v1237 = vadd.f32 %v139, %v981
      %v1238 = vadd.f32 %v140, %v982
      %v1239 = vadd.f32 %v141, %v983
      %v1240 = vadd.f32 %v142, %v984
      %v1241 = vadd.f32 %v143, %v985
      %v1242 = vadd.f32 %v144, %v986
      %v1243 = vadd.f32 %v145, %v987
      %v1244 = vadd.f32 %v146, %v988
      %v1245 = vadd.f32 %v147, %v989
      %v1246 = vadd.f32 %v148, %v990
      %v1247 = vadd.f32 %v149, %v991
      %v1248 = vadd.f32 %v150, %v992
      %v1249 = vadd.f32 %v151, %v993
      %v1250 = vadd.f32 %v152, %v994
      %v1251 = vadd.f32 %v153, %v995
      %v1252 = vadd.f32 %v154, %v996
      %v1253 = vadd.f32 %v155, %v997
      %v1254 = vadd.f32 %v156, %v998
      %v1255 = vadd.f32 %v157, %v999
      %v1256 = vadd.f32 %v158, %v1000
      %v1257 = vadd.f32 %v159, %v1001
      %v1258 = vadd.f32 %v160, %v1002
      %v1259 = vadd.f32 %v161, %v1003
      %v1260 = vadd.f32 %v162, %v1004
      %v1261 = vadd.f32 %v163, %v1005
      %v1262 = vadd.f32 %v164, %v1006
      %v1263 = vadd.f32 %v165, %v1007
      %v1264 = vadd.f32 %v166, %v1008
      %v1265 = vadd.f32 %v167, %v1009
      %v1266 = vadd.f32 %v168, %v1010
      %v1267 = vadd.f32 %v169, %v1011
      %v1268 = vadd.f32 %v170, %v1012
      %v1269 = vadd.f32 %v171, %v1013
      %v1270 = vadd.f32 %v172, %v1014
      %v1271 = vadd.f32 %v173, %v1015
      %v1272 = vadd.f32 %v174, %v1016
      %v1273 = vadd.f32 %v175, %v1017
      %v1274 = vadd.f32 %v176, %v1018
      %v1275 = vadd.f32 %v177, %v1019
      %v1276 = vadd.f32 %v178, %v1020
      %v1277 = vadd.f32 %v179, %v1021
      %v1278 = vadd.f32 %v180, %v1022
      %v1279 = vadd.f32 %v181, %v1023
      %v1280 = vadd.f32 %v182, %v1024
      %v1281 = vadd.f32 %v183, %v1025
      %v1282 = vadd.f32 %v184, %v1026
      %v1283 = vadd.f32 %v185, %v1027
      %v1284 = vadd.f32 %v186, %v1028
      %v1285 = vadd.f32 %v187, %v1029
      %v1286 = vadd.f32 %v188, %v1030
      %v1287 = vadd.f32 %v189, %v1031
      %v1288 = vadd.f32 %v190, %v1032
      %v1289 = vadd.f32 %v191, %v1033
      %v1290 = vadd.f32 %v192, %v1034
      %v1291 = vadd.f32 %v193, %v1035
      %v1292 = vadd.f32 %v194, %v1036
      %v1293 = vadd.f32 %v195, %v1037
      %v1294 = vadd.f32 %v196, %v1038
      %v1295 = vadd.f32 %v197, %v1039
      %v1296 = vadd.f32 %v198, %v1040
      %v1297 = vadd.f32 %v199, %v1041
      %v1298 = vadd.f32 %v200, %v1042
      %v1299 = vadd.f32 %v201, %v1043
      %v1300 = vadd.f32 %v202, %v1044
      %v1301 = vadd.f32 %v203, %v1045
      %v1302 = vadd.f32 %v204, %v1046
      %v1303 = vadd.f32 %v205, %v1047
      %v1304 = vadd.f32 %v206, %v1048
      %v1305 = vadd.f32 %v207, %v1049
      %v1306 = vadd.f32 %v208, %v1050
      %v1307 = vadd.f32 %v209, %v1051
      %v1308 = vadd.f32 %v210, %v1052
      %v1309 = vadd.f32 %v211, %v1053
      %v1310 = vadd.f32 %v212, %v1054
      %v1311 = vadd.f32 %v213, %v1055
      %v1312 = vadd.f32 %v214, %v1056
      %v1313 = vadd.f32 %v215, %v1057
      %v1314 = vadd.f32 %v216, %v1058
      %v1315 = vadd.f32 %v217, %v1059
      %v1316 = vadd.f32 %v218, %v1060
      %v1317 = vadd.f32 %v219, %v1061
      %v1318 = vadd.f32 %v220, %v1062
      %v1319 = vadd.f32 %v221, %v1063
      %v1320 = vadd.f32 %v222, %v1064
      %v1321 = vadd.f32 %v223, %v1065
      %v1322 = vadd.f32 %v224, %v1066
      %v1323 = vadd.f32 %v225, %v1067
      %v1324 = vadd.f32 %v226, %v1068
      %v1325 = vadd.f32 %v227, %v1069
      %v1326 = vadd.f32 %v228, %v1070
      %v1327 = vadd.f32 %v229, %v1071
      %v1328 = vadd.f32 %v230, %v1072
      %v1329 = vadd.f32 %v231, %v1073
      %v1330 = vadd.f32 %v232, %v1074
      %v1331 = vadd.f32 %v233, %v1075
      %v1332 = vadd.f32 %v234, %v1076
      %v1333 = vadd.f32 %v235, %v1077
      %v1334 = vadd.f32 %v236, %v1078
      %v1335 = vadd.f32 %v237, %v1079
      %v1336 = vadd.f32 %v238, %v1080
      %v1337 = vadd.f32 %v239, %v1081
      %v1338 = vadd.f32 %v240, %v1082
      %v1339 = vadd.f32 %v241, %v1083
      %v1340 = vadd.f32 %v242, %v1084
      %v1341 = vadd.f32 %v243, %v1085
      %v1342 = vadd.f32 %v244, %v1086
      %v1343 = vadd.f32 %v245, %v1087
      %v1344 = vadd.f32 %v246, %v1088
      %v1345 = vadd.f32 %v247, %v1089
      %v1346 = vadd.f32 %v248, %v1090
      %v1347 = vadd.f32 %v249, %v1091
      %v1348 = vadd.f32 %v250, %v1092
      %v1349 = vadd.f32 %v251, %v1093
      %v1350 = vadd.f32 %v252, %v1094
      %v1351 = vadd.f32 %v253, %v1095
      %v1352 = vadd.f32 %v254, %v1096
      %v1353 = vadd.f32 %v255, %v1097
      %v1354 = vadd.f32 %v256, %v1098
      %v1355 = vadd.f32 %v257, %v1099
      %v1356 = vadd.f32 %v258, %v1100
      %v1357 = vadd.f32 %v259, %v1101
      %v1358 = vadd.f32 %v260, %v1102
      %v1359 = vadd.f32 %v261, %v1103
      %v1360 = vadd.f32 %v262, %v1104
      %v1361 = vadd.f32 %v263, %v1105
      %v1362 = vadd.f32 %v264, %v1106
      %v1363 = vadd.f32 %v265, %v1107
      %v1364 = vadd.f32 %v266, %v1108
      %v1365 = vadd.f32 %v267, %v1109
      %v1366 = vadd.f32 %v268, %v1110
      %v1367 = vadd.f32 %v269, %v1111
      %v1368 = vadd.f32 %v270, %v1112
      %v1369 = vadd.f32 %v271, %v1113
      %v1370 = vadd.f32 %v272, %v1114
      %v1371 = vadd.f32 %v273, %v1115
      %v1372 = vadd.f32 %v274, %v1116
      %v1373 = vadd.f32 %v275, %v1117
      %v1374 = vadd.f32 %v276, %v1118
      %v1375 = vadd.f32 %v277, %v1119
      %v1376 = vadd.f32 %v278, %v1120
      %v1377 = vadd.f32 %v279, %v1121
      %v1378 = vadd.f32 %v280, %v1122
      %v1379 = vadd.f32 %v281, %v1123
      %v1380 = vpack.c.bf16 %v1128, %v1124
      %v1381 = vpack.c.bf16 %v1129, %v1125
      %v1382 = vpack.c.bf16 %v1130, %v1126
      %v1383 = vpack.c.bf16 %v1131, %v1127
      %v1384 = vpack.c.bf16 %v1136, %v1132
      %v1385 = vpack.c.bf16 %v1137, %v1133
      %v1386 = vpack.c.bf16 %v1138, %v1134
      %v1387 = vpack.c.bf16 %v1139, %v1135
      %v1388 = vpack.c.bf16 %v1144, %v1140
      %v1389 = vpack.c.bf16 %v1145, %v1141
      %v1390 = vpack.c.bf16 %v1146, %v1142
      %v1391 = vpack.c.bf16 %v1147, %v1143
      %v1392 = vpack.c.bf16 %v1152, %v1148
      %v1393 = vpack.c.bf16 %v1153, %v1149
      %v1394 = vpack.c.bf16 %v1154, %v1150
      %v1395 = vpack.c.bf16 %v1155, %v1151
      %v1396 = vpack.c.bf16 %v1160, %v1156
      %v1397 = vpack.c.bf16 %v1161, %v1157
      %v1398 = vpack.c.bf16 %v1162, %v1158
      %v1399 = vpack.c.bf16 %v1163, %v1159
      %v1400 = vpack.c.bf16 %v1168, %v1164
      %v1401 = vpack.c.bf16 %v1169, %v1165
      %v1402 = vpack.c.bf16 %v1170, %v1166
      %v1403 = vpack.c.bf16 %v1171, %v1167
      %v1404 = vpack.c.bf16 %v1176, %v1172
      %v1405 = vpack.c.bf16 %v1177, %v1173
      %v1406 = vpack.c.bf16 %v1178, %v1174
      %v1407 = vpack.c.bf16 %v1179, %v1175
      %v1408 = vpack.c.bf16 %v1184, %v1180
      %v1409 = vpack.c.bf16 %v1185, %v1181
      %v1410 = vpack.c.bf16 %v1186, %v1182
      %v1411 = vpack.c.bf16 %v1187, %v1183
      %v1412 = vpack.c.bf16 %v1192, %v1188
      %v1413 = vpack.c.bf16 %v1193, %v1189
      %v1414 = vpack.c.bf16 %v1194, %v1190
      %v1415 = vpack.c.bf16 %v1195, %v1191
      %v1416 = vpack.c.bf16 %v1200, %v1196
      %v1417 = vpack.c.bf16 %v1201, %v1197
      %v1418 = vpack.c.bf16 %v1202, %v1198
      %v1419 = vpack.c.bf16 %v1203, %v1199
      %v1420 = vpack.c.bf16 %v1208, %v1204
      %v1421 = vpack.c.bf16 %v1209, %v1205
      %v1422 = vpack.c.bf16 %v1210, %v1206
      %v1423 = vpack.c.bf16 %v1211, %v1207
      %v1424 = vpack.c.bf16 %v1216, %v1212
      %v1425 = vpack.c.bf16 %v1217, %v1213
      %v1426 = vpack.c.bf16 %v1218, %v1214
      %v1427 = vpack.c.bf16 %v1219, %v1215
      %v1428 = vpack.c.bf16 %v1224, %v1220
      %v1429 = vpack.c.bf16 %v1225, %v1221
      %v1430 = vpack.c.bf16 %v1226, %v1222
      %v1431 = vpack.c.bf16 %v1227, %v1223
      %v1432 = vpack.c.bf16 %v1232, %v1228
      %v1433 = vpack.c.bf16 %v1233, %v1229
      %v1434 = vpack.c.bf16 %v1234, %v1230
      %v1435 = vpack.c.bf16 %v1235, %v1231
      %v1436 = vpack.c.bf16 %v1240, %v1236
      %v1437 = vpack.c.bf16 %v1241, %v1237
      %v1438 = vpack.c.bf16 %v1242, %v1238
      %v1439 = vpack.c.bf16 %v1243, %v1239
      %v1440 = vpack.c.bf16 %v1248, %v1244
      %v1441 = vpack.c.bf16 %v1249, %v1245
      %v1442 = vpack.c.bf16 %v1250, %v1246
      %v1443 = vpack.c.bf16 %v1251, %v1247
      %v1444 = vpack.c.bf16 %v1256, %v1252
      %v1445 = vpack.c.bf16 %v1257, %v1253
      %v1446 = vpack.c.bf16 %v1258, %v1254
      %v1447 = vpack.c.bf16 %v1259, %v1255
      %v1448 = vpack.c.bf16 %v1264, %v1260
      %v1449 = vpack.c.bf16 %v1265, %v1261
      %v1450 = vpack.c.bf16 %v1266, %v1262
      %v1451 = vpack.c.bf16 %v1267, %v1263
      %v1452 = vpack.c.bf16 %v1272, %v1268
      %v1453 = vpack.c.bf16 %v1273, %v1269
      %v1454 = vpack.c.bf16 %v1274, %v1270
      %v1455 = vpack.c.bf16 %v1275, %v1271
      %v1456 = vpack.c.bf16 %v1280, %v1276
      %v1457 = vpack.c.bf16 %v1281, %v1277
      %v1458 = vpack.c.bf16 %v1282, %v1278
      %v1459 = vpack.c.bf16 %v1283, %v1279
      %v1460 = vpack.c.bf16 %v1288, %v1284
      %v1461 = vpack.c.bf16 %v1289, %v1285
      %v1462 = vpack.c.bf16 %v1290, %v1286
      %v1463 = vpack.c.bf16 %v1291, %v1287
      %v1464 = vpack.c.bf16 %v1296, %v1292
      %v1465 = vpack.c.bf16 %v1297, %v1293
      %v1466 = vpack.c.bf16 %v1298, %v1294
      %v1467 = vpack.c.bf16 %v1299, %v1295
      %v1468 = vpack.c.bf16 %v1304, %v1300
      %v1469 = vpack.c.bf16 %v1305, %v1301
      %v1470 = vpack.c.bf16 %v1306, %v1302
      %v1471 = vpack.c.bf16 %v1307, %v1303
      %v1472 = vpack.c.bf16 %v1312, %v1308
      %v1473 = vpack.c.bf16 %v1313, %v1309
      %v1474 = vpack.c.bf16 %v1314, %v1310
      %v1475 = vpack.c.bf16 %v1315, %v1311
      %v1476 = vpack.c.bf16 %v1320, %v1316
      %v1477 = vpack.c.bf16 %v1321, %v1317
      %v1478 = vpack.c.bf16 %v1322, %v1318
      %v1479 = vpack.c.bf16 %v1323, %v1319
      %v1480 = vpack.c.bf16 %v1328, %v1324
      %v1481 = vpack.c.bf16 %v1329, %v1325
      %v1482 = vpack.c.bf16 %v1330, %v1326
      %v1483 = vpack.c.bf16 %v1331, %v1327
      %v1484 = vpack.c.bf16 %v1336, %v1332
      %v1485 = vpack.c.bf16 %v1337, %v1333
      %v1486 = vpack.c.bf16 %v1338, %v1334
      %v1487 = vpack.c.bf16 %v1339, %v1335
      %v1488 = vpack.c.bf16 %v1344, %v1340
      %v1489 = vpack.c.bf16 %v1345, %v1341
      %v1490 = vpack.c.bf16 %v1346, %v1342
      %v1491 = vpack.c.bf16 %v1347, %v1343
      %v1492 = vpack.c.bf16 %v1352, %v1348
      %v1493 = vpack.c.bf16 %v1353, %v1349
      %v1494 = vpack.c.bf16 %v1354, %v1350
      %v1495 = vpack.c.bf16 %v1355, %v1351
      %v1496 = vpack.c.bf16 %v1360, %v1356
      %v1497 = vpack.c.bf16 %v1361, %v1357
      %v1498 = vpack.c.bf16 %v1362, %v1358
      %v1499 = vpack.c.bf16 %v1363, %v1359
      %v1500 = vpack.c.bf16 %v1368, %v1364
      %v1501 = vpack.c.bf16 %v1369, %v1365
      %v1502 = vpack.c.bf16 %v1370, %v1366
      %v1503 = vpack.c.bf16 %v1371, %v1367
      %v1504 = vpack.c.bf16 %v1376, %v1372
      %v1505 = vpack.c.bf16 %v1377, %v1373
      %v1506 = vpack.c.bf16 %v1378, %v1374
      %v1507 = vpack.c.bf16 %v1379, %v1375
      %v1636 = vunpack.c.l.b16 %v1380
      %v1637 = vunpack.c.l.b16 %v1381
      %v1638 = vunpack.c.l.b16 %v1382
      %v1639 = vunpack.c.l.b16 %v1383
      %v1640 = vunpack.c.h.b16 %v1380
      %v1641 = vunpack.c.h.b16 %v1381
      %v1642 = vunpack.c.h.b16 %v1382
      %v1643 = vunpack.c.h.b16 %v1383
      %v1644 = vunpack.c.l.b16 %v1384
      %v1645 = vunpack.c.l.b16 %v1385
      %v1646 = vunpack.c.l.b16 %v1386
      %v1647 = vunpack.c.l.b16 %v1387
      %v1648 = vunpack.c.h.b16 %v1384
      %v1649 = vunpack.c.h.b16 %v1385
      %v1650 = vunpack.c.h.b16 %v1386
      %v1651 = vunpack.c.h.b16 %v1387
      %v1652 = vunpack.c.l.b16 %v1388
      %v1653 = vunpack.c.l.b16 %v1389
      %v1654 = vunpack.c.l.b16 %v1390
      %v1655 = vunpack.c.l.b16 %v1391
      %v1656 = vunpack.c.h.b16 %v1388
      %v1657 = vunpack.c.h.b16 %v1389
      %v1658 = vunpack.c.h.b16 %v1390
      %v1659 = vunpack.c.h.b16 %v1391
      %v1660 = vunpack.c.l.b16 %v1392
      %v1661 = vunpack.c.l.b16 %v1393
      %v1662 = vunpack.c.l.b16 %v1394
      %v1663 = vunpack.c.l.b16 %v1395
      %v1664 = vunpack.c.h.b16 %v1392
      %v1665 = vunpack.c.h.b16 %v1393
      %v1666 = vunpack.c.h.b16 %v1394
      %v1667 = vunpack.c.h.b16 %v1395
      %v1668 = vunpack.c.l.b16 %v1396
      %v1669 = vunpack.c.l.b16 %v1397
      %v1670 = vunpack.c.l.b16 %v1398
      %v1671 = vunpack.c.l.b16 %v1399
      %v1672 = vunpack.c.h.b16 %v1396
      %v1673 = vunpack.c.h.b16 %v1397
      %v1674 = vunpack.c.h.b16 %v1398
      %v1675 = vunpack.c.h.b16 %v1399
      %v1676 = vunpack.c.l.b16 %v1400
      %v1677 = vunpack.c.l.b16 %v1401
      %v1678 = vunpack.c.l.b16 %v1402
      %v1679 = vunpack.c.l.b16 %v1403
      %v1680 = vunpack.c.h.b16 %v1400
      %v1681 = vunpack.c.h.b16 %v1401
      %v1682 = vunpack.c.h.b16 %v1402
      %v1683 = vunpack.c.h.b16 %v1403
      %v1684 = vunpack.c.l.b16 %v1404
      %v1685 = vunpack.c.l.b16 %v1405
      %v1686 = vunpack.c.l.b16 %v1406
      %v1687 = vunpack.c.l.b16 %v1407
      %v1688 = vunpack.c.h.b16 %v1404
      %v1689 = vunpack.c.h.b16 %v1405
      %v1690 = vunpack.c.h.b16 %v1406
      %v1691 = vunpack.c.h.b16 %v1407
      %v1692 = vunpack.c.l.b16 %v1408
      %v1693 = vunpack.c.l.b16 %v1409
      %v1694 = vunpack.c.l.b16 %v1410
      %v1695 = vunpack.c.l.b16 %v1411
      %v1696 = vunpack.c.h.b16 %v1408
      %v1697 = vunpack.c.h.b16 %v1409
      %v1698 = vunpack.c.h.b16 %v1410
      %v1699 = vunpack.c.h.b16 %v1411
      %v1700 = vunpack.c.l.b16 %v1412
      %v1701 = vunpack.c.l.b16 %v1413
      %v1702 = vunpack.c.l.b16 %v1414
      %v1703 = vunpack.c.l.b16 %v1415
      %v1704 = vunpack.c.h.b16 %v1412
      %v1705 = vunpack.c.h.b16 %v1413
      %v1706 = vunpack.c.h.b16 %v1414
      %v1707 = vunpack.c.h.b16 %v1415
      %v1708 = vunpack.c.l.b16 %v1416
      %v1709 = vunpack.c.l.b16 %v1417
      %v1710 = vunpack.c.l.b16 %v1418
      %v1711 = vunpack.c.l.b16 %v1419
      %v1712 = vunpack.c.h.b16 %v1416
      %v1713 = vunpack.c.h.b16 %v1417
      %v1714 = vunpack.c.h.b16 %v1418
      %v1715 = vunpack.c.h.b16 %v1419
      %v1716 = vunpack.c.l.b16 %v1420
      %v1717 = vunpack.c.l.b16 %v1421
      %v1718 = vunpack.c.l.b16 %v1422
      %v1719 = vunpack.c.l.b16 %v1423
      %v1720 = vunpack.c.h.b16 %v1420
      %v1721 = vunpack.c.h.b16 %v1421
      %v1722 = vunpack.c.h.b16 %v1422
      %v1723 = vunpack.c.h.b16 %v1423
      %v1724 = vunpack.c.l.b16 %v1424
      %v1725 = vunpack.c.l.b16 %v1425
      %v1726 = vunpack.c.l.b16 %v1426
      %v1727 = vunpack.c.l.b16 %v1427
      %v1728 = vunpack.c.h.b16 %v1424
      %v1729 = vunpack.c.h.b16 %v1425
      %v1730 = vunpack.c.h.b16 %v1426
      %v1731 = vunpack.c.h.b16 %v1427
      %v1732 = vunpack.c.l.b16 %v1428
      %v1733 = vunpack.c.l.b16 %v1429
      %v1734 = vunpack.c.l.b16 %v1430
      %v1735 = vunpack.c.l.b16 %v1431
      %v1736 = vunpack.c.h.b16 %v1428
      %v1737 = vunpack.c.h.b16 %v1429
      %v1738 = vunpack.c.h.b16 %v1430
      %v1739 = vunpack.c.h.b16 %v1431
      %v1740 = vunpack.c.l.b16 %v1432
      %v1741 = vunpack.c.l.b16 %v1433
      %v1742 = vunpack.c.l.b16 %v1434
      %v1743 = vunpack.c.l.b16 %v1435
      %v1744 = vunpack.c.h.b16 %v1432
      %v1745 = vunpack.c.h.b16 %v1433
      %v1746 = vunpack.c.h.b16 %v1434
      %v1747 = vunpack.c.h.b16 %v1435
      %v1748 = vunpack.c.l.b16 %v1436
      %v1749 = vunpack.c.l.b16 %v1437
      %v1750 = vunpack.c.l.b16 %v1438
      %v1751 = vunpack.c.l.b16 %v1439
      %v1752 = vunpack.c.h.b16 %v1436
      %v1753 = vunpack.c.h.b16 %v1437
      %v1754 = vunpack.c.h.b16 %v1438
      %v1755 = vunpack.c.h.b16 %v1439
      %v1756 = vunpack.c.l.b16 %v1440
      %v1757 = vunpack.c.l.b16 %v1441
      %v1758 = vunpack.c.l.b16 %v1442
      %v1759 = vunpack.c.l.b16 %v1443
      %v1760 = vunpack.c.h.b16 %v1440
      %v1761 = vunpack.c.h.b16 %v1441
      %v1762 = vunpack.c.h.b16 %v1442
      %v1763 = vunpack.c.h.b16 %v1443
      %v1764 = vunpack.c.l.b16 %v1444
      %v1765 = vunpack.c.l.b16 %v1445
      %v1766 = vunpack.c.l.b16 %v1446
      %v1767 = vunpack.c.l.b16 %v1447
      %v1768 = vunpack.c.h.b16 %v1444
      %v1769 = vunpack.c.h.b16 %v1445
      %v1770 = vunpack.c.h.b16 %v1446
      %v1771 = vunpack.c.h.b16 %v1447
      %v1772 = vunpack.c.l.b16 %v1448
      %v1773 = vunpack.c.l.b16 %v1449
      %v1774 = vunpack.c.l.b16 %v1450
      %v1775 = vunpack.c.l.b16 %v1451
      %v1776 = vunpack.c.h.b16 %v1448
      %v1777 = vunpack.c.h.b16 %v1449
      %v1778 = vunpack.c.h.b16 %v1450
      %v1779 = vunpack.c.h.b16 %v1451
      %v1780 = vunpack.c.l.b16 %v1452
      %v1781 = vunpack.c.l.b16 %v1453
      %v1782 = vunpack.c.l.b16 %v1454
      %v1783 = vunpack.c.l.b16 %v1455
      %v1784 = vunpack.c.h.b16 %v1452
      %v1785 = vunpack.c.h.b16 %v1453
      %v1786 = vunpack.c.h.b16 %v1454
      %v1787 = vunpack.c.h.b16 %v1455
      %v1788 = vunpack.c.l.b16 %v1456
      %v1789 = vunpack.c.l.b16 %v1457
      %v1790 = vunpack.c.l.b16 %v1458
      %v1791 = vunpack.c.l.b16 %v1459
      %v1792 = vunpack.c.h.b16 %v1456
      %v1793 = vunpack.c.h.b16 %v1457
      %v1794 = vunpack.c.h.b16 %v1458
      %v1795 = vunpack.c.h.b16 %v1459
      %v1796 = vunpack.c.l.b16 %v1460
      %v1797 = vunpack.c.l.b16 %v1461
      %v1798 = vunpack.c.l.b16 %v1462
      %v1799 = vunpack.c.l.b16 %v1463
      %v1800 = vunpack.c.h.b16 %v1460
      %v1801 = vunpack.c.h.b16 %v1461
      %v1802 = vunpack.c.h.b16 %v1462
      %v1803 = vunpack.c.h.b16 %v1463
      %v1804 = vunpack.c.l.b16 %v1464
      %v1805 = vunpack.c.l.b16 %v1465
      %v1806 = vunpack.c.l.b16 %v1466
      %v1807 = vunpack.c.l.b16 %v1467
      %v1808 = vunpack.c.h.b16 %v1464
      %v1809 = vunpack.c.h.b16 %v1465
      %v1810 = vunpack.c.h.b16 %v1466
      %v1811 = vunpack.c.h.b16 %v1467
      %v1812 = vunpack.c.l.b16 %v1468
      %v1813 = vunpack.c.l.b16 %v1469
      %v1814 = vunpack.c.l.b16 %v1470
      %v1815 = vunpack.c.l.b16 %v1471
      %v1816 = vunpack.c.h.b16 %v1468
      %v1817 = vunpack.c.h.b16 %v1469
      %v1818 = vunpack.c.h.b16 %v1470
      %v1819 = vunpack.c.h.b16 %v1471
      %v1820 = vunpack.c.l.b16 %v1472
      %v1821 = vunpack.c.l.b16 %v1473
      %v1822 = vunpack.c.l.b16 %v1474
      %v1823 = vunpack.c.l.b16 %v1475
      %v1824 = vunpack.c.h.b16 %v1472
      %v1825 = vunpack.c.h.b16 %v1473
      %v1826 = vunpack.c.h.b16 %v1474
      %v1827 = vunpack.c.h.b16 %v1475
      %v1828 = vunpack.c.l.b16 %v1476
      %v1829 = vunpack.c.l.b16 %v1477
      %v1830 = vunpack.c.l.b16 %v1478
      %v1831 = vunpack.c.l.b16 %v1479
      %v1832 = vunpack.c.h.b16 %v1476
      %v1833 = vunpack.c.h.b16 %v1477
      %v1834 = vunpack.c.h.b16 %v1478
      %v1835 = vunpack.c.h.b16 %v1479
      %v1836 = vunpack.c.l.b16 %v1480
      %v1837 = vunpack.c.l.b16 %v1481
      %v1838 = vunpack.c.l.b16 %v1482
      %v1839 = vunpack.c.l.b16 %v1483
      %v1840 = vunpack.c.h.b16 %v1480
      %v1841 = vunpack.c.h.b16 %v1481
      %v1842 = vunpack.c.h.b16 %v1482
      %v1843 = vunpack.c.h.b16 %v1483
      %v1844 = vunpack.c.l.b16 %v1484
      %v1845 = vunpack.c.l.b16 %v1485
      %v1846 = vunpack.c.l.b16 %v1486
      %v1847 = vunpack.c.l.b16 %v1487
      %v1848 = vunpack.c.h.b16 %v1484
      %v1849 = vunpack.c.h.b16 %v1485
      %v1850 = vunpack.c.h.b16 %v1486
      %v1851 = vunpack.c.h.b16 %v1487
      %v1852 = vunpack.c.l.b16 %v1488
      %v1853 = vunpack.c.l.b16 %v1489
      %v1854 = vunpack.c.l.b16 %v1490
      %v1855 = vunpack.c.l.b16 %v1491
      %v1856 = vunpack.c.h.b16 %v1488
      %v1857 = vunpack.c.h.b16 %v1489
      %v1858 = vunpack.c.h.b16 %v1490
      %v1859 = vunpack.c.h.b16 %v1491
      %v1860 = vunpack.c.l.b16 %v1492
      %v1861 = vunpack.c.l.b16 %v1493
      %v1862 = vunpack.c.l.b16 %v1494
      %v1863 = vunpack.c.l.b16 %v1495
      %v1864 = vunpack.c.h.b16 %v1492
      %v1865 = vunpack.c.h.b16 %v1493
      %v1866 = vunpack.c.h.b16 %v1494
      %v1867 = vunpack.c.h.b16 %v1495
      %v1868 = vunpack.c.l.b16 %v1496
      %v1869 = vunpack.c.l.b16 %v1497
      %v1870 = vunpack.c.l.b16 %v1498
      %v1871 = vunpack.c.l.b16 %v1499
      %v1872 = vunpack.c.h.b16 %v1496
      %v1873 = vunpack.c.h.b16 %v1497
      %v1874 = vunpack.c.h.b16 %v1498
      %v1875 = vunpack.c.h.b16 %v1499
      %v1876 = vunpack.c.l.b16 %v1500
      %v1877 = vunpack.c.l.b16 %v1501
      %v1878 = vunpack.c.l.b16 %v1502
      %v1879 = vunpack.c.l.b16 %v1503
      %v1880 = vunpack.c.h.b16 %v1500
      %v1881 = vunpack.c.h.b16 %v1501
      %v1882 = vunpack.c.h.b16 %v1502
      %v1883 = vunpack.c.h.b16 %v1503
      %v1884 = vunpack.c.l.b16 %v1504
      %v1885 = vunpack.c.l.b16 %v1505
      %v1886 = vunpack.c.l.b16 %v1506
      %v1887 = vunpack.c.l.b16 %v1507
      %v1888 = vunpack.c.h.b16 %v1504
      %v1889 = vunpack.c.h.b16 %v1505
      %v1890 = vunpack.c.h.b16 %v1506
      %v1891 = vunpack.c.h.b16 %v1507
      %v1892 = vpack.c.b16 %v1637, %v1636
      %v1893 = vpack.c.b16 %v1639, %v1638
      %v1894 = vpack.c.b16 %v1641, %v1640
      %v1895 = vpack.c.b16 %v1643, %v1642
      %v1896 = vpack.c.b16 %v1645, %v1644
      %v1897 = vpack.c.b16 %v1647, %v1646
      %v1898 = vpack.c.b16 %v1649, %v1648
      %v1899 = vpack.c.b16 %v1651, %v1650
      %v1900 = vpack.c.b16 %v1653, %v1652
      %v1901 = vpack.c.b16 %v1655, %v1654
      %v1902 = vpack.c.b16 %v1657, %v1656
      %v1903 = vpack.c.b16 %v1659, %v1658
      %v1904 = vpack.c.b16 %v1661, %v1660
      %v1905 = vpack.c.b16 %v1663, %v1662
      %v1906 = vpack.c.b16 %v1665, %v1664
      %v1907 = vpack.c.b16 %v1667, %v1666
      %v1908 = vpack.c.b16 %v1669, %v1668
      %v1909 = vpack.c.b16 %v1671, %v1670
      %v1910 = vpack.c.b16 %v1673, %v1672
      %v1911 = vpack.c.b16 %v1675, %v1674
      %v1912 = vpack.c.b16 %v1677, %v1676
      %v1913 = vpack.c.b16 %v1679, %v1678
      %v1914 = vpack.c.b16 %v1681, %v1680
      %v1915 = vpack.c.b16 %v1683, %v1682
      %v1916 = vpack.c.b16 %v1685, %v1684
      %v1917 = vpack.c.b16 %v1687, %v1686
      %v1918 = vpack.c.b16 %v1689, %v1688
      %v1919 = vpack.c.b16 %v1691, %v1690
      %v1920 = vpack.c.b16 %v1693, %v1692
      %v1921 = vpack.c.b16 %v1695, %v1694
      %v1922 = vpack.c.b16 %v1697, %v1696
      %v1923 = vpack.c.b16 %v1699, %v1698
      %v1924 = vpack.c.b16 %v1701, %v1700
      %v1925 = vpack.c.b16 %v1703, %v1702
      %v1926 = vpack.c.b16 %v1705, %v1704
      %v1927 = vpack.c.b16 %v1707, %v1706
      %v1928 = vpack.c.b16 %v1709, %v1708
      %v1929 = vpack.c.b16 %v1711, %v1710
      %v1930 = vpack.c.b16 %v1713, %v1712
      %v1931 = vpack.c.b16 %v1715, %v1714
      %v1932 = vpack.c.b16 %v1717, %v1716
      %v1933 = vpack.c.b16 %v1719, %v1718
      %v1934 = vpack.c.b16 %v1721, %v1720
      %v1935 = vpack.c.b16 %v1723, %v1722
      %v1936 = vpack.c.b16 %v1725, %v1724
      %v1937 = vpack.c.b16 %v1727, %v1726
      %v1938 = vpack.c.b16 %v1729, %v1728
      %v1939 = vpack.c.b16 %v1731, %v1730
      %v1940 = vpack.c.b16 %v1733, %v1732
      %v1941 = vpack.c.b16 %v1735, %v1734
      %v1942 = vpack.c.b16 %v1737, %v1736
      %v1943 = vpack.c.b16 %v1739, %v1738
      %v1944 = vpack.c.b16 %v1741, %v1740
      %v1945 = vpack.c.b16 %v1743, %v1742
      %v1946 = vpack.c.b16 %v1745, %v1744
      %v1947 = vpack.c.b16 %v1747, %v1746
      %v1948 = vpack.c.b16 %v1749, %v1748
      %v1949 = vpack.c.b16 %v1751, %v1750
      %v1950 = vpack.c.b16 %v1753, %v1752
      %v1951 = vpack.c.b16 %v1755, %v1754
      %v1952 = vpack.c.b16 %v1757, %v1756
      %v1953 = vpack.c.b16 %v1759, %v1758
      %v1954 = vpack.c.b16 %v1761, %v1760
      %v1955 = vpack.c.b16 %v1763, %v1762
      %v1956 = vpack.c.b16 %v1765, %v1764
      %v1957 = vpack.c.b16 %v1767, %v1766
      %v1958 = vpack.c.b16 %v1769, %v1768
      %v1959 = vpack.c.b16 %v1771, %v1770
      %v1960 = vpack.c.b16 %v1773, %v1772
      %v1961 = vpack.c.b16 %v1775, %v1774
      %v1962 = vpack.c.b16 %v1777, %v1776
      %v1963 = vpack.c.b16 %v1779, %v1778
      %v1964 = vpack.c.b16 %v1781, %v1780
      %v1965 = vpack.c.b16 %v1783, %v1782
      %v1966 = vpack.c.b16 %v1785, %v1784
      %v1967 = vpack.c.b16 %v1787, %v1786
      %v1968 = vpack.c.b16 %v1789, %v1788
      %v1969 = vpack.c.b16 %v1791, %v1790
      %v1970 = vpack.c.b16 %v1793, %v1792
      %v1971 = vpack.c.b16 %v1795, %v1794
      %v1972 = vpack.c.b16 %v1797, %v1796
      %v1973 = vpack.c.b16 %v1799, %v1798
      %v1974 = vpack.c.b16 %v1801, %v1800
      %v1975 = vpack.c.b16 %v1803, %v1802
      %v1976 = vpack.c.b16 %v1805, %v1804
      %v1977 = vpack.c.b16 %v1807, %v1806
      %v1978 = vpack.c.b16 %v1809, %v1808
      %v1979 = vpack.c.b16 %v1811, %v1810
      %v1980 = vpack.c.b16 %v1813, %v1812
      %v1981 = vpack.c.b16 %v1815, %v1814
      %v1982 = vpack.c.b16 %v1817, %v1816
      %v1983 = vpack.c.b16 %v1819, %v1818
      %v1984 = vpack.c.b16 %v1821, %v1820
      %v1985 = vpack.c.b16 %v1823, %v1822
      %v1986 = vpack.c.b16 %v1825, %v1824
      %v1987 = vpack.c.b16 %v1827, %v1826
      %v1988 = vpack.c.b16 %v1829, %v1828
      %v1989 = vpack.c.b16 %v1831, %v1830
      %v1990 = vpack.c.b16 %v1833, %v1832
      %v1991 = vpack.c.b16 %v1835, %v1834
      %v1992 = vpack.c.b16 %v1837, %v1836
      %v1993 = vpack.c.b16 %v1839, %v1838
      %v1994 = vpack.c.b16 %v1841, %v1840
      %v1995 = vpack.c.b16 %v1843, %v1842
      %v1996 = vpack.c.b16 %v1845, %v1844
      %v1997 = vpack.c.b16 %v1847, %v1846
      %v1998 = vpack.c.b16 %v1849, %v1848
      %v1999 = vpack.c.b16 %v1851, %v1850
      %v2000 = vpack.c.b16 %v1853, %v1852
      %v2001 = vpack.c.b16 %v1855, %v1854
      %v2002 = vpack.c.b16 %v1857, %v1856
      %v2003 = vpack.c.b16 %v1859, %v1858
      %v2004 = vpack.c.b16 %v1861, %v1860
      %v2005 = vpack.c.b16 %v1863, %v1862
      %v2006 = vpack.c.b16 %v1865, %v1864
      %v2007 = vpack.c.b16 %v1867, %v1866
      %v2008 = vpack.c.b16 %v1869, %v1868
      %v2009 = vpack.c.b16 %v1871, %v1870
      %v2010 = vpack.c.b16 %v1873, %v1872
      %v2011 = vpack.c.b16 %v1875, %v1874
      %v2012 = vpack.c.b16 %v1877, %v1876
      %v2013 = vpack.c.b16 %v1879, %v1878
      %v2014 = vpack.c.b16 %v1881, %v1880
      %v2015 = vpack.c.b16 %v1883, %v1882
      %v2016 = vpack.c.b16 %v1885, %v1884
      %v2017 = vpack.c.b16 %v1887, %v1886
      %v2018 = vpack.c.b16 %v1889, %v1888
      %v2019 = vpack.c.b16 %v1891, %v1890
      %2148 = vst [vmem:[#allocation6] sm:$0xff] %v1892
      %2149 = vst [vmem:[#allocation6 + $0x8] sm:$0xff] %v1893
      %2150 = vst [vmem:[#allocation6 + $0x10] sm:$0xff] %v1894
      %2151 = vst [vmem:[#allocation6 + $0x18] sm:$0xff] %v1895
      %2152 = vst [vmem:[#allocation6 + $0x20] sm:$0xff] %v1896
      %2153 = vst [vmem:[#allocation6 + $0x28] sm:$0xff] %v1897
      %2154 = vst [vmem:[#allocation6 + $0x30] sm:$0xff] %v1898
      %2155 = vst [vmem:[#allocation6 + $0x38] sm:$0xff] %v1899
      %2156 = vst [vmem:[#allocation6 + $0x40] sm:$0xff] %v1900
      %2157 = vst [vmem:[#allocation6 + $0x48] sm:$0xff] %v1901
      %2158 = vst [vmem:[#allocation6 + $0x50] sm:$0xff] %v1902
      %2159 = vst [vmem:[#allocation6 + $0x58] sm:$0xff] %v1903
      %2160 = vst [vmem:[#allocation6 + $0x60] sm:$0xff] %v1904
      %2161 = vst [vmem:[#allocation6 + $0x68] sm:$0xff] %v1905
      %2162 = vst [vmem:[#allocation6 + $0x70] sm:$0xff] %v1906
      %2163 = vst [vmem:[#allocation6 + $0x78] sm:$0xff] %v1907
      %2164 = vst [vmem:[#allocation6 + $0x80] sm:$0xff] %v1908
      %2165 = vst [vmem:[#allocation6 + $0x88] sm:$0xff] %v1909
      %2166 = vst [vmem:[#allocation6 + $0x90] sm:$0xff] %v1910
      %2167 = vst [vmem:[#allocation6 + $0x98] sm:$0xff] %v1911
      %2168 = vst [vmem:[#allocation6 + $0xa0] sm:$0xff] %v1912
      %2169 = vst [vmem:[#allocation6 + $0xa8] sm:$0xff] %v1913
      %2170 = vst [vmem:[#allocation6 + $0xb0] sm:$0xff] %v1914
      %2171 = vst [vmem:[#allocation6 + $0xb8] sm:$0xff] %v1915
      %2172 = vst [vmem:[#allocation6 + $0xc0] sm:$0xff] %v1916
      %2173 = vst [vmem:[#allocation6 + $0xc8] sm:$0xff] %v1917
      %2174 = vst [vmem:[#allocation6 + $0xd0] sm:$0xff] %v1918
      %2175 = vst [vmem:[#allocation6 + $0xd8] sm:$0xff] %v1919
      %2176 = vst [vmem:[#allocation6 + $0xe0] sm:$0xff] %v1920
      %2177 = vst [vmem:[#allocation6 + $0xe8] sm:$0xff] %v1921
      %2178 = vst [vmem:[#allocation6 + $0xf0] sm:$0xff] %v1922
      %2179 = vst [vmem:[#allocation6 + $0xf8] sm:$0xff] %v1923
      %2180 = vst [vmem:[#allocation6 + $0x100] sm:$0xff] %v1924
      %2181 = vst [vmem:[#allocation6 + $0x108] sm:$0xff] %v1925
      %2182 = vst [vmem:[#allocation6 + $0x110] sm:$0xff] %v1926
      %2183 = vst [vmem:[#allocation6 + $0x118] sm:$0xff] %v1927
      %2184 = vst [vmem:[#allocation6 + $0x120] sm:$0xff] %v1928
      %2185 = vst [vmem:[#allocation6 + $0x128] sm:$0xff] %v1929
      %2186 = vst [vmem:[#allocation6 + $0x130] sm:$0xff] %v1930
      %2187 = vst [vmem:[#allocation6 + $0x138] sm:$0xff] %v1931
      %2188 = vst [vmem:[#allocation6 + $0x140] sm:$0xff] %v1932
      %2189 = vst [vmem:[#allocation6 + $0x148] sm:$0xff] %v1933
      %2190 = vst [vmem:[#allocation6 + $0x150] sm:$0xff] %v1934
      %2191 = vst [vmem:[#allocation6 + $0x158] sm:$0xff] %v1935
      %2192 = vst [vmem:[#allocation6 + $0x160] sm:$0xff] %v1936
      %2193 = vst [vmem:[#allocation6 + $0x168] sm:$0xff] %v1937
      %2194 = vst [vmem:[#allocation6 + $0x170] sm:$0xff] %v1938
      %2195 = vst [vmem:[#allocation6 + $0x178] sm:$0xff] %v1939
      %2196 = vst [vmem:[#allocation6 + $0x180] sm:$0xff] %v1940
      %2197 = vst [vmem:[#allocation6 + $0x188] sm:$0xff] %v1941
      %2198 = vst [vmem:[#allocation6 + $0x190] sm:$0xff] %v1942
      %2199 = vst [vmem:[#allocation6 + $0x198] sm:$0xff] %v1943
      %2200 = vst [vmem:[#allocation6 + $0x1a0] sm:$0xff] %v1944
      %2201 = vst [vmem:[#allocation6 + $0x1a8] sm:$0xff] %v1945
      %2202 = vst [vmem:[#allocation6 + $0x1b0] sm:$0xff] %v1946
      %2203 = vst [vmem:[#allocation6 + $0x1b8] sm:$0xff] %v1947
      %2204 = vst [vmem:[#allocation6 + $0x1c0] sm:$0xff] %v1948
      %2205 = vst [vmem:[#allocation6 + $0x1c8] sm:$0xff] %v1949
      %2206 = vst [vmem:[#allocation6 + $0x1d0] sm:$0xff] %v1950
      %2207 = vst [vmem:[#allocation6 + $0x1d8] sm:$0xff] %v1951
      %2208 = vst [vmem:[#allocation6 + $0x1e0] sm:$0xff] %v1952
      %2209 = vst [vmem:[#allocation6 + $0x1e8] sm:$0xff] %v1953
      %2210 = vst [vmem:[#allocation6 + $0x1f0] sm:$0xff] %v1954
      %2211 = vst [vmem:[#allocation6 + $0x1f8] sm:$0xff] %v1955
      %2212 = vst [vmem:[#allocation6 + $0x200] sm:$0xff] %v1956
      %2213 = vst [vmem:[#allocation6 + $0x208] sm:$0xff] %v1957
      %2214 = vst [vmem:[#allocation6 + $0x210] sm:$0xff] %v1958
      %2215 = vst [vmem:[#allocation6 + $0x218] sm:$0xff] %v1959
      %2216 = vst [vmem:[#allocation6 + $0x220] sm:$0xff] %v1960
      %2217 = vst [vmem:[#allocation6 + $0x228] sm:$0xff] %v1961
      %2218 = vst [vmem:[#allocation6 + $0x230] sm:$0xff] %v1962
      %2219 = vst [vmem:[#allocation6 + $0x238] sm:$0xff] %v1963
      %2220 = vst [vmem:[#allocation6 + $0x240] sm:$0xff] %v1964
      %2221 = vst [vmem:[#allocation6 + $0x248] sm:$0xff] %v1965
      %2222 = vst [vmem:[#allocation6 + $0x250] sm:$0xff] %v1966
      %2223 = vst [vmem:[#allocation6 + $0x258] sm:$0xff] %v1967
      %2224 = vst [vmem:[#allocation6 + $0x260] sm:$0xff] %v1968
      %2225 = vst [vmem:[#allocation6 + $0x268] sm:$0xff] %v1969
      %2226 = vst [vmem:[#allocation6 + $0x270] sm:$0xff] %v1970
      %2227 = vst [vmem:[#allocation6 + $0x278] sm:$0xff] %v1971
      %2228 = vst [vmem:[#allocation6 + $0x280] sm:$0xff] %v1972
      %2229 = vst [vmem:[#allocation6 + $0x288] sm:$0xff] %v1973
      %2230 = vst [vmem:[#allocation6 + $0x290] sm:$0xff] %v1974
      %2231 = vst [vmem:[#allocation6 + $0x298] sm:$0xff] %v1975
      %2232 = vst [vmem:[#allocation6 + $0x2a0] sm:$0xff] %v1976
      %2233 = vst [vmem:[#allocation6 + $0x2a8] sm:$0xff] %v1977
      %2234 = vst [vmem:[#allocation6 + $0x2b0] sm:$0xff] %v1978
      %2235 = vst [vmem:[#allocation6 + $0x2b8] sm:$0xff] %v1979
      %2236 = vst [vmem:[#allocation6 + $0x2c0] sm:$0xff] %v1980
      %2237 = vst [vmem:[#allocation6 + $0x2c8] sm:$0xff] %v1981
      %2238 = vst [vmem:[#allocation6 + $0x2d0] sm:$0xff] %v1982
      %2239 = vst [vmem:[#allocation6 + $0x2d8] sm:$0xff] %v1983
      %2240 = vst [vmem:[#allocation6 + $0x2e0] sm:$0xff] %v1984
      %2241 = vst [vmem:[#allocation6 + $0x2e8] sm:$0xff] %v1985
      %2242 = vst [vmem:[#allocation6 + $0x2f0] sm:$0xff] %v1986
      %2243 = vst [vmem:[#allocation6 + $0x2f8] sm:$0xff] %v1987
      %2244 = vst [vmem:[#allocation6 + $0x300] sm:$0xff] %v1988
      %2245 = vst [vmem:[#allocation6 + $0x308] sm:$0xff] %v1989
      %2246 = vst [vmem:[#allocation6 + $0x310] sm:$0xff] %v1990
      %2247 = vst [vmem:[#allocation6 + $0x318] sm:$0xff] %v1991
      %2248 = vst [vmem:[#allocation6 + $0x320] sm:$0xff] %v1992
      %2249 = vst [vmem:[#allocation6 + $0x328] sm:$0xff] %v1993
      %2250 = vst [vmem:[#allocation6 + $0x330] sm:$0xff] %v1994
      %2251 = vst [vmem:[#allocation6 + $0x338] sm:$0xff] %v1995
      %2252 = vst [vmem:[#allocation6 + $0x340] sm:$0xff] %v1996
      %2253 = vst [vmem:[#allocation6 + $0x348] sm:$0xff] %v1997
      %2254 = vst [vmem:[#allocation6 + $0x350] sm:$0xff] %v1998
      %2255 = vst [vmem:[#allocation6 + $0x358] sm:$0xff] %v1999
      %2256 = vst [vmem:[#allocation6 + $0x360] sm:$0xff] %v2000
      %2257 = vst [vmem:[#allocation6 + $0x368] sm:$0xff] %v2001
      %2258 = vst [vmem:[#allocation6 + $0x370] sm:$0xff] %v2002
      %2259 = vst [vmem:[#allocation6 + $0x378] sm:$0xff] %v2003
      %2260 = vst [vmem:[#allocation6 + $0x380] sm:$0xff] %v2004
      %2261 = vst [vmem:[#allocation6 + $0x388] sm:$0xff] %v2005
      %2262 = vst [vmem:[#allocation6 + $0x390] sm:$0xff] %v2006
      %2263 = vst [vmem:[#allocation6 + $0x398] sm:$0xff] %v2007
      %2264 = vst [vmem:[#allocation6 + $0x3a0] sm:$0xff] %v2008
      %2265 = vst [vmem:[#allocation6 + $0x3a8] sm:$0xff] %v2009
      %2266 = vst [vmem:[#allocation6 + $0x3b0] sm:$0xff] %v2010
      %2267 = vst [vmem:[#allocation6 + $0x3b8] sm:$0xff] %v2011
      %2268 = vst [vmem:[#allocation6 + $0x3c0] sm:$0xff] %v2012
      %2269 = vst [vmem:[#allocation6 + $0x3c8] sm:$0xff] %v2013
      %2270 = vst [vmem:[#allocation6 + $0x3d0] sm:$0xff] %v2014
      %2271 = vst [vmem:[#allocation6 + $0x3d8] sm:$0xff] %v2015
      %2272 = vst [vmem:[#allocation6 + $0x3e0] sm:$0xff] %v2016
      %2273 = vst [vmem:[#allocation6 + $0x3e8] sm:$0xff] %v2017
      %2274 = vst [vmem:[#allocation6 + $0x3f0] sm:$0xff] %v2018
      %2275 = vst [vmem:[#allocation6 + $0x3f8] sm:$0xff] %v2019
    $region13: #{tpu_custom_call.1} parent=1 // pred_fallthru
      _
    %p2276 = scmp.ne.s32.totalorder 0, 0
    // Predicated region
    $region14: #{tpu_custom_call.1} parent=1 // pred_check
      %p2277 = pneg %p2276
    $region15: #{tpu_custom_call.1} parent=1 // pred_check_branch
      %2279 = sbr.rel (%p2277) target = $region17
    $region16: #{tpu_custom_call.1} parent=1 // pred_region
      %v2280 = vpack.c.bf16 %v30, %v26
      %v2281 = vpack.c.bf16 %v31, %v27
      %v2282 = vpack.c.bf16 %v32, %v28
      %v2283 = vpack.c.bf16 %v33, %v29
      %v2284 = vpack.c.bf16 %v38, %v34
      %v2285 = vpack.c.bf16 %v39, %v35
      %v2286 = vpack.c.bf16 %v40, %v36
      %v2287 = vpack.c.bf16 %v41, %v37
      %v2288 = vpack.c.bf16 %v46, %v42
      %v2289 = vpack.c.bf16 %v47, %v43
      %v2290 = vpack.c.bf16 %v48, %v44
      %v2291 = vpack.c.bf16 %v49, %v45
      %v2292 = vpack.c.bf16 %v54, %v50
      %v2293 = vpack.c.bf16 %v55, %v51
      %v2294 = vpack.c.bf16 %v56, %v52
      %v2295 = vpack.c.bf16 %v57, %v53
      %v2296 = vpack.c.bf16 %v62, %v58
      %v2297 = vpack.c.bf16 %v63, %v59
      %v2298 = vpack.c.bf16 %v64, %v60
      %v2299 = vpack.c.bf16 %v65, %v61
      %v2300 = vpack.c.bf16 %v70, %v66
      %v2301 = vpack.c.bf16 %v71, %v67
      %v2302 = vpack.c.bf16 %v72, %v68
      %v2303 = vpack.c.bf16 %v73, %v69
      %v2304 = vpack.c.bf16 %v78, %v74
      %v2305 = vpack.c.bf16 %v79, %v75
      %v2306 = vpack.c.bf16 %v80, %v76
      %v2307 = vpack.c.bf16 %v81, %v77
      %v2308 = vpack.c.bf16 %v86, %v82
      %v2309 = vpack.c.bf16 %v87, %v83
      %v2310 = vpack.c.bf16 %v88, %v84
      %v2311 = vpack.c.bf16 %v89, %v85
      %v2312 = vpack.c.bf16 %v94, %v90
      %v2313 = vpack.c.bf16 %v95, %v91
      %v2314 = vpack.c.bf16 %v96, %v92
      %v2315 = vpack.c.bf16 %v97, %v93
      %v2316 = vpack.c.bf16 %v102, %v98
      %v2317 = vpack.c.bf16 %v103, %v99
      %v2318 = vpack.c.bf16 %v104, %v100
      %v2319 = vpack.c.bf16 %v105, %v101
      %v2320 = vpack.c.bf16 %v110, %v106
      %v2321 = vpack.c.bf16 %v111, %v107
      %v2322 = vpack.c.bf16 %v112, %v108
      %v2323 = vpack.c.bf16 %v113, %v109
      %v2324 = vpack.c.bf16 %v118, %v114
      %v2325 = vpack.c.bf16 %v119, %v115
      %v2326 = vpack.c.bf16 %v120, %v116
      %v2327 = vpack.c.bf16 %v121, %v117
      %v2328 = vpack.c.bf16 %v126, %v122
      %v2329 = vpack.c.bf16 %v127, %v123
      %v2330 = vpack.c.bf16 %v128, %v124
      %v2331 = vpack.c.bf16 %v129, %v125
      %v2332 = vpack.c.bf16 %v134, %v130
      %v2333 = vpack.c.bf16 %v135, %v131
      %v2334 = vpack.c.bf16 %v136, %v132
      %v2335 = vpack.c.bf16 %v137, %v133
      %v2336 = vpack.c.bf16 %v142, %v138
      %v2337 = vpack.c.bf16 %v143, %v139
      %v2338 = vpack.c.bf16 %v144, %v140
      %v2339 = vpack.c.bf16 %v145, %v141
      %v2340 = vpack.c.bf16 %v150, %v146
      %v2341 = vpack.c.bf16 %v151, %v147
      %v2342 = vpack.c.bf16 %v152, %v148
      %v2343 = vpack.c.bf16 %v153, %v149
      %v2344 = vpack.c.bf16 %v158, %v154
      %v2345 = vpack.c.bf16 %v159, %v155
      %v2346 = vpack.c.bf16 %v160, %v156
      %v2347 = vpack.c.bf16 %v161, %v157
      %v2348 = vpack.c.bf16 %v166, %v162
      %v2349 = vpack.c.bf16 %v167, %v163
      %v2350 = vpack.c.bf16 %v168, %v164
      %v2351 = vpack.c.bf16 %v169, %v165
      %v2352 = vpack.c.bf16 %v174, %v170
      %v2353 = vpack.c.bf16 %v175, %v171
      %v2354 = vpack.c.bf16 %v176, %v172
      %v2355 = vpack.c.bf16 %v177, %v173
      %v2356 = vpack.c.bf16 %v182, %v178
      %v2357 = vpack.c.bf16 %v183, %v179
      %v2358 = vpack.c.bf16 %v184, %v180
      %v2359 = vpack.c.bf16 %v185, %v181
      %v2360 = vpack.c.bf16 %v190, %v186
      %v2361 = vpack.c.bf16 %v191, %v187
      %v2362 = vpack.c.bf16 %v192, %v188
      %v2363 = vpack.c.bf16 %v193, %v189
      %v2364 = vpack.c.bf16 %v198, %v194
      %v2365 = vpack.c.bf16 %v199, %v195
      %v2366 = vpack.c.bf16 %v200, %v196
      %v2367 = vpack.c.bf16 %v201, %v197
      %v2368 = vpack.c.bf16 %v206, %v202
      %v2369 = vpack.c.bf16 %v207, %v203
      %v2370 = vpack.c.bf16 %v208, %v204
      %v2371 = vpack.c.bf16 %v209, %v205
      %v2372 = vpack.c.bf16 %v214, %v210
      %v2373 = vpack.c.bf16 %v215, %v211
      %v2374 = vpack.c.bf16 %v216, %v212
      %v2375 = vpack.c.bf16 %v217, %v213
      %v2376 = vpack.c.bf16 %v222, %v218
      %v2377 = vpack.c.bf16 %v223, %v219
      %v2378 = vpack.c.bf16 %v224, %v220
      %v2379 = vpack.c.bf16 %v225, %v221
      %v2380 = vpack.c.bf16 %v230, %v226
      %v2381 = vpack.c.bf16 %v231, %v227
      %v2382 = vpack.c.bf16 %v232, %v228
      %v2383 = vpack.c.bf16 %v233, %v229
      %v2384 = vpack.c.bf16 %v238, %v234
      %v2385 = vpack.c.bf16 %v239, %v235
      %v2386 = vpack.c.bf16 %v240, %v236
      %v2387 = vpack.c.bf16 %v241, %v237
      %v2388 = vpack.c.bf16 %v246, %v242
      %v2389 = vpack.c.bf16 %v247, %v243
      %v2390 = vpack.c.bf16 %v248, %v244
      %v2391 = vpack.c.bf16 %v249, %v245
      %v2392 = vpack.c.bf16 %v254, %v250
      %v2393 = vpack.c.bf16 %v255, %v251
      %v2394 = vpack.c.bf16 %v256, %v252
      %v2395 = vpack.c.bf16 %v257, %v253
      %v2396 = vpack.c.bf16 %v262, %v258
      %v2397 = vpack.c.bf16 %v263, %v259
      %v2398 = vpack.c.bf16 %v264, %v260
      %v2399 = vpack.c.bf16 %v265, %v261
      %v2400 = vpack.c.bf16 %v270, %v266
      %v2401 = vpack.c.bf16 %v271, %v267
      %v2402 = vpack.c.bf16 %v272, %v268
      %v2403 = vpack.c.bf16 %v273, %v269
      %v2404 = vpack.c.bf16 %v278, %v274
      %v2405 = vpack.c.bf16 %v279, %v275
      %v2406 = vpack.c.bf16 %v280, %v276
      %v2407 = vpack.c.bf16 %v281, %v277
      %v2536 = vunpack.c.l.b16 %v2280
      %v2537 = vunpack.c.l.b16 %v2281
      %v2538 = vunpack.c.l.b16 %v2282
      %v2539 = vunpack.c.l.b16 %v2283
      %v2540 = vunpack.c.h.b16 %v2280
      %v2541 = vunpack.c.h.b16 %v2281
      %v2542 = vunpack.c.h.b16 %v2282
      %v2543 = vunpack.c.h.b16 %v2283
      %v2544 = vunpack.c.l.b16 %v2284
      %v2545 = vunpack.c.l.b16 %v2285
      %v2546 = vunpack.c.l.b16 %v2286
      %v2547 = vunpack.c.l.b16 %v2287
      %v2548 = vunpack.c.h.b16 %v2284
      %v2549 = vunpack.c.h.b16 %v2285
      %v2550 = vunpack.c.h.b16 %v2286
      %v2551 = vunpack.c.h.b16 %v2287
      %v2552 = vunpack.c.l.b16 %v2288
      %v2553 = vunpack.c.l.b16 %v2289
      %v2554 = vunpack.c.l.b16 %v2290
      %v2555 = vunpack.c.l.b16 %v2291
      %v2556 = vunpack.c.h.b16 %v2288
      %v2557 = vunpack.c.h.b16 %v2289
      %v2558 = vunpack.c.h.b16 %v2290
      %v2559 = vunpack.c.h.b16 %v2291
      %v2560 = vunpack.c.l.b16 %v2292
      %v2561 = vunpack.c.l.b16 %v2293
      %v2562 = vunpack.c.l.b16 %v2294
      %v2563 = vunpack.c.l.b16 %v2295
      %v2564 = vunpack.c.h.b16 %v2292
      %v2565 = vunpack.c.h.b16 %v2293
      %v2566 = vunpack.c.h.b16 %v2294
      %v2567 = vunpack.c.h.b16 %v2295
      %v2568 = vunpack.c.l.b16 %v2296
      %v2569 = vunpack.c.l.b16 %v2297
      %v2570 = vunpack.c.l.b16 %v2298
      %v2571 = vunpack.c.l.b16 %v2299
      %v2572 = vunpack.c.h.b16 %v2296
      %v2573 = vunpack.c.h.b16 %v2297
      %v2574 = vunpack.c.h.b16 %v2298
      %v2575 = vunpack.c.h.b16 %v2299
      %v2576 = vunpack.c.l.b16 %v2300
      %v2577 = vunpack.c.l.b16 %v2301
      %v2578 = vunpack.c.l.b16 %v2302
      %v2579 = vunpack.c.l.b16 %v2303
      %v2580 = vunpack.c.h.b16 %v2300
      %v2581 = vunpack.c.h.b16 %v2301
      %v2582 = vunpack.c.h.b16 %v2302
      %v2583 = vunpack.c.h.b16 %v2303
      %v2584 = vunpack.c.l.b16 %v2304
      %v2585 = vunpack.c.l.b16 %v2305
      %v2586 = vunpack.c.l.b16 %v2306
      %v2587 = vunpack.c.l.b16 %v2307
      %v2588 = vunpack.c.h.b16 %v2304
      %v2589 = vunpack.c.h.b16 %v2305
      %v2590 = vunpack.c.h.b16 %v2306
      %v2591 = vunpack.c.h.b16 %v2307
      %v2592 = vunpack.c.l.b16 %v2308
      %v2593 = vunpack.c.l.b16 %v2309
      %v2594 = vunpack.c.l.b16 %v2310
      %v2595 = vunpack.c.l.b16 %v2311
      %v2596 = vunpack.c.h.b16 %v2308
      %v2597 = vunpack.c.h.b16 %v2309
      %v2598 = vunpack.c.h.b16 %v2310
      %v2599 = vunpack.c.h.b16 %v2311
      %v2600 = vunpack.c.l.b16 %v2312
      %v2601 = vunpack.c.l.b16 %v2313
      %v2602 = vunpack.c.l.b16 %v2314
      %v2603 = vunpack.c.l.b16 %v2315
      %v2604 = vunpack.c.h.b16 %v2312
      %v2605 = vunpack.c.h.b16 %v2313
      %v2606 = vunpack.c.h.b16 %v2314
      %v2607 = vunpack.c.h.b16 %v2315
      %v2608 = vunpack.c.l.b16 %v2316
      %v2609 = vunpack.c.l.b16 %v2317
      %v2610 = vunpack.c.l.b16 %v2318
      %v2611 = vunpack.c.l.b16 %v2319
      %v2612 = vunpack.c.h.b16 %v2316
      %v2613 = vunpack.c.h.b16 %v2317
      %v2614 = vunpack.c.h.b16 %v2318
      %v2615 = vunpack.c.h.b16 %v2319
      %v2616 = vunpack.c.l.b16 %v2320
      %v2617 = vunpack.c.l.b16 %v2321
      %v2618 = vunpack.c.l.b16 %v2322
      %v2619 = vunpack.c.l.b16 %v2323
      %v2620 = vunpack.c.h.b16 %v2320
      %v2621 = vunpack.c.h.b16 %v2321
      %v2622 = vunpack.c.h.b16 %v2322
      %v2623 = vunpack.c.h.b16 %v2323
      %v2624 = vunpack.c.l.b16 %v2324
      %v2625 = vunpack.c.l.b16 %v2325
      %v2626 = vunpack.c.l.b16 %v2326
      %v2627 = vunpack.c.l.b16 %v2327
      %v2628 = vunpack.c.h.b16 %v2324
      %v2629 = vunpack.c.h.b16 %v2325
      %v2630 = vunpack.c.h.b16 %v2326
      %v2631 = vunpack.c.h.b16 %v2327
      %v2632 = vunpack.c.l.b16 %v2328
      %v2633 = vunpack.c.l.b16 %v2329
      %v2634 = vunpack.c.l.b16 %v2330
      %v2635 = vunpack.c.l.b16 %v2331
      %v2636 = vunpack.c.h.b16 %v2328
      %v2637 = vunpack.c.h.b16 %v2329
      %v2638 = vunpack.c.h.b16 %v2330
      %v2639 = vunpack.c.h.b16 %v2331
      %v2640 = vunpack.c.l.b16 %v2332
      %v2641 = vunpack.c.l.b16 %v2333
      %v2642 = vunpack.c.l.b16 %v2334
      %v2643 = vunpack.c.l.b16 %v2335
      %v2644 = vunpack.c.h.b16 %v2332
      %v2645 = vunpack.c.h.b16 %v2333
      %v2646 = vunpack.c.h.b16 %v2334
      %v2647 = vunpack.c.h.b16 %v2335
      %v2648 = vunpack.c.l.b16 %v2336
      %v2649 = vunpack.c.l.b16 %v2337
      %v2650 = vunpack.c.l.b16 %v2338
      %v2651 = vunpack.c.l.b16 %v2339
      %v2652 = vunpack.c.h.b16 %v2336
      %v2653 = vunpack.c.h.b16 %v2337
      %v2654 = vunpack.c.h.b16 %v2338
      %v2655 = vunpack.c.h.b16 %v2339
      %v2656 = vunpack.c.l.b16 %v2340
      %v2657 = vunpack.c.l.b16 %v2341
      %v2658 = vunpack.c.l.b16 %v2342
      %v2659 = vunpack.c.l.b16 %v2343
      %v2660 = vunpack.c.h.b16 %v2340
      %v2661 = vunpack.c.h.b16 %v2341
      %v2662 = vunpack.c.h.b16 %v2342
      %v2663 = vunpack.c.h.b16 %v2343
      %v2664 = vunpack.c.l.b16 %v2344
      %v2665 = vunpack.c.l.b16 %v2345
      %v2666 = vunpack.c.l.b16 %v2346
      %v2667 = vunpack.c.l.b16 %v2347
      %v2668 = vunpack.c.h.b16 %v2344
      %v2669 = vunpack.c.h.b16 %v2345
      %v2670 = vunpack.c.h.b16 %v2346
      %v2671 = vunpack.c.h.b16 %v2347
      %v2672 = vunpack.c.l.b16 %v2348
      %v2673 = vunpack.c.l.b16 %v2349
      %v2674 = vunpack.c.l.b16 %v2350
      %v2675 = vunpack.c.l.b16 %v2351
      %v2676 = vunpack.c.h.b16 %v2348
      %v2677 = vunpack.c.h.b16 %v2349
      %v2678 = vunpack.c.h.b16 %v2350
      %v2679 = vunpack.c.h.b16 %v2351
      %v2680 = vunpack.c.l.b16 %v2352
      %v2681 = vunpack.c.l.b16 %v2353
      %v2682 = vunpack.c.l.b16 %v2354
      %v2683 = vunpack.c.l.b16 %v2355
      %v2684 = vunpack.c.h.b16 %v2352
      %v2685 = vunpack.c.h.b16 %v2353
      %v2686 = vunpack.c.h.b16 %v2354
      %v2687 = vunpack.c.h.b16 %v2355
      %v2688 = vunpack.c.l.b16 %v2356
      %v2689 = vunpack.c.l.b16 %v2357
      %v2690 = vunpack.c.l.b16 %v2358
      %v2691 = vunpack.c.l.b16 %v2359
      %v2692 = vunpack.c.h.b16 %v2356
      %v2693 = vunpack.c.h.b16 %v2357
      %v2694 = vunpack.c.h.b16 %v2358
      %v2695 = vunpack.c.h.b16 %v2359
      %v2696 = vunpack.c.l.b16 %v2360
      %v2697 = vunpack.c.l.b16 %v2361
      %v2698 = vunpack.c.l.b16 %v2362
      %v2699 = vunpack.c.l.b16 %v2363
      %v2700 = vunpack.c.h.b16 %v2360
      %v2701 = vunpack.c.h.b16 %v2361
      %v2702 = vunpack.c.h.b16 %v2362
      %v2703 = vunpack.c.h.b16 %v2363
      %v2704 = vunpack.c.l.b16 %v2364
      %v2705 = vunpack.c.l.b16 %v2365
      %v2706 = vunpack.c.l.b16 %v2366
      %v2707 = vunpack.c.l.b16 %v2367
      %v2708 = vunpack.c.h.b16 %v2364
      %v2709 = vunpack.c.h.b16 %v2365
      %v2710 = vunpack.c.h.b16 %v2366
      %v2711 = vunpack.c.h.b16 %v2367
      %v2712 = vunpack.c.l.b16 %v2368
      %v2713 = vunpack.c.l.b16 %v2369
      %v2714 = vunpack.c.l.b16 %v2370
      %v2715 = vunpack.c.l.b16 %v2371
      %v2716 = vunpack.c.h.b16 %v2368
      %v2717 = vunpack.c.h.b16 %v2369
      %v2718 = vunpack.c.h.b16 %v2370
      %v2719 = vunpack.c.h.b16 %v2371
      %v2720 = vunpack.c.l.b16 %v2372
      %v2721 = vunpack.c.l.b16 %v2373
      %v2722 = vunpack.c.l.b16 %v2374
      %v2723 = vunpack.c.l.b16 %v2375
      %v2724 = vunpack.c.h.b16 %v2372
      %v2725 = vunpack.c.h.b16 %v2373
      %v2726 = vunpack.c.h.b16 %v2374
      %v2727 = vunpack.c.h.b16 %v2375
      %v2728 = vunpack.c.l.b16 %v2376
      %v2729 = vunpack.c.l.b16 %v2377
      %v2730 = vunpack.c.l.b16 %v2378
      %v2731 = vunpack.c.l.b16 %v2379
      %v2732 = vunpack.c.h.b16 %v2376
      %v2733 = vunpack.c.h.b16 %v2377
      %v2734 = vunpack.c.h.b16 %v2378
      %v2735 = vunpack.c.h.b16 %v2379
      %v2736 = vunpack.c.l.b16 %v2380
      %v2737 = vunpack.c.l.b16 %v2381
      %v2738 = vunpack.c.l.b16 %v2382
      %v2739 = vunpack.c.l.b16 %v2383
      %v2740 = vunpack.c.h.b16 %v2380
      %v2741 = vunpack.c.h.b16 %v2381
      %v2742 = vunpack.c.h.b16 %v2382
      %v2743 = vunpack.c.h.b16 %v2383
      %v2744 = vunpack.c.l.b16 %v2384
      %v2745 = vunpack.c.l.b16 %v2385
      %v2746 = vunpack.c.l.b16 %v2386
      %v2747 = vunpack.c.l.b16 %v2387
      %v2748 = vunpack.c.h.b16 %v2384
      %v2749 = vunpack.c.h.b16 %v2385
      %v2750 = vunpack.c.h.b16 %v2386
      %v2751 = vunpack.c.h.b16 %v2387
      %v2752 = vunpack.c.l.b16 %v2388
      %v2753 = vunpack.c.l.b16 %v2389
      %v2754 = vunpack.c.l.b16 %v2390
      %v2755 = vunpack.c.l.b16 %v2391
      %v2756 = vunpack.c.h.b16 %v2388
      %v2757 = vunpack.c.h.b16 %v2389
      %v2758 = vunpack.c.h.b16 %v2390
      %v2759 = vunpack.c.h.b16 %v2391
      %v2760 = vunpack.c.l.b16 %v2392
      %v2761 = vunpack.c.l.b16 %v2393
      %v2762 = vunpack.c.l.b16 %v2394
      %v2763 = vunpack.c.l.b16 %v2395
      %v2764 = vunpack.c.h.b16 %v2392
      %v2765 = vunpack.c.h.b16 %v2393
      %v2766 = vunpack.c.h.b16 %v2394
      %v2767 = vunpack.c.h.b16 %v2395
      %v2768 = vunpack.c.l.b16 %v2396
      %v2769 = vunpack.c.l.b16 %v2397
      %v2770 = vunpack.c.l.b16 %v2398
      %v2771 = vunpack.c.l.b16 %v2399
      %v2772 = vunpack.c.h.b16 %v2396
      %v2773 = vunpack.c.h.b16 %v2397
      %v2774 = vunpack.c.h.b16 %v2398
      %v2775 = vunpack.c.h.b16 %v2399
      %v2776 = vunpack.c.l.b16 %v2400
      %v2777 = vunpack.c.l.b16 %v2401
      %v2778 = vunpack.c.l.b16 %v2402
      %v2779 = vunpack.c.l.b16 %v2403
      %v2780 = vunpack.c.h.b16 %v2400
      %v2781 = vunpack.c.h.b16 %v2401
      %v2782 = vunpack.c.h.b16 %v2402
      %v2783 = vunpack.c.h.b16 %v2403
      %v2784 = vunpack.c.l.b16 %v2404
      %v2785 = vunpack.c.l.b16 %v2405
      %v2786 = vunpack.c.l.b16 %v2406
      %v2787 = vunpack.c.l.b16 %v2407
      %v2788 = vunpack.c.h.b16 %v2404
      %v2789 = vunpack.c.h.b16 %v2405
      %v2790 = vunpack.c.h.b16 %v2406
      %v2791 = vunpack.c.h.b16 %v2407
      %v2792 = vpack.c.b16 %v2537, %v2536
      %v2793 = vpack.c.b16 %v2539, %v2538
      %v2794 = vpack.c.b16 %v2541, %v2540
      %v2795 = vpack.c.b16 %v2543, %v2542
      %v2796 = vpack.c.b16 %v2545, %v2544
      %v2797 = vpack.c.b16 %v2547, %v2546
      %v2798 = vpack.c.b16 %v2549, %v2548
      %v2799 = vpack.c.b16 %v2551, %v2550
      %v2800 = vpack.c.b16 %v2553, %v2552
      %v2801 = vpack.c.b16 %v2555, %v2554
      %v2802 = vpack.c.b16 %v2557, %v2556
      %v2803 = vpack.c.b16 %v2559, %v2558
      %v2804 = vpack.c.b16 %v2561, %v2560
      %v2805 = vpack.c.b16 %v2563, %v2562
      %v2806 = vpack.c.b16 %v2565, %v2564
      %v2807 = vpack.c.b16 %v2567, %v2566
      %v2808 = vpack.c.b16 %v2569, %v2568
      %v2809 = vpack.c.b16 %v2571, %v2570
      %v2810 = vpack.c.b16 %v2573, %v2572
      %v2811 = vpack.c.b16 %v2575, %v2574
      %v2812 = vpack.c.b16 %v2577, %v2576
      %v2813 = vpack.c.b16 %v2579, %v2578
      %v2814 = vpack.c.b16 %v2581, %v2580
      %v2815 = vpack.c.b16 %v2583, %v2582
      %v2816 = vpack.c.b16 %v2585, %v2584
      %v2817 = vpack.c.b16 %v2587, %v2586
      %v2818 = vpack.c.b16 %v2589, %v2588
      %v2819 = vpack.c.b16 %v2591, %v2590
      %v2820 = vpack.c.b16 %v2593, %v2592
      %v2821 = vpack.c.b16 %v2595, %v2594
      %v2822 = vpack.c.b16 %v2597, %v2596
      %v2823 = vpack.c.b16 %v2599, %v2598
      %v2824 = vpack.c.b16 %v2601, %v2600
      %v2825 = vpack.c.b16 %v2603, %v2602
      %v2826 = vpack.c.b16 %v2605, %v2604
      %v2827 = vpack.c.b16 %v2607, %v2606
      %v2828 = vpack.c.b16 %v2609, %v2608
      %v2829 = vpack.c.b16 %v2611, %v2610
      %v2830 = vpack.c.b16 %v2613, %v2612
      %v2831 = vpack.c.b16 %v2615, %v2614
      %v2832 = vpack.c.b16 %v2617, %v2616
      %v2833 = vpack.c.b16 %v2619, %v2618
      %v2834 = vpack.c.b16 %v2621, %v2620
      %v2835 = vpack.c.b16 %v2623, %v2622
      %v2836 = vpack.c.b16 %v2625, %v2624
      %v2837 = vpack.c.b16 %v2627, %v2626
      %v2838 = vpack.c.b16 %v2629, %v2628
      %v2839 = vpack.c.b16 %v2631, %v2630
      %v2840 = vpack.c.b16 %v2633, %v2632
      %v2841 = vpack.c.b16 %v2635, %v2634
      %v2842 = vpack.c.b16 %v2637, %v2636
      %v2843 = vpack.c.b16 %v2639, %v2638
      %v2844 = vpack.c.b16 %v2641, %v2640
      %v2845 = vpack.c.b16 %v2643, %v2642
      %v2846 = vpack.c.b16 %v2645, %v2644
      %v2847 = vpack.c.b16 %v2647, %v2646
      %v2848 = vpack.c.b16 %v2649, %v2648
      %v2849 = vpack.c.b16 %v2651, %v2650
      %v2850 = vpack.c.b16 %v2653, %v2652
      %v2851 = vpack.c.b16 %v2655, %v2654
      %v2852 = vpack.c.b16 %v2657, %v2656
      %v2853 = vpack.c.b16 %v2659, %v2658
      %v2854 = vpack.c.b16 %v2661, %v2660
      %v2855 = vpack.c.b16 %v2663, %v2662
      %v2856 = vpack.c.b16 %v2665, %v2664
      %v2857 = vpack.c.b16 %v2667, %v2666
      %v2858 = vpack.c.b16 %v2669, %v2668
      %v2859 = vpack.c.b16 %v2671, %v2670
      %v2860 = vpack.c.b16 %v2673, %v2672
      %v2861 = vpack.c.b16 %v2675, %v2674
      %v2862 = vpack.c.b16 %v2677, %v2676
      %v2863 = vpack.c.b16 %v2679, %v2678
      %v2864 = vpack.c.b16 %v2681, %v2680
      %v2865 = vpack.c.b16 %v2683, %v2682
      %v2866 = vpack.c.b16 %v2685, %v2684
      %v2867 = vpack.c.b16 %v2687, %v2686
      %v2868 = vpack.c.b16 %v2689, %v2688
      %v2869 = vpack.c.b16 %v2691, %v2690
      %v2870 = vpack.c.b16 %v2693, %v2692
      %v2871 = vpack.c.b16 %v2695, %v2694
      %v2872 = vpack.c.b16 %v2697, %v2696
      %v2873 = vpack.c.b16 %v2699, %v2698
      %v2874 = vpack.c.b16 %v2701, %v2700
      %v2875 = vpack.c.b16 %v2703, %v2702
      %v2876 = vpack.c.b16 %v2705, %v2704
      %v2877 = vpack.c.b16 %v2707, %v2706
      %v2878 = vpack.c.b16 %v2709, %v2708
      %v2879 = vpack.c.b16 %v2711, %v2710
      %v2880 = vpack.c.b16 %v2713, %v2712
      %v2881 = vpack.c.b16 %v2715, %v2714
      %v2882 = vpack.c.b16 %v2717, %v2716
      %v2883 = vpack.c.b16 %v2719, %v2718
      %v2884 = vpack.c.b16 %v2721, %v2720
      %v2885 = vpack.c.b16 %v2723, %v2722
      %v2886 = vpack.c.b16 %v2725, %v2724
      %v2887 = vpack.c.b16 %v2727, %v2726
      %v2888 = vpack.c.b16 %v2729, %v2728
      %v2889 = vpack.c.b16 %v2731, %v2730
      %v2890 = vpack.c.b16 %v2733, %v2732
      %v2891 = vpack.c.b16 %v2735, %v2734
      %v2892 = vpack.c.b16 %v2737, %v2736
      %v2893 = vpack.c.b16 %v2739, %v2738
      %v2894 = vpack.c.b16 %v2741, %v2740
      %v2895 = vpack.c.b16 %v2743, %v2742
      %v2896 = vpack.c.b16 %v2745, %v2744
      %v2897 = vpack.c.b16 %v2747, %v2746
      %v2898 = vpack.c.b16 %v2749, %v2748
      %v2899 = vpack.c.b16 %v2751, %v2750
      %v2900 = vpack.c.b16 %v2753, %v2752
      %v2901 = vpack.c.b16 %v2755, %v2754
      %v2902 = vpack.c.b16 %v2757, %v2756
      %v2903 = vpack.c.b16 %v2759, %v2758
      %v2904 = vpack.c.b16 %v2761, %v2760
      %v2905 = vpack.c.b16 %v2763, %v2762
      %v2906 = vpack.c.b16 %v2765, %v2764
      %v2907 = vpack.c.b16 %v2767, %v2766
      %v2908 = vpack.c.b16 %v2769, %v2768
      %v2909 = vpack.c.b16 %v2771, %v2770
      %v2910 = vpack.c.b16 %v2773, %v2772
      %v2911 = vpack.c.b16 %v2775, %v2774
      %v2912 = vpack.c.b16 %v2777, %v2776
      %v2913 = vpack.c.b16 %v2779, %v2778
      %v2914 = vpack.c.b16 %v2781, %v2780
      %v2915 = vpack.c.b16 %v2783, %v2782
      %v2916 = vpack.c.b16 %v2785, %v2784
      %v2917 = vpack.c.b16 %v2787, %v2786
      %v2918 = vpack.c.b16 %v2789, %v2788
      %v2919 = vpack.c.b16 %v2791, %v2790
      %3048 = vst [vmem:[#allocation6] sm:$0xff] %v2792
      %3049 = vst [vmem:[#allocation6 + $0x8] sm:$0xff] %v2793
      %3050 = vst [vmem:[#allocation6 + $0x10] sm:$0xff] %v2794
      %3051 = vst [vmem:[#allocation6 + $0x18] sm:$0xff] %v2795
      %3052 = vst [vmem:[#allocation6 + $0x20] sm:$0xff] %v2796
      %3053 = vst [vmem:[#allocation6 + $0x28] sm:$0xff] %v2797
      %3054 = vst [vmem:[#allocation6 + $0x30] sm:$0xff] %v2798
      %3055 = vst [vmem:[#allocation6 + $0x38] sm:$0xff] %v2799
      %3056 = vst [vmem:[#allocation6 + $0x40] sm:$0xff] %v2800
      %3057 = vst [vmem:[#allocation6 + $0x48] sm:$0xff] %v2801
      %3058 = vst [vmem:[#allocation6 + $0x50] sm:$0xff] %v2802
      %3059 = vst [vmem:[#allocation6 + $0x58] sm:$0xff] %v2803
      %3060 = vst [vmem:[#allocation6 + $0x60] sm:$0xff] %v2804
      %3061 = vst [vmem:[#allocation6 + $0x68] sm:$0xff] %v2805
      %3062 = vst [vmem:[#allocation6 + $0x70] sm:$0xff] %v2806
      %3063 = vst [vmem:[#allocation6 + $0x78] sm:$0xff] %v2807
      %3064 = vst [vmem:[#allocation6 + $0x80] sm:$0xff] %v2808
      %3065 = vst [vmem:[#allocation6 + $0x88] sm:$0xff] %v2809
      %3066 = vst [vmem:[#allocation6 + $0x90] sm:$0xff] %v2810
      %3067 = vst [vmem:[#allocation6 + $0x98] sm:$0xff] %v2811
      %3068 = vst [vmem:[#allocation6 + $0xa0] sm:$0xff] %v2812
      %3069 = vst [vmem:[#allocation6 + $0xa8] sm:$0xff] %v2813
      %3070 = vst [vmem:[#allocation6 + $0xb0] sm:$0xff] %v2814
      %3071 = vst [vmem:[#allocation6 + $0xb8] sm:$0xff] %v2815
      %3072 = vst [vmem:[#allocation6 + $0xc0] sm:$0xff] %v2816
      %3073 = vst [vmem:[#allocation6 + $0xc8] sm:$0xff] %v2817
      %3074 = vst [vmem:[#allocation6 + $0xd0] sm:$0xff] %v2818
      %3075 = vst [vmem:[#allocation6 + $0xd8] sm:$0xff] %v2819
      %3076 = vst [vmem:[#allocation6 + $0xe0] sm:$0xff] %v2820
      %3077 = vst [vmem:[#allocation6 + $0xe8] sm:$0xff] %v2821
      %3078 = vst [vmem:[#allocation6 + $0xf0] sm:$0xff] %v2822
      %3079 = vst [vmem:[#allocation6 + $0xf8] sm:$0xff] %v2823
      %3080 = vst [vmem:[#allocation6 + $0x100] sm:$0xff] %v2824
      %3081 = vst [vmem:[#allocation6 + $0x108] sm:$0xff] %v2825
      %3082 = vst [vmem:[#allocation6 + $0x110] sm:$0xff] %v2826
      %3083 = vst [vmem:[#allocation6 + $0x118] sm:$0xff] %v2827
      %3084 = vst [vmem:[#allocation6 + $0x120] sm:$0xff] %v2828
      %3085 = vst [vmem:[#allocation6 + $0x128] sm:$0xff] %v2829
      %3086 = vst [vmem:[#allocation6 + $0x130] sm:$0xff] %v2830
      %3087 = vst [vmem:[#allocation6 + $0x138] sm:$0xff] %v2831
      %3088 = vst [vmem:[#allocation6 + $0x140] sm:$0xff] %v2832
      %3089 = vst [vmem:[#allocation6 + $0x148] sm:$0xff] %v2833
      %3090 = vst [vmem:[#allocation6 + $0x150] sm:$0xff] %v2834
      %3091 = vst [vmem:[#allocation6 + $0x158] sm:$0xff] %v2835
      %3092 = vst [vmem:[#allocation6 + $0x160] sm:$0xff] %v2836
      %3093 = vst [vmem:[#allocation6 + $0x168] sm:$0xff] %v2837
      %3094 = vst [vmem:[#allocation6 + $0x170] sm:$0xff] %v2838
      %3095 = vst [vmem:[#allocation6 + $0x178] sm:$0xff] %v2839
      %3096 = vst [vmem:[#allocation6 + $0x180] sm:$0xff] %v2840
      %3097 = vst [vmem:[#allocation6 + $0x188] sm:$0xff] %v2841
      %3098 = vst [vmem:[#allocation6 + $0x190] sm:$0xff] %v2842
      %3099 = vst [vmem:[#allocation6 + $0x198] sm:$0xff] %v2843
      %3100 = vst [vmem:[#allocation6 + $0x1a0] sm:$0xff] %v2844
      %3101 = vst [vmem:[#allocation6 + $0x1a8] sm:$0xff] %v2845
      %3102 = vst [vmem:[#allocation6 + $0x1b0] sm:$0xff] %v2846
      %3103 = vst [vmem:[#allocation6 + $0x1b8] sm:$0xff] %v2847
      %3104 = vst [vmem:[#allocation6 + $0x1c0] sm:$0xff] %v2848
      %3105 = vst [vmem:[#allocation6 + $0x1c8] sm:$0xff] %v2849
      %3106 = vst [vmem:[#allocation6 + $0x1d0] sm:$0xff] %v2850
      %3107 = vst [vmem:[#allocation6 + $0x1d8] sm:$0xff] %v2851
      %3108 = vst [vmem:[#allocation6 + $0x1e0] sm:$0xff] %v2852
      %3109 = vst [vmem:[#allocation6 + $0x1e8] sm:$0xff] %v2853
      %3110 = vst [vmem:[#allocation6 + $0x1f0] sm:$0xff] %v2854
      %3111 = vst [vmem:[#allocation6 + $0x1f8] sm:$0xff] %v2855
      %3112 = vst [vmem:[#allocation6 + $0x200] sm:$0xff] %v2856
      %3113 = vst [vmem:[#allocation6 + $0x208] sm:$0xff] %v2857
      %3114 = vst [vmem:[#allocation6 + $0x210] sm:$0xff] %v2858
      %3115 = vst [vmem:[#allocation6 + $0x218] sm:$0xff] %v2859
      %3116 = vst [vmem:[#allocation6 + $0x220] sm:$0xff] %v2860
      %3117 = vst [vmem:[#allocation6 + $0x228] sm:$0xff] %v2861
      %3118 = vst [vmem:[#allocation6 + $0x230] sm:$0xff] %v2862
      %3119 = vst [vmem:[#allocation6 + $0x238] sm:$0xff] %v2863
      %3120 = vst [vmem:[#allocation6 + $0x240] sm:$0xff] %v2864
      %3121 = vst [vmem:[#allocation6 + $0x248] sm:$0xff] %v2865
      %3122 = vst [vmem:[#allocation6 + $0x250] sm:$0xff] %v2866
      %3123 = vst [vmem:[#allocation6 + $0x258] sm:$0xff] %v2867
      %3124 = vst [vmem:[#allocation6 + $0x260] sm:$0xff] %v2868
      %3125 = vst [vmem:[#allocation6 + $0x268] sm:$0xff] %v2869
      %3126 = vst [vmem:[#allocation6 + $0x270] sm:$0xff] %v2870
      %3127 = vst [vmem:[#allocation6 + $0x278] sm:$0xff] %v2871
      %3128 = vst [vmem:[#allocation6 + $0x280] sm:$0xff] %v2872
      %3129 = vst [vmem:[#allocation6 + $0x288] sm:$0xff] %v2873
      %3130 = vst [vmem:[#allocation6 + $0x290] sm:$0xff] %v2874
      %3131 = vst [vmem:[#allocation6 + $0x298] sm:$0xff] %v2875
      %3132 = vst [vmem:[#allocation6 + $0x2a0] sm:$0xff] %v2876
      %3133 = vst [vmem:[#allocation6 + $0x2a8] sm:$0xff] %v2877
      %3134 = vst [vmem:[#allocation6 + $0x2b0] sm:$0xff] %v2878
      %3135 = vst [vmem:[#allocation6 + $0x2b8] sm:$0xff] %v2879
      %3136 = vst [vmem:[#allocation6 + $0x2c0] sm:$0xff] %v2880
      %3137 = vst [vmem:[#allocation6 + $0x2c8] sm:$0xff] %v2881
      %3138 = vst [vmem:[#allocation6 + $0x2d0] sm:$0xff] %v2882
      %3139 = vst [vmem:[#allocation6 + $0x2d8] sm:$0xff] %v2883
      %3140 = vst [vmem:[#allocation6 + $0x2e0] sm:$0xff] %v2884
      %3141 = vst [vmem:[#allocation6 + $0x2e8] sm:$0xff] %v2885
      %3142 = vst [vmem:[#allocation6 + $0x2f0] sm:$0xff] %v2886
      %3143 = vst [vmem:[#allocation6 + $0x2f8] sm:$0xff] %v2887
      %3144 = vst [vmem:[#allocation6 + $0x300] sm:$0xff] %v2888
      %3145 = vst [vmem:[#allocation6 + $0x308] sm:$0xff] %v2889
      %3146 = vst [vmem:[#allocation6 + $0x310] sm:$0xff] %v2890
      %3147 = vst [vmem:[#allocation6 + $0x318] sm:$0xff] %v2891
      %3148 = vst [vmem:[#allocation6 + $0x320] sm:$0xff] %v2892
      %3149 = vst [vmem:[#allocation6 + $0x328] sm:$0xff] %v2893
      %3150 = vst [vmem:[#allocation6 + $0x330] sm:$0xff] %v2894
      %3151 = vst [vmem:[#allocation6 + $0x338] sm:$0xff] %v2895
      %3152 = vst [vmem:[#allocation6 + $0x340] sm:$0xff] %v2896
      %3153 = vst [vmem:[#allocation6 + $0x348] sm:$0xff] %v2897
      %3154 = vst [vmem:[#allocation6 + $0x350] sm:$0xff] %v2898
      %3155 = vst [vmem:[#allocation6 + $0x358] sm:$0xff] %v2899
      %3156 = vst [vmem:[#allocation6 + $0x360] sm:$0xff] %v2900
      %3157 = vst [vmem:[#allocation6 + $0x368] sm:$0xff] %v2901
      %3158 = vst [vmem:[#allocation6 + $0x370] sm:$0xff] %v2902
      %3159 = vst [vmem:[#allocation6 + $0x378] sm:$0xff] %v2903
      %3160 = vst [vmem:[#allocation6 + $0x380] sm:$0xff] %v2904
      %3161 = vst [vmem:[#allocation6 + $0x388] sm:$0xff] %v2905
      %3162 = vst [vmem:[#allocation6 + $0x390] sm:$0xff] %v2906
      %3163 = vst [vmem:[#allocation6 + $0x398] sm:$0xff] %v2907
      %3164 = vst [vmem:[#allocation6 + $0x3a0] sm:$0xff] %v2908
      %3165 = vst [vmem:[#allocation6 + $0x3a8] sm:$0xff] %v2909
      %3166 = vst [vmem:[#allocation6 + $0x3b0] sm:$0xff] %v2910
      %3167 = vst [vmem:[#allocation6 + $0x3b8] sm:$0xff] %v2911
      %3168 = vst [vmem:[#allocation6 + $0x3c0] sm:$0xff] %v2912
      %3169 = vst [vmem:[#allocation6 + $0x3c8] sm:$0xff] %v2913
      %3170 = vst [vmem:[#allocation6 + $0x3d0] sm:$0xff] %v2914
      %3171 = vst [vmem:[#allocation6 + $0x3d8] sm:$0xff] %v2915
      %3172 = vst [vmem:[#allocation6 + $0x3e0] sm:$0xff] %v2916
      %3173 = vst [vmem:[#allocation6 + $0x3e8] sm:$0xff] %v2917
      %3174 = vst [vmem:[#allocation6 + $0x3f0] sm:$0xff] %v2918
      %3175 = vst [vmem:[#allocation6 + $0x3f8] sm:$0xff] %v2919
    $region17: #{tpu_custom_call.1} parent=1 // pred_fallthru
      _
    %p3176 = scmp.eq.s32.totalorder 0, 0
    // Predicated region
    $region18: #{tpu_custom_call.1} parent=1 // pred_check
      %p3177 = pneg %p3176
    $region19: #{tpu_custom_call.1} parent=1 // pred_check_branch
      %3179 = sbr.rel (%p3177) target = $region21
    $region20: #{tpu_custom_call.1} parent=1 // pred_region
      %vm3180 = vcmask 7168
      %3181 = vst.msk [vmem:[#allocation2] sm:$0xff] %vm3180, 0.0
      %3182 = vst.msk [vmem:[#allocation2 + $0x8] sm:$0xff] %vm3180, 0.0
      %3183 = vst.msk [vmem:[#allocation2 + $0x10] sm:$0xff] %vm3180, 0.0
      %3184 = vst.msk [vmem:[#allocation2 + $0x18] sm:$0xff] %vm3180, 0.0
      %3185 = vst.msk [vmem:[#allocation2 + $0x20] sm:$0xff] %vm3180, 0.0
      %3186 = vst.msk [vmem:[#allocation2 + $0x28] sm:$0xff] %vm3180, 0.0
      %3187 = vst.msk [vmem:[#allocation2 + $0x30] sm:$0xff] %vm3180, 0.0
      %3188 = vst.msk [vmem:[#allocation2 + $0x38] sm:$0xff] %vm3180, 0.0
      %3189 = vst.msk [vmem:[#allocation2 + $0x40] sm:$0xff] %vm3180, 0.0
      %3190 = vst.msk [vmem:[#allocation2 + $0x48] sm:$0xff] %vm3180, 0.0
      %3191 = vst.msk [vmem:[#allocation2 + $0x50] sm:$0xff] %vm3180, 0.0
      %3192 = vst.msk [vmem:[#allocation2 + $0x58] sm:$0xff] %vm3180, 0.0
      %3193 = vst.msk [vmem:[#allocation2 + $0x60] sm:$0xff] %vm3180, 0.0
      %3194 = vst.msk [vmem:[#allocation2 + $0x68] sm:$0xff] %vm3180, 0.0
      %3195 = vst.msk [vmem:[#allocation2 + $0x70] sm:$0xff] %vm3180, 0.0
      %3196 = vst.msk [vmem:[#allocation2 + $0x78] sm:$0xff] %vm3180, 0.0
      %3197 = vst.msk [vmem:[#allocation2 + $0x80] sm:$0xff] %vm3180, 0.0
      %3198 = vst.msk [vmem:[#allocation2 + $0x88] sm:$0xff] %vm3180, 0.0
      %3199 = vst.msk [vmem:[#allocation2 + $0x90] sm:$0xff] %vm3180, 0.0
      %3200 = vst.msk [vmem:[#allocation2 + $0x98] sm:$0xff] %vm3180, 0.0
      %3201 = vst.msk [vmem:[#allocation2 + $0xa0] sm:$0xff] %vm3180, 0.0
      %3202 = vst.msk [vmem:[#allocation2 + $0xa8] sm:$0xff] %vm3180, 0.0
      %3203 = vst.msk [vmem:[#allocation2 + $0xb0] sm:$0xff] %vm3180, 0.0
      %3204 = vst.msk [vmem:[#allocation2 + $0xb8] sm:$0xff] %vm3180, 0.0
      %3205 = vst.msk [vmem:[#allocation2 + $0xc0] sm:$0xff] %vm3180, 0.0
      %3206 = vst.msk [vmem:[#allocation2 + $0xc8] sm:$0xff] %vm3180, 0.0
      %3207 = vst.msk [vmem:[#allocation2 + $0xd0] sm:$0xff] %vm3180, 0.0
      %3208 = vst.msk [vmem:[#allocation2 + $0xd8] sm:$0xff] %vm3180, 0.0
      %3209 = vst.msk [vmem:[#allocation2 + $0xe0] sm:$0xff] %vm3180, 0.0
      %3210 = vst.msk [vmem:[#allocation2 + $0xe8] sm:$0xff] %vm3180, 0.0
      %3211 = vst.msk [vmem:[#allocation2 + $0xf0] sm:$0xff] %vm3180, 0.0
      %3212 = vst.msk [vmem:[#allocation2 + $0xf8] sm:$0xff] %vm3180, 0.0
      %3213 = vst.msk [vmem:[#allocation2 + $0x100] sm:$0xff] %vm3180, 0.0
      %3214 = vst.msk [vmem:[#allocation2 + $0x108] sm:$0xff] %vm3180, 0.0
      %3215 = vst.msk [vmem:[#allocation2 + $0x110] sm:$0xff] %vm3180, 0.0
      %3216 = vst.msk [vmem:[#allocation2 + $0x118] sm:$0xff] %vm3180, 0.0
      %3217 = vst.msk [vmem:[#allocation2 + $0x120] sm:$0xff] %vm3180, 0.0
      %3218 = vst.msk [vmem:[#allocation2 + $0x128] sm:$0xff] %vm3180, 0.0
      %3219 = vst.msk [vmem:[#allocation2 + $0x130] sm:$0xff] %vm3180, 0.0
      %3220 = vst.msk [vmem:[#allocation2 + $0x138] sm:$0xff] %vm3180, 0.0
      %3221 = vst.msk [vmem:[#allocation2 + $0x140] sm:$0xff] %vm3180, 0.0
      %3222 = vst.msk [vmem:[#allocation2 + $0x148] sm:$0xff] %vm3180, 0.0
      %3223 = vst.msk [vmem:[#allocation2 + $0x150] sm:$0xff] %vm3180, 0.0
      %3224 = vst.msk [vmem:[#allocation2 + $0x158] sm:$0xff] %vm3180, 0.0
      %3225 = vst.msk [vmem:[#allocation2 + $0x160] sm:$0xff] %vm3180, 0.0
      %3226 = vst.msk [vmem:[#allocation2 + $0x168] sm:$0xff] %vm3180, 0.0
      %3227 = vst.msk [vmem:[#allocation2 + $0x170] sm:$0xff] %vm3180, 0.0
      %3228 = vst.msk [vmem:[#allocation2 + $0x178] sm:$0xff] %vm3180, 0.0
      %3229 = vst.msk [vmem:[#allocation2 + $0x180] sm:$0xff] %vm3180, 0.0
      %3230 = vst.msk [vmem:[#allocation2 + $0x188] sm:$0xff] %vm3180, 0.0
      %3231 = vst.msk [vmem:[#allocation2 + $0x190] sm:$0xff] %vm3180, 0.0
      %3232 = vst.msk [vmem:[#allocation2 + $0x198] sm:$0xff] %vm3180, 0.0
      %3233 = vst.msk [vmem:[#allocation2 + $0x1a0] sm:$0xff] %vm3180, 0.0
      %3234 = vst.msk [vmem:[#allocation2 + $0x1a8] sm:$0xff] %vm3180, 0.0
      %3235 = vst.msk [vmem:[#allocation2 + $0x1b0] sm:$0xff] %vm3180, 0.0
      %3236 = vst.msk [vmem:[#allocation2 + $0x1b8] sm:$0xff] %vm3180, 0.0
      %3237 = vst.msk [vmem:[#allocation2 + $0x1c0] sm:$0xff] %vm3180, 0.0
      %3238 = vst.msk [vmem:[#allocation2 + $0x1c8] sm:$0xff] %vm3180, 0.0
      %3239 = vst.msk [vmem:[#allocation2 + $0x1d0] sm:$0xff] %vm3180, 0.0
      %3240 = vst.msk [vmem:[#allocation2 + $0x1d8] sm:$0xff] %vm3180, 0.0
      %3241 = vst.msk [vmem:[#allocation2 + $0x1e0] sm:$0xff] %vm3180, 0.0
      %3242 = vst.msk [vmem:[#allocation2 + $0x1e8] sm:$0xff] %vm3180, 0.0
      %3243 = vst.msk [vmem:[#allocation2 + $0x1f0] sm:$0xff] %vm3180, 0.0
      %3244 = vst.msk [vmem:[#allocation2 + $0x1f8] sm:$0xff] %vm3180, 0.0
    $region21: #{tpu_custom_call.1} parent=1 // pred_fallthru
      _
    %v3245 = vld [vmem:[#allocation2] sm:$0xff]
    %v3246 = vld [vmem:[#allocation2 + $0x8] sm:$0xff]
    %v3247 = vld [vmem:[#allocation2 + $0x10] sm:$0xff]
    %v3248 = vld [vmem:[#allocation2 + $0x18] sm:$0xff]
    %v3249 = vld [vmem:[#allocation2 + $0x20] sm:$0xff]
    %v3250 = vld [vmem:[#allocation2 + $0x28] sm:$0xff]
    %v3251 = vld [vmem:[#allocation2 + $0x30] sm:$0xff]
    %v3252 = vld [vmem:[#allocation2 + $0x38] sm:$0xff]
    %v3253 = vld [vmem:[#allocation2 + $0x40] sm:$0xff]
    %v3254 = vld [vmem:[#allocation2 + $0x48] sm:$0xff]
    %v3255 = vld [vmem:[#allocation2 + $0x50] sm:$0xff]
    %v3256 = vld [vmem:[#allocation2 + $0x58] sm:$0xff]
    %v3257 = vld [vmem:[#allocation2 + $0x60] sm:$0xff]
    %v3258 = vld [vmem:[#allocation2 + $0x68] sm:$0xff]
    %v3259 = vld [vmem:[#allocation2 + $0x70] sm:$0xff]
    %v3260 = vld [vmem:[#allocation2 + $0x78] sm:$0xff]
    %v3261 = vld [vmem:[#allocation2 + $0x80] sm:$0xff]
    %v3262 = vld [vmem:[#allocation2 + $0x88] sm:$0xff]
    %v3263 = vld [vmem:[#allocation2 + $0x90] sm:$0xff]
    %v3264 = vld [vmem:[#allocation2 + $0x98] sm:$0xff]
    %v3265 = vld [vmem:[#allocation2 + $0xa0] sm:$0xff]
    %v3266 = vld [vmem:[#allocation2 + $0xa8] sm:$0xff]
    %v3267 = vld [vmem:[#allocation2 + $0xb0] sm:$0xff]
    %v3268 = vld [vmem:[#allocation2 + $0xb8] sm:$0xff]
    %v3269 = vld [vmem:[#allocation2 + $0xc0] sm:$0xff]
    %v3270 = vld [vmem:[#allocation2 + $0xc8] sm:$0xff]
    %v3271 = vld [vmem:[#allocation2 + $0xd0] sm:$0xff]
    %v3272 = vld [vmem:[#allocation2 + $0xd8] sm:$0xff]
    %v3273 = vld [vmem:[#allocation2 + $0xe0] sm:$0xff]
    %v3274 = vld [vmem:[#allocation2 + $0xe8] sm:$0xff]
    %v3275 = vld [vmem:[#allocation2 + $0xf0] sm:$0xff]
    %v3276 = vld [vmem:[#allocation2 + $0xf8] sm:$0xff]
    %v3277 = vld [vmem:[#allocation2 + $0x100] sm:$0xff]
    %v3278 = vld [vmem:[#allocation2 + $0x108] sm:$0xff]
    %v3279 = vld [vmem:[#allocation2 + $0x110] sm:$0xff]
    %v3280 = vld [vmem:[#allocation2 + $0x118] sm:$0xff]
    %v3281 = vld [vmem:[#allocation2 + $0x120] sm:$0xff]
    %v3282 = vld [vmem:[#allocation2 + $0x128] sm:$0xff]
    %v3283 = vld [vmem:[#allocation2 + $0x130] sm:$0xff]
    %v3284 = vld [vmem:[#allocation2 + $0x138] sm:$0xff]
    %v3285 = vld [vmem:[#allocation2 + $0x140] sm:$0xff]
    %v3286 = vld [vmem:[#allocation2 + $0x148] sm:$0xff]
    %v3287 = vld [vmem:[#allocation2 + $0x150] sm:$0xff]
    %v3288 = vld [vmem:[#allocation2 + $0x158] sm:$0xff]
    %v3289 = vld [vmem:[#allocation2 + $0x160] sm:$0xff]
    %v3290 = vld [vmem:[#allocation2 + $0x168] sm:$0xff]
    %v3291 = vld [vmem:[#allocation2 + $0x170] sm:$0xff]
    %v3292 = vld [vmem:[#allocation2 + $0x178] sm:$0xff]
    %v3293 = vld [vmem:[#allocation2 + $0x180] sm:$0xff]
    %v3294 = vld [vmem:[#allocation2 + $0x188] sm:$0xff]
    %v3295 = vld [vmem:[#allocation2 + $0x190] sm:$0xff]
    %v3296 = vld [vmem:[#allocation2 + $0x198] sm:$0xff]
    %v3297 = vld [vmem:[#allocation2 + $0x1a0] sm:$0xff]
    %v3298 = vld [vmem:[#allocation2 + $0x1a8] sm:$0xff]
    %v3299 = vld [vmem:[#allocation2 + $0x1b0] sm:$0xff]
    %v3300 = vld [vmem:[#allocation2 + $0x1b8] sm:$0xff]
    %v3301 = vld [vmem:[#allocation2 + $0x1c0] sm:$0xff]
    %v3302 = vld [vmem:[#allocation2 + $0x1c8] sm:$0xff]
    %v3303 = vld [vmem:[#allocation2 + $0x1d0] sm:$0xff]
    %v3304 = vld [vmem:[#allocation2 + $0x1d8] sm:$0xff]
    %v3305 = vld [vmem:[#allocation2 + $0x1e0] sm:$0xff]
    %v3306 = vld [vmem:[#allocation2 + $0x1e8] sm:$0xff]
    %v3307 = vld [vmem:[#allocation2 + $0x1f0] sm:$0xff]
    %v3308 = vld [vmem:[#allocation2 + $0x1f8] sm:$0xff]
    %v3309 = vadd.f32 %v26, %v27
    %v3310 = vadd.f32 %v3309, %v28
    %v3311 = vadd.f32 %v3310, %v29
    %3312 = vadd.xlane.f32.xlu0 %v3311
    %v3313 = vpop.xlane.xlu0 %3312
    %v3314 = vadd.f32 %v30, %v31
    %v3315 = vadd.f32 %v3314, %v32
    %v3316 = vadd.f32 %v3315, %v33
    %3317 = vadd.xlane.f32.xlu0 %v3316
    %v3318 = vpop.xlane.xlu0 %3317
    %v3319 = vadd.f32 %v34, %v35
    %v3320 = vadd.f32 %v3319, %v36
    %v3321 = vadd.f32 %v3320, %v37
    %3322 = vadd.xlane.f32.xlu0 %v3321
    %v3323 = vpop.xlane.xlu0 %3322
    %v3324 = vadd.f32 %v38, %v39
    %v3325 = vadd.f32 %v3324, %v40
    %v3326 = vadd.f32 %v3325, %v41
    %3327 = vadd.xlane.f32.xlu0 %v3326
    %v3328 = vpop.xlane.xlu0 %3327
    %v3329 = vadd.f32 %v42, %v43
    %v3330 = vadd.f32 %v3329, %v44
    %v3331 = vadd.f32 %v3330, %v45
    %3332 = vadd.xlane.f32.xlu0 %v3331
    %v3333 = vpop.xlane.xlu0 %3332
    %v3334 = vadd.f32 %v46, %v47
    %v3335 = vadd.f32 %v3334, %v48
    %v3336 = vadd.f32 %v3335, %v49
    %3337 = vadd.xlane.f32.xlu0 %v3336
    %v3338 = vpop.xlane.xlu0 %3337
    %v3339 = vadd.f32 %v50, %v51
    %v3340 = vadd.f32 %v3339, %v52
    %v3341 = vadd.f32 %v3340, %v53
    %3342 = vadd.xlane.f32.xlu0 %v3341
    %v3343 = vpop.xlane.xlu0 %3342
    %v3344 = vadd.f32 %v54, %v55
    %v3345 = vadd.f32 %v3344, %v56
    %v3346 = vadd.f32 %v3345, %v57
    %3347 = vadd.xlane.f32.xlu0 %v3346
    %v3348 = vpop.xlane.xlu0 %3347
    %v3349 = vadd.f32 %v58, %v59
    %v3350 = vadd.f32 %v3349, %v60
    %v3351 = vadd.f32 %v3350, %v61
    %3352 = vadd.xlane.f32.xlu0 %v3351
    %v3353 = vpop.xlane.xlu0 %3352
    %v3354 = vadd.f32 %v62, %v63
    %v3355 = vadd.f32 %v3354, %v64
    %v3356 = vadd.f32 %v3355, %v65
    %3357 = vadd.xlane.f32.xlu0 %v3356
    %v3358 = vpop.xlane.xlu0 %3357
    %v3359 = vadd.f32 %v66, %v67
    %v3360 = vadd.f32 %v3359, %v68
    %v3361 = vadd.f32 %v3360, %v69
    %3362 = vadd.xlane.f32.xlu0 %v3361
    %v3363 = vpop.xlane.xlu0 %3362
    %v3364 = vadd.f32 %v70, %v71
    %v3365 = vadd.f32 %v3364, %v72
    %v3366 = vadd.f32 %v3365, %v73
    %3367 = vadd.xlane.f32.xlu0 %v3366
    %v3368 = vpop.xlane.xlu0 %3367
    %v3369 = vadd.f32 %v74, %v75
    %v3370 = vadd.f32 %v3369, %v76
    %v3371 = vadd.f32 %v3370, %v77
    %3372 = vadd.xlane.f32.xlu0 %v3371
    %v3373 = vpop.xlane.xlu0 %3372
    %v3374 = vadd.f32 %v78, %v79
    %v3375 = vadd.f32 %v3374, %v80
    %v3376 = vadd.f32 %v3375, %v81
    %3377 = vadd.xlane.f32.xlu0 %v3376
    %v3378 = vpop.xlane.xlu0 %3377
    %v3379 = vadd.f32 %v82, %v83
    %v3380 = vadd.f32 %v3379, %v84
    %v3381 = vadd.f32 %v3380, %v85
    %3382 = vadd.xlane.f32.xlu0 %v3381
    %v3383 = vpop.xlane.xlu0 %3382
    %v3384 = vadd.f32 %v86, %v87
    %v3385 = vadd.f32 %v3384, %v88
    %v3386 = vadd.f32 %v3385, %v89
    %3387 = vadd.xlane.f32.xlu0 %v3386
    %v3388 = vpop.xlane.xlu0 %3387
    %v3389 = vadd.f32 %v90, %v91
    %v3390 = vadd.f32 %v3389, %v92
    %v3391 = vadd.f32 %v3390, %v93
    %3392 = vadd.xlane.f32.xlu0 %v3391
    %v3393 = vpop.xlane.xlu0 %3392
    %v3394 = vadd.f32 %v94, %v95
    %v3395 = vadd.f32 %v3394, %v96
    %v3396 = vadd.f32 %v3395, %v97
    %3397 = vadd.xlane.f32.xlu0 %v3396
    %v3398 = vpop.xlane.xlu0 %3397
    %v3399 = vadd.f32 %v98, %v99
    %v3400 = vadd.f32 %v3399, %v100
    %v3401 = vadd.f32 %v3400, %v101
    %3402 = vadd.xlane.f32.xlu0 %v3401
    %v3403 = vpop.xlane.xlu0 %3402
    %v3404 = vadd.f32 %v102, %v103
    %v3405 = vadd.f32 %v3404, %v104
    %v3406 = vadd.f32 %v3405, %v105
    %3407 = vadd.xlane.f32.xlu0 %v3406
    %v3408 = vpop.xlane.xlu0 %3407
    %v3409 = vadd.f32 %v106, %v107
    %v3410 = vadd.f32 %v3409, %v108
    %v3411 = vadd.f32 %v3410, %v109
    %3412 = vadd.xlane.f32.xlu0 %v3411
    %v3413 = vpop.xlane.xlu0 %3412
    %v3414 = vadd.f32 %v110, %v111
    %v3415 = vadd.f32 %v3414, %v112
    %v3416 = vadd.f32 %v3415, %v113
    %3417 = vadd.xlane.f32.xlu0 %v3416
    %v3418 = vpop.xlane.xlu0 %3417
    %v3419 = vadd.f32 %v114, %v115
    %v3420 = vadd.f32 %v3419, %v116
    %v3421 = vadd.f32 %v3420, %v117
    %3422 = vadd.xlane.f32.xlu0 %v3421
    %v3423 = vpop.xlane.xlu0 %3422
    %v3424 = vadd.f32 %v118, %v119
    %v3425 = vadd.f32 %v3424, %v120
    %v3426 = vadd.f32 %v3425, %v121
    %3427 = vadd.xlane.f32.xlu0 %v3426
    %v3428 = vpop.xlane.xlu0 %3427
    %v3429 = vadd.f32 %v122, %v123
    %v3430 = vadd.f32 %v3429, %v124
    %v3431 = vadd.f32 %v3430, %v125
    %3432 = vadd.xlane.f32.xlu0 %v3431
    %v3433 = vpop.xlane.xlu0 %3432
    %v3434 = vadd.f32 %v126, %v127
    %v3435 = vadd.f32 %v3434, %v128
    %v3436 = vadd.f32 %v3435, %v129
    %3437 = vadd.xlane.f32.xlu0 %v3436
    %v3438 = vpop.xlane.xlu0 %3437
    %v3439 = vadd.f32 %v130, %v131
    %v3440 = vadd.f32 %v3439, %v132
    %v3441 = vadd.f32 %v3440, %v133
    %3442 = vadd.xlane.f32.xlu0 %v3441
    %v3443 = vpop.xlane.xlu0 %3442
    %v3444 = vadd.f32 %v134, %v135
    %v3445 = vadd.f32 %v3444, %v136
    %v3446 = vadd.f32 %v3445, %v137
    %3447 = vadd.xlane.f32.xlu0 %v3446
    %v3448 = vpop.xlane.xlu0 %3447
    %v3449 = vadd.f32 %v138, %v139
    %v3450 = vadd.f32 %v3449, %v140
    %v3451 = vadd.f32 %v3450, %v141
    %3452 = vadd.xlane.f32.xlu0 %v3451
    %v3453 = vpop.xlane.xlu0 %3452
    %v3454 = vadd.f32 %v142, %v143
    %v3455 = vadd.f32 %v3454, %v144
    %v3456 = vadd.f32 %v3455, %v145
    %3457 = vadd.xlane.f32.xlu0 %v3456
    %v3458 = vpop.xlane.xlu0 %3457
    %v3459 = vadd.f32 %v146, %v147
    %v3460 = vadd.f32 %v3459, %v148
    %v3461 = vadd.f32 %v3460, %v149
    %3462 = vadd.xlane.f32.xlu0 %v3461
    %v3463 = vpop.xlane.xlu0 %3462
    %v3464 = vadd.f32 %v150, %v151
    %v3465 = vadd.f32 %v3464, %v152
    %v3466 = vadd.f32 %v3465, %v153
    %3467 = vadd.xlane.f32.xlu0 %v3466
    %v3468 = vpop.xlane.xlu0 %3467
    %v3469 = vadd.f32 %v154, %v155
    %v3470 = vadd.f32 %v3469, %v156
    %v3471 = vadd.f32 %v3470, %v157
    %3472 = vadd.xlane.f32.xlu0 %v3471
    %v3473 = vpop.xlane.xlu0 %3472
    %v3474 = vadd.f32 %v158, %v159
    %v3475 = vadd.f32 %v3474, %v160
    %v3476 = vadd.f32 %v3475, %v161
    %3477 = vadd.xlane.f32.xlu0 %v3476
    %v3478 = vpop.xlane.xlu0 %3477
    %v3479 = vadd.f32 %v162, %v163
    %v3480 = vadd.f32 %v3479, %v164
    %v3481 = vadd.f32 %v3480, %v165
    %3482 = vadd.xlane.f32.xlu0 %v3481
    %v3483 = vpop.xlane.xlu0 %3482
    %v3484 = vadd.f32 %v166, %v167
    %v3485 = vadd.f32 %v3484, %v168
    %v3486 = vadd.f32 %v3485, %v169
    %3487 = vadd.xlane.f32.xlu0 %v3486
    %v3488 = vpop.xlane.xlu0 %3487
    %v3489 = vadd.f32 %v170, %v171
    %v3490 = vadd.f32 %v3489, %v172
    %v3491 = vadd.f32 %v3490, %v173
    %3492 = vadd.xlane.f32.xlu0 %v3491
    %v3493 = vpop.xlane.xlu0 %3492
    %v3494 = vadd.f32 %v174, %v175
    %v3495 = vadd.f32 %v3494, %v176
    %v3496 = vadd.f32 %v3495, %v177
    %3497 = vadd.xlane.f32.xlu0 %v3496
    %v3498 = vpop.xlane.xlu0 %3497
    %v3499 = vadd.f32 %v178, %v179
    %v3500 = vadd.f32 %v3499, %v180
    %v3501 = vadd.f32 %v3500, %v181
    %3502 = vadd.xlane.f32.xlu0 %v3501
    %v3503 = vpop.xlane.xlu0 %3502
    %v3504 = vadd.f32 %v182, %v183
    %v3505 = vadd.f32 %v3504, %v184
    %v3506 = vadd.f32 %v3505, %v185
    %3507 = vadd.xlane.f32.xlu0 %v3506
    %v3508 = vpop.xlane.xlu0 %3507
    %v3509 = vadd.f32 %v186, %v187
    %v3510 = vadd.f32 %v3509, %v188
    %v3511 = vadd.f32 %v3510, %v189
    %3512 = vadd.xlane.f32.xlu0 %v3511
    %v3513 = vpop.xlane.xlu0 %3512
    %v3514 = vadd.f32 %v190, %v191
    %v3515 = vadd.f32 %v3514, %v192
    %v3516 = vadd.f32 %v3515, %v193
    %3517 = vadd.xlane.f32.xlu0 %v3516
    %v3518 = vpop.xlane.xlu0 %3517
    %v3519 = vadd.f32 %v194, %v195
    %v3520 = vadd.f32 %v3519, %v196
    %v3521 = vadd.f32 %v3520, %v197
    %3522 = vadd.xlane.f32.xlu0 %v3521
    %v3523 = vpop.xlane.xlu0 %3522
    %v3524 = vadd.f32 %v198, %v199
    %v3525 = vadd.f32 %v3524, %v200
    %v3526 = vadd.f32 %v3525, %v201
    %3527 = vadd.xlane.f32.xlu0 %v3526
    %v3528 = vpop.xlane.xlu0 %3527
    %v3529 = vadd.f32 %v202, %v203
    %v3530 = vadd.f32 %v3529, %v204
    %v3531 = vadd.f32 %v3530, %v205
    %3532 = vadd.xlane.f32.xlu0 %v3531
    %v3533 = vpop.xlane.xlu0 %3532
    %v3534 = vadd.f32 %v206, %v207
    %v3535 = vadd.f32 %v3534, %v208
    %v3536 = vadd.f32 %v3535, %v209
    %3537 = vadd.xlane.f32.xlu0 %v3536
    %v3538 = vpop.xlane.xlu0 %3537
    %v3539 = vadd.f32 %v210, %v211
    %v3540 = vadd.f32 %v3539, %v212
    %v3541 = vadd.f32 %v3540, %v213
    %3542 = vadd.xlane.f32.xlu0 %v3541
    %v3543 = vpop.xlane.xlu0 %3542
    %v3544 = vadd.f32 %v214, %v215
    %v3545 = vadd.f32 %v3544, %v216
    %v3546 = vadd.f32 %v3545, %v217
    %3547 = vadd.xlane.f32.xlu0 %v3546
    %v3548 = vpop.xlane.xlu0 %3547
    %v3549 = vadd.f32 %v218, %v219
    %v3550 = vadd.f32 %v3549, %v220
    %v3551 = vadd.f32 %v3550, %v221
    %3552 = vadd.xlane.f32.xlu0 %v3551
    %v3553 = vpop.xlane.xlu0 %3552
    %v3554 = vadd.f32 %v222, %v223
    %v3555 = vadd.f32 %v3554, %v224
    %v3556 = vadd.f32 %v3555, %v225
    %3557 = vadd.xlane.f32.xlu0 %v3556
    %v3558 = vpop.xlane.xlu0 %3557
    %v3559 = vadd.f32 %v226, %v227
    %v3560 = vadd.f32 %v3559, %v228
    %v3561 = vadd.f32 %v3560, %v229
    %3562 = vadd.xlane.f32.xlu0 %v3561
    %v3563 = vpop.xlane.xlu0 %3562
    %v3564 = vadd.f32 %v230, %v231
    %v3565 = vadd.f32 %v3564, %v232
    %v3566 = vadd.f32 %v3565, %v233
    %3567 = vadd.xlane.f32.xlu0 %v3566
    %v3568 = vpop.xlane.xlu0 %3567
    %v3569 = vadd.f32 %v234, %v235
    %v3570 = vadd.f32 %v3569, %v236
    %v3571 = vadd.f32 %v3570, %v237
    %3572 = vadd.xlane.f32.xlu0 %v3571
    %v3573 = vpop.xlane.xlu0 %3572
    %v3574 = vadd.f32 %v238, %v239
    %v3575 = vadd.f32 %v3574, %v240
    %v3576 = vadd.f32 %v3575, %v241
    %3577 = vadd.xlane.f32.xlu0 %v3576
    %v3578 = vpop.xlane.xlu0 %3577
    %v3579 = vadd.f32 %v242, %v243
    %v3580 = vadd.f32 %v3579, %v244
    %v3581 = vadd.f32 %v3580, %v245
    %3582 = vadd.xlane.f32.xlu0 %v3581
    %v3583 = vpop.xlane.xlu0 %3582
    %v3584 = vadd.f32 %v246, %v247
    %v3585 = vadd.f32 %v3584, %v248
    %v3586 = vadd.f32 %v3585, %v249
    %3587 = vadd.xlane.f32.xlu0 %v3586
    %v3588 = vpop.xlane.xlu0 %3587
    %v3589 = vadd.f32 %v250, %v251
    %v3590 = vadd.f32 %v3589, %v252
    %v3591 = vadd.f32 %v3590, %v253
    %3592 = vadd.xlane.f32.xlu0 %v3591
    %v3593 = vpop.xlane.xlu0 %3592
    %v3594 = vadd.f32 %v254, %v255
    %v3595 = vadd.f32 %v3594, %v256
    %v3596 = vadd.f32 %v3595, %v257
    %3597 = vadd.xlane.f32.xlu0 %v3596
    %v3598 = vpop.xlane.xlu0 %3597
    %v3599 = vadd.f32 %v258, %v259
    %v3600 = vadd.f32 %v3599, %v260
    %v3601 = vadd.f32 %v3600, %v261
    %3602 = vadd.xlane.f32.xlu0 %v3601
    %v3603 = vpop.xlane.xlu0 %3602
    %v3604 = vadd.f32 %v262, %v263
    %v3605 = vadd.f32 %v3604, %v264
    %v3606 = vadd.f32 %v3605, %v265
    %3607 = vadd.xlane.f32.xlu0 %v3606
    %v3608 = vpop.xlane.xlu0 %3607
    %v3609 = vadd.f32 %v266, %v267
    %v3610 = vadd.f32 %v3609, %v268
    %v3611 = vadd.f32 %v3610, %v269
    %3612 = vadd.xlane.f32.xlu0 %v3611
    %v3613 = vpop.xlane.xlu0 %3612
    %v3614 = vadd.f32 %v270, %v271
    %v3615 = vadd.f32 %v3614, %v272
    %v3616 = vadd.f32 %v3615, %v273
    %3617 = vadd.xlane.f32.xlu0 %v3616
    %v3618 = vpop.xlane.xlu0 %3617
    %v3619 = vadd.f32 %v274, %v275
    %v3620 = vadd.f32 %v3619, %v276
    %v3621 = vadd.f32 %v3620, %v277
    %3622 = vadd.xlane.f32.xlu0 %v3621
    %v3623 = vpop.xlane.xlu0 %3622
    %v3624 = vadd.f32 %v278, %v279
    %v3625 = vadd.f32 %v3624, %v280
    %v3626 = vadd.f32 %v3625, %v281
    %3627 = vadd.xlane.f32.xlu0 %v3626
    %v3628 = vpop.xlane.xlu0 %3627
    %v3629 = vadd.f32 %v3245, %v3313
    %v3630 = vadd.f32 %v3246, %v3318
    %v3631 = vadd.f32 %v3247, %v3323
    %v3632 = vadd.f32 %v3248, %v3328
    %v3633 = vadd.f32 %v3249, %v3333
    %v3634 = vadd.f32 %v3250, %v3338
    %v3635 = vadd.f32 %v3251, %v3343
    %v3636 = vadd.f32 %v3252, %v3348
    %v3637 = vadd.f32 %v3253, %v3353
    %v3638 = vadd.f32 %v3254, %v3358
    %v3639 = vadd.f32 %v3255, %v3363
    %v3640 = vadd.f32 %v3256, %v3368
    %v3641 = vadd.f32 %v3257, %v3373
    %v3642 = vadd.f32 %v3258, %v3378
    %v3643 = vadd.f32 %v3259, %v3383
    %v3644 = vadd.f32 %v3260, %v3388
    %v3645 = vadd.f32 %v3261, %v3393
    %v3646 = vadd.f32 %v3262, %v3398
    %v3647 = vadd.f32 %v3263, %v3403
    %v3648 = vadd.f32 %v3264, %v3408
    %v3649 = vadd.f32 %v3265, %v3413
    %v3650 = vadd.f32 %v3266, %v3418
    %v3651 = vadd.f32 %v3267, %v3423
    %v3652 = vadd.f32 %v3268, %v3428
    %v3653 = vadd.f32 %v3269, %v3433
    %v3654 = vadd.f32 %v3270, %v3438
    %v3655 = vadd.f32 %v3271, %v3443
    %v3656 = vadd.f32 %v3272, %v3448
    %v3657 = vadd.f32 %v3273, %v3453
    %v3658 = vadd.f32 %v3274, %v3458
    %v3659 = vadd.f32 %v3275, %v3463
    %v3660 = vadd.f32 %v3276, %v3468
    %v3661 = vadd.f32 %v3277, %v3473
    %v3662 = vadd.f32 %v3278, %v3478
    %v3663 = vadd.f32 %v3279, %v3483
    %v3664 = vadd.f32 %v3280, %v3488
    %v3665 = vadd.f32 %v3281, %v3493
    %v3666 = vadd.f32 %v3282, %v3498
    %v3667 = vadd.f32 %v3283, %v3503
    %v3668 = vadd.f32 %v3284, %v3508
    %v3669 = vadd.f32 %v3285, %v3513
    %v3670 = vadd.f32 %v3286, %v3518
    %v3671 = vadd.f32 %v3287, %v3523
    %v3672 = vadd.f32 %v3288, %v3528
    %v3673 = vadd.f32 %v3289, %v3533
    %v3674 = vadd.f32 %v3290, %v3538
    %v3675 = vadd.f32 %v3291, %v3543
    %v3676 = vadd.f32 %v3292, %v3548
    %v3677 = vadd.f32 %v3293, %v3553
    %v3678 = vadd.f32 %v3294, %v3558
    %v3679 = vadd.f32 %v3295, %v3563
    %v3680 = vadd.f32 %v3296, %v3568
    %v3681 = vadd.f32 %v3297, %v3573
    %v3682 = vadd.f32 %v3298, %v3578
    %v3683 = vadd.f32 %v3299, %v3583
    %v3684 = vadd.f32 %v3300, %v3588
    %v3685 = vadd.f32 %v3301, %v3593
    %v3686 = vadd.f32 %v3302, %v3598
    %v3687 = vadd.f32 %v3303, %v3603
    %v3688 = vadd.f32 %v3304, %v3608
    %v3689 = vadd.f32 %v3305, %v3613
    %v3690 = vadd.f32 %v3306, %v3618
    %v3691 = vadd.f32 %v3307, %v3623
    %v3692 = vadd.f32 %v3308, %v3628
    %vm3693 = vcmask 7168
    %3694 = vst.msk [vmem:[#allocation2] sm:$0xff] %vm3693, %v3629
    %3695 = vst.msk [vmem:[#allocation2 + $0x8] sm:$0xff] %vm3693, %v3630
    %3696 = vst.msk [vmem:[#allocation2 + $0x10] sm:$0xff] %vm3693, %v3631
    %3697 = vst.msk [vmem:[#allocation2 + $0x18] sm:$0xff] %vm3693, %v3632
    %3698 = vst.msk [vmem:[#allocation2 + $0x20] sm:$0xff] %vm3693, %v3633
    %3699 = vst.msk [vmem:[#allocation2 + $0x28] sm:$0xff] %vm3693, %v3634
    %3700 = vst.msk [vmem:[#allocation2 + $0x30] sm:$0xff] %vm3693, %v3635
    %3701 = vst.msk [vmem:[#allocation2 + $0x38] sm:$0xff] %vm3693, %v3636
    %3702 = vst.msk [vmem:[#allocation2 + $0x40] sm:$0xff] %vm3693, %v3637
    %3703 = vst.msk [vmem:[#allocation2 + $0x48] sm:$0xff] %vm3693, %v3638
    %3704 = vst.msk [vmem:[#allocation2 + $0x50] sm:$0xff] %vm3693, %v3639
    %3705 = vst.msk [vmem:[#allocation2 + $0x58] sm:$0xff] %vm3693, %v3640
    %3706 = vst.msk [vmem:[#allocation2 + $0x60] sm:$0xff] %vm3693, %v3641
    %3707 = vst.msk [vmem:[#allocation2 + $0x68] sm:$0xff] %vm3693, %v3642
    %3708 = vst.msk [vmem:[#allocation2 + $0x70] sm:$0xff] %vm3693, %v3643
    %3709 = vst.msk [vmem:[#allocation2 + $0x78] sm:$0xff] %vm3693, %v3644
    %3710 = vst.msk [vmem:[#allocation2 + $0x80] sm:$0xff] %vm3693, %v3645
    %3711 = vst.msk [vmem:[#allocation2 + $0x88] sm:$0xff] %vm3693, %v3646
    %3712 = vst.msk [vmem:[#allocation2 + $0x90] sm:$0xff] %vm3693, %v3647
    %3713 = vst.msk [vmem:[#allocation2 + $0x98] sm:$0xff] %vm3693, %v3648
    %3714 = vst.msk [vmem:[#allocation2 + $0xa0] sm:$0xff] %vm3693, %v3649
    %3715 = vst.msk [vmem:[#allocation2 + $0xa8] sm:$0xff] %vm3693, %v3650
    %3716 = vst.msk [vmem:[#allocation2 + $0xb0] sm:$0xff] %vm3693, %v3651
    %3717 = vst.msk [vmem:[#allocation2 + $0xb8] sm:$0xff] %vm3693, %v3652
    %3718 = vst.msk [vmem:[#allocation2 + $0xc0] sm:$0xff] %vm3693, %v3653
    %3719 = vst.msk [vmem:[#allocation2 + $0xc8] sm:$0xff] %vm3693, %v3654
    %3720 = vst.msk [vmem:[#allocation2 + $0xd0] sm:$0xff] %vm3693, %v3655
    %3721 = vst.msk [vmem:[#allocation2 + $0xd8] sm:$0xff] %vm3693, %v3656
    %3722 = vst.msk [vmem:[#allocation2 + $0xe0] sm:$0xff] %vm3693, %v3657
    %3723 = vst.msk [vmem:[#allocation2 + $0xe8] sm:$0xff] %vm3693, %v3658
    %3724 = vst.msk [vmem:[#allocation2 + $0xf0] sm:$0xff] %vm3693, %v3659
    %3725 = vst.msk [vmem:[#allocation2 + $0xf8] sm:$0xff] %vm3693, %v3660
    %3726 = vst.msk [vmem:[#allocation2 + $0x100] sm:$0xff] %vm3693, %v3661
    %3727 = vst.msk [vmem:[#allocation2 + $0x108] sm:$0xff] %vm3693, %v3662
    %3728 = vst.msk [vmem:[#allocation2 + $0x110] sm:$0xff] %vm3693, %v3663
    %3729 = vst.msk [vmem:[#allocation2 + $0x118] sm:$0xff] %vm3693, %v3664
    %3730 = vst.msk [vmem:[#allocation2 + $0x120] sm:$0xff] %vm3693, %v3665
    %3731 = vst.msk [vmem:[#allocation2 + $0x128] sm:$0xff] %vm3693, %v3666
    %3732 = vst.msk [vmem:[#allocation2 + $0x130] sm:$0xff] %vm3693, %v3667
    %3733 = vst.msk [vmem:[#allocation2 + $0x138] sm:$0xff] %vm3693, %v3668
    %3734 = vst.msk [vmem:[#allocation2 + $0x140] sm:$0xff] %vm3693, %v3669
    %3735 = vst.msk [vmem:[#allocation2 + $0x148] sm:$0xff] %vm3693, %v3670
    %3736 = vst.msk [vmem:[#allocation2 + $0x150] sm:$0xff] %vm3693, %v3671
    %3737 = vst.msk [vmem:[#allocation2 + $0x158] sm:$0xff] %vm3693, %v3672
    %3738 = vst.msk [vmem:[#allocation2 + $0x160] sm:$0xff] %vm3693, %v3673
    %3739 = vst.msk [vmem:[#allocation2 + $0x168] sm:$0xff] %vm3693, %v3674
    %3740 = vst.msk [vmem:[#allocation2 + $0x170] sm:$0xff] %vm3693, %v3675
    %3741 = vst.msk [vmem:[#allocation2 + $0x178] sm:$0xff] %vm3693, %v3676
    %3742 = vst.msk [vmem:[#allocation2 + $0x180] sm:$0xff] %vm3693, %v3677
    %3743 = vst.msk [vmem:[#allocation2 + $0x188] sm:$0xff] %vm3693, %v3678
    %3744 = vst.msk [vmem:[#allocation2 + $0x190] sm:$0xff] %vm3693, %v3679
    %3745 = vst.msk [vmem:[#allocation2 + $0x198] sm:$0xff] %vm3693, %v3680
    %3746 = vst.msk [vmem:[#allocation2 + $0x1a0] sm:$0xff] %vm3693, %v3681
    %3747 = vst.msk [vmem:[#allocation2 + $0x1a8] sm:$0xff] %vm3693, %v3682
    %3748 = vst.msk [vmem:[#allocation2 + $0x1b0] sm:$0xff] %vm3693, %v3683
    %3749 = vst.msk [vmem:[#allocation2 + $0x1b8] sm:$0xff] %vm3693, %v3684
    %3750 = vst.msk [vmem:[#allocation2 + $0x1c0] sm:$0xff] %vm3693, %v3685
    %3751 = vst.msk [vmem:[#allocation2 + $0x1c8] sm:$0xff] %vm3693, %v3686
    %3752 = vst.msk [vmem:[#allocation2 + $0x1d0] sm:$0xff] %vm3693, %v3687
    %3753 = vst.msk [vmem:[#allocation2 + $0x1d8] sm:$0xff] %vm3693, %v3688
    %3754 = vst.msk [vmem:[#allocation2 + $0x1e0] sm:$0xff] %vm3693, %v3689
    %3755 = vst.msk [vmem:[#allocation2 + $0x1e8] sm:$0xff] %vm3693, %v3690
    %3756 = vst.msk [vmem:[#allocation2 + $0x1f0] sm:$0xff] %vm3693, %v3691
    %3757 = vst.msk [vmem:[#allocation2 + $0x1f8] sm:$0xff] %vm3693, %v3692
    // Predicated region
    $region22: #{tpu_custom_call.1} parent=1 // pred_check
      %p3758 = pneg %p3176
    $region23: #{tpu_custom_call.1} parent=1 // pred_check_branch
      %3760 = sbr.rel (%p3758) target = $region25
    $region24: #{tpu_custom_call.1} parent=1 // pred_region
      %v3761 = vld [vmem:[#allocation2] sm:$0xff]
      %v3762 = vld [vmem:[#allocation2 + $0x8] sm:$0xff]
      %v3763 = vld [vmem:[#allocation2 + $0x10] sm:$0xff]
      %v3764 = vld [vmem:[#allocation2 + $0x18] sm:$0xff]
      %v3765 = vld [vmem:[#allocation2 + $0x20] sm:$0xff]
      %v3766 = vld [vmem:[#allocation2 + $0x28] sm:$0xff]
      %v3767 = vld [vmem:[#allocation2 + $0x30] sm:$0xff]
      %v3768 = vld [vmem:[#allocation2 + $0x38] sm:$0xff]
      %v3769 = vld [vmem:[#allocation2 + $0x40] sm:$0xff]
      %v3770 = vld [vmem:[#allocation2 + $0x48] sm:$0xff]
      %v3771 = vld [vmem:[#allocation2 + $0x50] sm:$0xff]
      %v3772 = vld [vmem:[#allocation2 + $0x58] sm:$0xff]
      %v3773 = vld [vmem:[#allocation2 + $0x60] sm:$0xff]
      %v3774 = vld [vmem:[#allocation2 + $0x68] sm:$0xff]
      %v3775 = vld [vmem:[#allocation2 + $0x70] sm:$0xff]
      %v3776 = vld [vmem:[#allocation2 + $0x78] sm:$0xff]
      %v3777 = vld [vmem:[#allocation2 + $0x80] sm:$0xff]
      %v3778 = vld [vmem:[#allocation2 + $0x88] sm:$0xff]
      %v3779 = vld [vmem:[#allocation2 + $0x90] sm:$0xff]
      %v3780 = vld [vmem:[#allocation2 + $0x98] sm:$0xff]
      %v3781 = vld [vmem:[#allocation2 + $0xa0] sm:$0xff]
      %v3782 = vld [vmem:[#allocation2 + $0xa8] sm:$0xff]
      %v3783 = vld [vmem:[#allocation2 + $0xb0] sm:$0xff]
      %v3784 = vld [vmem:[#allocation2 + $0xb8] sm:$0xff]
      %v3785 = vld [vmem:[#allocation2 + $0xc0] sm:$0xff]
      %v3786 = vld [vmem:[#allocation2 + $0xc8] sm:$0xff]
      %v3787 = vld [vmem:[#allocation2 + $0xd0] sm:$0xff]
      %v3788 = vld [vmem:[#allocation2 + $0xd8] sm:$0xff]
      %v3789 = vld [vmem:[#allocation2 + $0xe0] sm:$0xff]
      %v3790 = vld [vmem:[#allocation2 + $0xe8] sm:$0xff]
      %v3791 = vld [vmem:[#allocation2 + $0xf0] sm:$0xff]
      %v3792 = vld [vmem:[#allocation2 + $0xf8] sm:$0xff]
      %v3793 = vld [vmem:[#allocation2 + $0x100] sm:$0xff]
      %v3794 = vld [vmem:[#allocation2 + $0x108] sm:$0xff]
      %v3795 = vld [vmem:[#allocation2 + $0x110] sm:$0xff]
      %v3796 = vld [vmem:[#allocation2 + $0x118] sm:$0xff]
      %v3797 = vld [vmem:[#allocation2 + $0x120] sm:$0xff]
      %v3798 = vld [vmem:[#allocation2 + $0x128] sm:$0xff]
      %v3799 = vld [vmem:[#allocation2 + $0x130] sm:$0xff]
      %v3800 = vld [vmem:[#allocation2 + $0x138] sm:$0xff]
      %v3801 = vld [vmem:[#allocation2 + $0x140] sm:$0xff]
      %v3802 = vld [vmem:[#allocation2 + $0x148] sm:$0xff]
      %v3803 = vld [vmem:[#allocation2 + $0x150] sm:$0xff]
      %v3804 = vld [vmem:[#allocation2 + $0x158] sm:$0xff]
      %v3805 = vld [vmem:[#allocation2 + $0x160] sm:$0xff]
      %v3806 = vld [vmem:[#allocation2 + $0x168] sm:$0xff]
      %v3807 = vld [vmem:[#allocation2 + $0x170] sm:$0xff]
      %v3808 = vld [vmem:[#allocation2 + $0x178] sm:$0xff]
      %v3809 = vld [vmem:[#allocation2 + $0x180] sm:$0xff]
      %v3810 = vld [vmem:[#allocation2 + $0x188] sm:$0xff]
      %v3811 = vld [vmem:[#allocation2 + $0x190] sm:$0xff]
      %v3812 = vld [vmem:[#allocation2 + $0x198] sm:$0xff]
      %v3813 = vld [vmem:[#allocation2 + $0x1a0] sm:$0xff]
      %v3814 = vld [vmem:[#allocation2 + $0x1a8] sm:$0xff]
      %v3815 = vld [vmem:[#allocation2 + $0x1b0] sm:$0xff]
      %v3816 = vld [vmem:[#allocation2 + $0x1b8] sm:$0xff]
      %v3817 = vld [vmem:[#allocation2 + $0x1c0] sm:$0xff]
      %v3818 = vld [vmem:[#allocation2 + $0x1c8] sm:$0xff]
      %v3819 = vld [vmem:[#allocation2 + $0x1d0] sm:$0xff]
      %v3820 = vld [vmem:[#allocation2 + $0x1d8] sm:$0xff]
      %v3821 = vld [vmem:[#allocation2 + $0x1e0] sm:$0xff]
      %v3822 = vld [vmem:[#allocation2 + $0x1e8] sm:$0xff]
      %v3823 = vld [vmem:[#allocation2 + $0x1f0] sm:$0xff]
      %v3824 = vld [vmem:[#allocation2 + $0x1f8] sm:$0xff]
      %v3825 = vadd.f32 %v3761, 1.0
      %v3826 = vadd.f32 %v3762, 1.0
      %v3827 = vadd.f32 %v3763, 1.0
      %v3828 = vadd.f32 %v3764, 1.0
      %v3829 = vadd.f32 %v3765, 1.0
      %v3830 = vadd.f32 %v3766, 1.0
      %v3831 = vadd.f32 %v3767, 1.0
      %v3832 = vadd.f32 %v3768, 1.0
      %v3833 = vadd.f32 %v3769, 1.0
      %v3834 = vadd.f32 %v3770, 1.0
      %v3835 = vadd.f32 %v3771, 1.0
      %v3836 = vadd.f32 %v3772, 1.0
      %v3837 = vadd.f32 %v3773, 1.0
      %v3838 = vadd.f32 %v3774, 1.0
      %v3839 = vadd.f32 %v3775, 1.0
      %v3840 = vadd.f32 %v3776, 1.0
      %v3841 = vadd.f32 %v3777, 1.0
      %v3842 = vadd.f32 %v3778, 1.0
      %v3843 = vadd.f32 %v3779, 1.0
      %v3844 = vadd.f32 %v3780, 1.0
      %v3845 = vadd.f32 %v3781, 1.0
      %v3846 = vadd.f32 %v3782, 1.0
      %v3847 = vadd.f32 %v3783, 1.0
      %v3848 = vadd.f32 %v3784, 1.0
      %v3849 = vadd.f32 %v3785, 1.0
      %v3850 = vadd.f32 %v3786, 1.0
      %v3851 = vadd.f32 %v3787, 1.0
      %v3852 = vadd.f32 %v3788, 1.0
      %v3853 = vadd.f32 %v3789, 1.0
      %v3854 = vadd.f32 %v3790, 1.0
      %v3855 = vadd.f32 %v3791, 1.0
      %v3856 = vadd.f32 %v3792, 1.0
      %v3857 = vadd.f32 %v3793, 1.0
      %v3858 = vadd.f32 %v3794, 1.0
      %v3859 = vadd.f32 %v3795, 1.0
      %v3860 = vadd.f32 %v3796, 1.0
      %v3861 = vadd.f32 %v3797, 1.0
      %v3862 = vadd.f32 %v3798, 1.0
      %v3863 = vadd.f32 %v3799, 1.0
      %v3864 = vadd.f32 %v3800, 1.0
      %v3865 = vadd.f32 %v3801, 1.0
      %v3866 = vadd.f32 %v3802, 1.0
      %v3867 = vadd.f32 %v3803, 1.0
      %v3868 = vadd.f32 %v3804, 1.0
      %v3869 = vadd.f32 %v3805, 1.0
      %v3870 = vadd.f32 %v3806, 1.0
      %v3871 = vadd.f32 %v3807, 1.0
      %v3872 = vadd.f32 %v3808, 1.0
      %v3873 = vadd.f32 %v3809, 1.0
      %v3874 = vadd.f32 %v3810, 1.0
      %v3875 = vadd.f32 %v3811, 1.0
      %v3876 = vadd.f32 %v3812, 1.0
      %v3877 = vadd.f32 %v3813, 1.0
      %v3878 = vadd.f32 %v3814, 1.0
      %v3879 = vadd.f32 %v3815, 1.0
      %v3880 = vadd.f32 %v3816, 1.0
      %v3881 = vadd.f32 %v3817, 1.0
      %v3882 = vadd.f32 %v3818, 1.0
      %v3883 = vadd.f32 %v3819, 1.0
      %v3884 = vadd.f32 %v3820, 1.0
      %v3885 = vadd.f32 %v3821, 1.0
      %v3886 = vadd.f32 %v3822, 1.0
      %v3887 = vadd.f32 %v3823, 1.0
      %v3888 = vadd.f32 %v3824, 1.0
      %v3889 = vrsqrt.pop %v3825
      %v3890 = vrsqrt.pop %v3826
      %v3891 = vrsqrt.pop %v3827
      %v3892 = vrsqrt.pop %v3828
      %v3893 = vrsqrt.pop %v3829
      %v3894 = vrsqrt.pop %v3830
      %v3895 = vrsqrt.pop %v3831
      %v3896 = vrsqrt.pop %v3832
      %v3897 = vrsqrt.pop %v3833
      %v3898 = vrsqrt.pop %v3834
      %v3899 = vrsqrt.pop %v3835
      %v3900 = vrsqrt.pop %v3836
      %v3901 = vrsqrt.pop %v3837
      %v3902 = vrsqrt.pop %v3838
      %v3903 = vrsqrt.pop %v3839
      %v3904 = vrsqrt.pop %v3840
      %v3905 = vrsqrt.pop %v3841
      %v3906 = vrsqrt.pop %v3842
      %v3907 = vrsqrt.pop %v3843
      %v3908 = vrsqrt.pop %v3844
      %v3909 = vrsqrt.pop %v3845
      %v3910 = vrsqrt.pop %v3846
      %v3911 = vrsqrt.pop %v3847
      %v3912 = vrsqrt.pop %v3848
      %v3913 = vrsqrt.pop %v3849
      %v3914 = vrsqrt.pop %v3850
      %v3915 = vrsqrt.pop %v3851
      %v3916 = vrsqrt.pop %v3852
      %v3917 = vrsqrt.pop %v3853
      %v3918 = vrsqrt.pop %v3854
      %v3919 = vrsqrt.pop %v3855
      %v3920 = vrsqrt.pop %v3856
      %v3921 = vrsqrt.pop %v3857
      %v3922 = vrsqrt.pop %v3858
      %v3923 = vrsqrt.pop %v3859
      %v3924 = vrsqrt.pop %v3860
      %v3925 = vrsqrt.pop %v3861
      %v3926 = vrsqrt.pop %v3862
      %v3927 = vrsqrt.pop %v3863
      %v3928 = vrsqrt.pop %v3864
      %v3929 = vrsqrt.pop %v3865
      %v3930 = vrsqrt.pop %v3866
      %v3931 = vrsqrt.pop %v3867
      %v3932 = vrsqrt.pop %v3868
      %v3933 = vrsqrt.pop %v3869
      %v3934 = vrsqrt.pop %v3870
      %v3935 = vrsqrt.pop %v3871
      %v3936 = vrsqrt.pop %v3872
      %v3937 = vrsqrt.pop %v3873
      %v3938 = vrsqrt.pop %v3874
      %v3939 = vrsqrt.pop %v3875
      %v3940 = vrsqrt.pop %v3876
      %v3941 = vrsqrt.pop %v3877
      %v3942 = vrsqrt.pop %v3878
      %v3943 = vrsqrt.pop %v3879
      %v3944 = vrsqrt.pop %v3880
      %v3945 = vrsqrt.pop %v3881
      %v3946 = vrsqrt.pop %v3882
      %v3947 = vrsqrt.pop %v3883
      %v3948 = vrsqrt.pop %v3884
      %v3949 = vrsqrt.pop %v3885
      %v3950 = vrsqrt.pop %v3886
      %v3951 = vrsqrt.pop %v3887
      %v3952 = vrsqrt.pop %v3888
      %3953 = vst.msk [vmem:[%s2] sm:$0xff] %vm3693, %v3889
      %3954 = vst.msk [vmem:[%s2 + $0x8] sm:$0xff] %vm3693, %v3890
      %3955 = vst.msk [vmem:[%s2 + $0x10] sm:$0xff] %vm3693, %v3891
      %3956 = vst.msk [vmem:[%s2 + $0x18] sm:$0xff] %vm3693, %v3892
      %3957 = vst.msk [vmem:[%s2 + $0x20] sm:$0xff] %vm3693, %v3893
      %3958 = vst.msk [vmem:[%s2 + $0x28] sm:$0xff] %vm3693, %v3894
      %3959 = vst.msk [vmem:[%s2 + $0x30] sm:$0xff] %vm3693, %v3895
      %3960 = vst.msk [vmem:[%s2 + $0x38] sm:$0xff] %vm3693, %v3896
      %3961 = vst.msk [vmem:[%s2 + $0x40] sm:$0xff] %vm3693, %v3897
      %3962 = vst.msk [vmem:[%s2 + $0x48] sm:$0xff] %vm3693, %v3898
      %3963 = vst.msk [vmem:[%s2 + $0x50] sm:$0xff] %vm3693, %v3899
      %3964 = vst.msk [vmem:[%s2 + $0x58] sm:$0xff] %vm3693, %v3900
      %3965 = vst.msk [vmem:[%s2 + $0x60] sm:$0xff] %vm3693, %v3901
      %3966 = vst.msk [vmem:[%s2 + $0x68] sm:$0xff] %vm3693, %v3902
      %3967 = vst.msk [vmem:[%s2 + $0x70] sm:$0xff] %vm3693, %v3903
      %3968 = vst.msk [vmem:[%s2 + $0x78] sm:$0xff] %vm3693, %v3904
      %3969 = vst.msk [vmem:[%s2 + $0x80] sm:$0xff] %vm3693, %v3905
      %3970 = vst.msk [vmem:[%s2 + $0x88] sm:$0xff] %vm3693, %v3906
      %3971 = vst.msk [vmem:[%s2 + $0x90] sm:$0xff] %vm3693, %v3907
      %3972 = vst.msk [vmem:[%s2 + $0x98] sm:$0xff] %vm3693, %v3908
      %3973 = vst.msk [vmem:[%s2 + $0xa0] sm:$0xff] %vm3693, %v3909
      %3974 = vst.msk [vmem:[%s2 + $0xa8] sm:$0xff] %vm3693, %v3910
      %3975 = vst.msk [vmem:[%s2 + $0xb0] sm:$0xff] %vm3693, %v3911
      %3976 = vst.msk [vmem:[%s2 + $0xb8] sm:$0xff] %vm3693, %v3912
      %3977 = vst.msk [vmem:[%s2 + $0xc0] sm:$0xff] %vm3693, %v3913
      %3978 = vst.msk [vmem:[%s2 + $0xc8] sm:$0xff] %vm3693, %v3914
      %3979 = vst.msk [vmem:[%s2 + $0xd0] sm:$0xff] %vm3693, %v3915
      %3980 = vst.msk [vmem:[%s2 + $0xd8] sm:$0xff] %vm3693, %v3916
      %3981 = vst.msk [vmem:[%s2 + $0xe0] sm:$0xff] %vm3693, %v3917
      %3982 = vst.msk [vmem:[%s2 + $0xe8] sm:$0xff] %vm3693, %v3918
      %3983 = vst.msk [vmem:[%s2 + $0xf0] sm:$0xff] %vm3693, %v3919
      %3984 = vst.msk [vmem:[%s2 + $0xf8] sm:$0xff] %vm3693, %v3920
      %3985 = vst.msk [vmem:[%s2 + $0x100] sm:$0xff] %vm3693, %v3921
      %3986 = vst.msk [vmem:[%s2 + $0x108] sm:$0xff] %vm3693, %v3922
      %3987 = vst.msk [vmem:[%s2 + $0x110] sm:$0xff] %vm3693, %v3923
      %3988 = vst.msk [vmem:[%s2 + $0x118] sm:$0xff] %vm3693, %v3924
      %3989 = vst.msk [vmem:[%s2 + $0x120] sm:$0xff] %vm3693, %v3925
      %3990 = vst.msk [vmem:[%s2 + $0x128] sm:$0xff] %vm3693, %v3926
      %3991 = vst.msk [vmem:[%s2 + $0x130] sm:$0xff] %vm3693, %v3927
      %3992 = vst.msk [vmem:[%s2 + $0x138] sm:$0xff] %vm3693, %v3928
      %3993 = vst.msk [vmem:[%s2 + $0x140] sm:$0xff] %vm3693, %v3929
      %3994 = vst.msk [vmem:[%s2 + $0x148] sm:$0xff] %vm3693, %v3930
      %3995 = vst.msk [vmem:[%s2 + $0x150] sm:$0xff] %vm3693, %v3931
      %3996 = vst.msk [vmem:[%s2 + $0x158] sm:$0xff] %vm3693, %v3932
      %3997 = vst.msk [vmem:[%s2 + $0x160] sm:$0xff] %vm3693, %v3933
      %3998 = vst.msk [vmem:[%s2 + $0x168] sm:$0xff] %vm3693, %v3934
      %3999 = vst.msk [vmem:[%s2 + $0x170] sm:$0xff] %vm3693, %v3935
      %4000 = vst.msk [vmem:[%s2 + $0x178] sm:$0xff] %vm3693, %v3936
      %4001 = vst.msk [vmem:[%s2 + $0x180] sm:$0xff] %vm3693, %v3937
      %4002 = vst.msk [vmem:[%s2 + $0x188] sm:$0xff] %vm3693, %v3938
      %4003 = vst.msk [vmem:[%s2 + $0x190] sm:$0xff] %vm3693, %v3939
      %4004 = vst.msk [vmem:[%s2 + $0x198] sm:$0xff] %vm3693, %v3940
      %4005 = vst.msk [vmem:[%s2 + $0x1a0] sm:$0xff] %vm3693, %v3941
      %4006 = vst.msk [vmem:[%s2 + $0x1a8] sm:$0xff] %vm3693, %v3942
      %4007 = vst.msk [vmem:[%s2 + $0x1b0] sm:$0xff] %vm3693, %v3943
      %4008 = vst.msk [vmem:[%s2 + $0x1b8] sm:$0xff] %vm3693, %v3944
      %4009 = vst.msk [vmem:[%s2 + $0x1c0] sm:$0xff] %vm3693, %v3945
      %4010 = vst.msk [vmem:[%s2 + $0x1c8] sm:$0xff] %vm3693, %v3946
      %4011 = vst.msk [vmem:[%s2 + $0x1d0] sm:$0xff] %vm3693, %v3947
      %4012 = vst.msk [vmem:[%s2 + $0x1d8] sm:$0xff] %vm3693, %v3948
      %4013 = vst.msk [vmem:[%s2 + $0x1e0] sm:$0xff] %vm3693, %v3949
      %4014 = vst.msk [vmem:[%s2 + $0x1e8] sm:$0xff] %vm3693, %v3950
      %4015 = vst.msk [vmem:[%s2 + $0x1f0] sm:$0xff] %vm3693, %v3951
      %4016 = vst.msk [vmem:[%s2 + $0x1f8] sm:$0xff] %vm3693, %v3952
      %v4017 = vmul.f32 %v3889, %v3889
      %v4018 = vmul.f32 %v3890, %v3890
      %v4019 = vmul.f32 %v3891, %v3891
      %v4020 = vmul.f32 %v3892, %v3892
      %v4021 = vmul.f32 %v3893, %v3893
      %v4022 = vmul.f32 %v3894, %v3894
      %v4023 = vmul.f32 %v3895, %v3895
      %v4024 = vmul.f32 %v3896, %v3896
      %v4025 = vmul.f32 %v3897, %v3897
      %v4026 = vmul.f32 %v3898, %v3898
      %v4027 = vmul.f32 %v3899, %v3899
      %v4028 = vmul.f32 %v3900, %v3900
      %v4029 = vmul.f32 %v3901, %v3901
      %v4030 = vmul.f32 %v3902, %v3902
      %v4031 = vmul.f32 %v3903, %v3903
      %v4032 = vmul.f32 %v3904, %v3904
      %v4033 = vmul.f32 %v3905, %v3905
      %v4034 = vmul.f32 %v3906, %v3906
      %v4035 = vmul.f32 %v3907, %v3907
      %v4036 = vmul.f32 %v3908, %v3908
      %v4037 = vmul.f32 %v3909, %v3909
      %v4038 = vmul.f32 %v3910, %v3910
      %v4039 = vmul.f32 %v3911, %v3911
      %v4040 = vmul.f32 %v3912, %v3912
      %v4041 = vmul.f32 %v3913, %v3913
      %v4042 = vmul.f32 %v3914, %v3914
      %v4043 = vmul.f32 %v3915, %v3915
      %v4044 = vmul.f32 %v3916, %v3916
      %v4045 = vmul.f32 %v3917, %v3917
      %v4046 = vmul.f32 %v3918, %v3918
      %v4047 = vmul.f32 %v3919, %v3919
      %v4048 = vmul.f32 %v3920, %v3920
      %v4049 = vmul.f32 %v3921, %v3921
      %v4050 = vmul.f32 %v3922, %v3922
      %v4051 = vmul.f32 %v3923, %v3923
      %v4052 = vmul.f32 %v3924, %v3924
      %v4053 = vmul.f32 %v3925, %v3925
      %v4054 = vmul.f32 %v3926, %v3926
      %v4055 = vmul.f32 %v3927, %v3927
      %v4056 = vmul.f32 %v3928, %v3928
      %v4057 = vmul.f32 %v3929, %v3929
      %v4058 = vmul.f32 %v3930, %v3930
      %v4059 = vmul.f32 %v3931, %v3931
      %v4060 = vmul.f32 %v3932, %v3932
      %v4061 = vmul.f32 %v3933, %v3933
      %v4062 = vmul.f32 %v3934, %v3934
      %v4063 = vmul.f32 %v3935, %v3935
      %v4064 = vmul.f32 %v3936, %v3936
      %v4065 = vmul.f32 %v3937, %v3937
      %v4066 = vmul.f32 %v3938, %v3938
      %v4067 = vmul.f32 %v3939, %v3939
      %v4068 = vmul.f32 %v3940, %v3940
      %v4069 = vmul.f32 %v3941, %v3941
      %v4070 = vmul.f32 %v3942, %v3942
      %v4071 = vmul.f32 %v3943, %v3943
      %v4072 = vmul.f32 %v3944, %v3944
      %v4073 = vmul.f32 %v3945, %v3945
      %v4074 = vmul.f32 %v3946, %v3946
      %v4075 = vmul.f32 %v3947, %v3947
      %v4076 = vmul.f32 %v3948, %v3948
      %v4077 = vmul.f32 %v3949, %v3949
      %v4078 = vmul.f32 %v3950, %v3950
      %v4079 = vmul.f32 %v3951, %v3951
      %v4080 = vmul.f32 %v3952, %v3952
      %4081 = vst.msk [vmem:[%s3] sm:$0xff] %vm3693, %v4017
      %4082 = vst.msk [vmem:[%s3 + $0x8] sm:$0xff] %vm3693, %v4018
      %4083 = vst.msk [vmem:[%s3 + $0x10] sm:$0xff] %vm3693, %v4019
      %4084 = vst.msk [vmem:[%s3 + $0x18] sm:$0xff] %vm3693, %v4020
      %4085 = vst.msk [vmem:[%s3 + $0x20] sm:$0xff] %vm3693, %v4021
      %4086 = vst.msk [vmem:[%s3 + $0x28] sm:$0xff] %vm3693, %v4022
      %4087 = vst.msk [vmem:[%s3 + $0x30] sm:$0xff] %vm3693, %v4023
      %4088 = vst.msk [vmem:[%s3 + $0x38] sm:$0xff] %vm3693, %v4024
      %4089 = vst.msk [vmem:[%s3 + $0x40] sm:$0xff] %vm3693, %v4025
      %4090 = vst.msk [vmem:[%s3 + $0x48] sm:$0xff] %vm3693, %v4026
      %4091 = vst.msk [vmem:[%s3 + $0x50] sm:$0xff] %vm3693, %v4027
      %4092 = vst.msk [vmem:[%s3 + $0x58] sm:$0xff] %vm3693, %v4028
      %4093 = vst.msk [vmem:[%s3 + $0x60] sm:$0xff] %vm3693, %v4029
      %4094 = vst.msk [vmem:[%s3 + $0x68] sm:$0xff] %vm3693, %v4030
      %4095 = vst.msk [vmem:[%s3 + $0x70] sm:$0xff] %vm3693, %v4031
      %4096 = vst.msk [vmem:[%s3 + $0x78] sm:$0xff] %vm3693, %v4032
      %4097 = vst.msk [vmem:[%s3 + $0x80] sm:$0xff] %vm3693, %v4033
      %4098 = vst.msk [vmem:[%s3 + $0x88] sm:$0xff] %vm3693, %v4034
      %4099 = vst.msk [vmem:[%s3 + $0x90] sm:$0xff] %vm3693, %v4035
      %4100 = vst.msk [vmem:[%s3 + $0x98] sm:$0xff] %vm3693, %v4036
      %4101 = vst.msk [vmem:[%s3 + $0xa0] sm:$0xff] %vm3693, %v4037
      %4102 = vst.msk [vmem:[%s3 + $0xa8] sm:$0xff] %vm3693, %v4038
      %4103 = vst.msk [vmem:[%s3 + $0xb0] sm:$0xff] %vm3693, %v4039
      %4104 = vst.msk [vmem:[%s3 + $0xb8] sm:$0xff] %vm3693, %v4040
      %4105 = vst.msk [vmem:[%s3 + $0xc0] sm:$0xff] %vm3693, %v4041
      %4106 = vst.msk [vmem:[%s3 + $0xc8] sm:$0xff] %vm3693, %v4042
      %4107 = vst.msk [vmem:[%s3 + $0xd0] sm:$0xff] %vm3693, %v4043
      %4108 = vst.msk [vmem:[%s3 + $0xd8] sm:$0xff] %vm3693, %v4044
      %4109 = vst.msk [vmem:[%s3 + $0xe0] sm:$0xff] %vm3693, %v4045
      %4110 = vst.msk [vmem:[%s3 + $0xe8] sm:$0xff] %vm3693, %v4046
      %4111 = vst.msk [vmem:[%s3 + $0xf0] sm:$0xff] %vm3693, %v4047
      %4112 = vst.msk [vmem:[%s3 + $0xf8] sm:$0xff] %vm3693, %v4048
      %4113 = vst.msk [vmem:[%s3 + $0x100] sm:$0xff] %vm3693, %v4049
      %4114 = vst.msk [vmem:[%s3 + $0x108] sm:$0xff] %vm3693, %v4050
      %4115 = vst.msk [vmem:[%s3 + $0x110] sm:$0xff] %vm3693, %v4051
      %4116 = vst.msk [vmem:[%s3 + $0x118] sm:$0xff] %vm3693, %v4052
      %4117 = vst.msk [vmem:[%s3 + $0x120] sm:$0xff] %vm3693, %v4053
      %4118 = vst.msk [vmem:[%s3 + $0x128] sm:$0xff] %vm3693, %v4054
      %4119 = vst.msk [vmem:[%s3 + $0x130] sm:$0xff] %vm3693, %v4055
      %4120 = vst.msk [vmem:[%s3 + $0x138] sm:$0xff] %vm3693, %v4056
      %4121 = vst.msk [vmem:[%s3 + $0x140] sm:$0xff] %vm3693, %v4057
      %4122 = vst.msk [vmem:[%s3 + $0x148] sm:$0xff] %vm3693, %v4058
      %4123 = vst.msk [vmem:[%s3 + $0x150] sm:$0xff] %vm3693, %v4059
      %4124 = vst.msk [vmem:[%s3 + $0x158] sm:$0xff] %vm3693, %v4060
      %4125 = vst.msk [vmem:[%s3 + $0x160] sm:$0xff] %vm3693, %v4061
      %4126 = vst.msk [vmem:[%s3 + $0x168] sm:$0xff] %vm3693, %v4062
      %4127 = vst.msk [vmem:[%s3 + $0x170] sm:$0xff] %vm3693, %v4063
      %4128 = vst.msk [vmem:[%s3 + $0x178] sm:$0xff] %vm3693, %v4064
      %4129 = vst.msk [vmem:[%s3 + $0x180] sm:$0xff] %vm3693, %v4065
      %4130 = vst.msk [vmem:[%s3 + $0x188] sm:$0xff] %vm3693, %v4066
      %4131 = vst.msk [vmem:[%s3 + $0x190] sm:$0xff] %vm3693, %v4067
      %4132 = vst.msk [vmem:[%s3 + $0x198] sm:$0xff] %vm3693, %v4068
      %4133 = vst.msk [vmem:[%s3 + $0x1a0] sm:$0xff] %vm3693, %v4069
      %4134 = vst.msk [vmem:[%s3 + $0x1a8] sm:$0xff] %vm3693, %v4070
      %4135 = vst.msk [vmem:[%s3 + $0x1b0] sm:$0xff] %vm3693, %v4071
      %4136 = vst.msk [vmem:[%s3 + $0x1b8] sm:$0xff] %vm3693, %v4072
      %4137 = vst.msk [vmem:[%s3 + $0x1c0] sm:$0xff] %vm3693, %v4073
      %4138 = vst.msk [vmem:[%s3 + $0x1c8] sm:$0xff] %vm3693, %v4074
      %4139 = vst.msk [vmem:[%s3 + $0x1d0] sm:$0xff] %vm3693, %v4075
      %4140 = vst.msk [vmem:[%s3 + $0x1d8] sm:$0xff] %vm3693, %v4076
      %4141 = vst.msk [vmem:[%s3 + $0x1e0] sm:$0xff] %vm3693, %v4077
      %4142 = vst.msk [vmem:[%s3 + $0x1e8] sm:$0xff] %vm3693, %v4078
      %4143 = vst.msk [vmem:[%s3 + $0x1f0] sm:$0xff] %vm3693, %v4079
      %4144 = vst.msk [vmem:[%s3 + $0x1f8] sm:$0xff] %vm3693, %v4080
    $region25: #{tpu_custom_call.1} parent=1 // pred_fallthru
      _
    // Predicated region
    $region26: #{tpu_custom_call.1} parent=1 // pred_check
      _
    $region27: #{tpu_custom_call.1} parent=1 // pred_check_branch
      %4146 = sbr.rel (0) target = $region29
    $region28: #{tpu_custom_call.1} parent=1 // pred_region
      %s4148 = ssub.s32 16384, 16384
      %4149 = vsyncadd [#allocation5], %s4148
      %s4150 = sshll.u32 [#allocation6], 4
      %s4151 = int_to_ptr.vmem [resolvable:$true] %s4150
      %4156 = dma.vmem_to_hbm [thread:$0]  %s4151, 16384, %s1, [#allocation5], 256, 256, 16
    $region29: #{tpu_custom_call.1} parent=1 // pred_fallthru
      _
    // Predicated region
    $region30: #{tpu_custom_call.1} parent=1 // pred_check
      _
    $region31: #{tpu_custom_call.1} parent=1 // pred_check_branch
      %4158 = sbr.rel (0) target = $region33
    $region32: #{tpu_custom_call.1} parent=1 // pred_region
      _
    $region33: #{tpu_custom_call.1} parent=1 // pred_fallthru
      _
    // Predicated region
    $region34: #{tpu_custom_call.1} parent=1 // pred_check
      _
    $region35: #{tpu_custom_call.1} parent=1 // pred_check_branch
      %4160 = sbr.rel (0) target = $region37
    $region36: #{tpu_custom_call.1} parent=1 // pred_region
      _
    $region37: #{tpu_custom_call.1} parent=1 // pred_fallthru
      _
    // Predicated region
    $region38: #{tpu_custom_call.1} parent=1 // pred_check
      _
    $region39: #{tpu_custom_call.1} parent=1 // pred_check_branch
      %4162 = sbr.rel (0) target = $region41
    $region40: #{tpu_custom_call.1} parent=1 // pred_region
      %4163 = dma.done [#allocation5], 16384
    $region41: #{tpu_custom_call.1} parent=1 // pred_fallthru
      _
    // Predicated region
    $region42: #{tpu_custom_call.1} parent=1 // pred_check
      _
    $region43: #{tpu_custom_call.1} parent=1 // pred_check_branch
      %4165 = sbr.rel (0) target = $region45
    $region44: #{tpu_custom_call.1} parent=1 // pred_region
      _
    $region45: #{tpu_custom_call.1} parent=1 // pred_fallthru
      _
    // Predicated region
    $region46: #{tpu_custom_call.1} parent=1 // pred_check
      _
    $region47: #{tpu_custom_call.1} parent=1 // pred_check_branch
      %4167 = sbr.rel (0) target = $region49
    $region48: #{tpu_custom_call.1} parent=1 // pred_region
      _
    $region49: #{tpu_custom_call.1} parent=1 // pred_fallthru
      _
    %4168 = vsyncpa [#allocation4], 1
    %4169 = vsyncpa [#allocation5], 1

</llo_original>
